<compile_context>
chip_gen: v6e
topology: v6e:2x2x1
jax: 0.10.0
libtpu: 0.0.40
codegen_flags: <defaults>
</compile_context>

<pallas_src>
import functools

import jax
import jax.numpy as jnp
from jax import lax
from jax.experimental import pallas as pl
from jax.experimental.pallas import tpu as pltpu

# ----------------------------- configuration --------------------------------
EMB = 32
NUM_DRUGS = 16
NUM_SYMPS = 16
NUM_DRUGSETS = 8
NUM_SYMPSETS = 8
NUM_LAYERS = 2
C_TEMP = 0.2
BATCH = 4
NEG_NUM = 2

VMEM_SPEC = pl.BlockSpec(memory_space=pltpu.MemorySpace.VMEM)


# ------------------------------ fused kernel ---------------------------------
def fused_forward_kernel(
    il_graph_ref, ds_graph_ref, sd_graph_ref,
    sympset_agg_ref, drugset_agg_ref,
    drugs_feat_ref, symps_feat_ref, sympsets_feat_ref, drugsets_feat_ref,
    ddi_ref,
    sympset_id_ref, drugset_id_ref, drug_pos_ref, symp_pos_ref,
    drug_mask_ref, symp_mask_ref, gumbel_d_ref, gumbel_s_ref,
    out_ref,
    *, num_layers, c_temp, neg_num, num_drugs, num_symps,
    num_drugsets, num_sympsets, batch,
):
    f32 = jnp.float32
    dn_t = (((1,), (1,)), ((), ()))  # contract dim 1 with dim 1: A @ B.T

    def l2norm(x):  # F.normalize(p=2, dim=1) with eps 1e-12 on the norm
        ss = jnp.sum(x * x, axis=1, keepdims=True)
        return x * lax.rsqrt(jnp.maximum(ss, 1e-24))

    def propagate(graph, feats):
        # LightGCN-style: layer-0 feats + sum of L2-normalized propagated layers.
        acc = feats
        cur = feats
        for i in range(num_layers):
            cur = jnp.dot(graph, cur, preferred_element_type=f32) / float(i + 2)
            acc = acc + l2norm(cur)
        return acc

    def log_sigmoid(x):  # stable log(sigmoid(x)) = -softplus(-x)
        return -(jnp.maximum(-x, 0.0) + jnp.log(1.0 + jnp.exp(-jnp.abs(x))))

    def iota_f(shape, axis):
        return lax.broadcasted_iota(jnp.int32, shape, axis).astype(f32)

    drugs_feat = drugs_feat_ref[...]
    symps_feat = symps_feat_ref[...]
    sympsets_feat = sympsets_feat_ref[...]
    drugsets_feat = drugsets_feat_ref[...]

    # --------------------------- propagate() ---------------------------------
    il_all = propagate(il_graph_ref[...],
                       jnp.concatenate([drugs_feat, symps_feat], axis=0))
    IL_drugs, IL_symps = il_all[:num_drugs], il_all[num_drugs:]
    IL_sympsets = jnp.dot(sympset_agg_ref[...], IL_symps, preferred_element_type=f32)
    IL_drugsets = jnp.dot(drugset_agg_ref[...], IL_drugs, preferred_element_type=f32)

    sl_ds = propagate(ds_graph_ref[...],
                      jnp.concatenate([drugs_feat, sympsets_feat], axis=0))
    SL_drugs, SL_sympsets = sl_ds[:num_drugs], sl_ds[num_drugs:]

    sl_sd = propagate(sd_graph_ref[...],
                      jnp.concatenate([symps_feat, drugsets_feat], axis=0))
    SL_symps, SL_drugsets = sl_sd[:num_symps], sl_sd[num_symps:]

    # ------------------- neg_sample(): scores for each batch row -------------
    # one-hot gathers on the MXU (in-kernel, VMEM-resident tables)
    ss_onehot = (lax.broadcasted_iota(jnp.int32, (batch, num_sympsets), 1)
                 == sympset_id_ref[...]).astype(f32)
    ds_onehot = (lax.broadcasted_iota(jnp.int32, (batch, num_drugsets), 1)
                 == drugset_id_ref[...]).astype(f32)
    IL_ss = jnp.dot(ss_onehot, IL_sympsets, preferred_element_type=f32)
    SL_ss = jnp.dot(ss_onehot, SL_sympsets, preferred_element_type=f32)
    IL_ds = jnp.dot(ds_onehot, IL_drugsets, preferred_element_type=f32)
    SL_ds = jnp.dot(ds_onehot, SL_drugsets, preferred_element_type=f32)

    sympset_drugs_score = (
        lax.dot_general(IL_ss, IL_drugs, dn_t, preferred_element_type=f32)
        + lax.dot_general(SL_ss, SL_drugs, dn_t, preferred_element_type=f32))
    drugset_symps_score = (
        lax.dot_general(IL_ds, IL_symps, dn_t, preferred_element_type=f32)
        + lax.dot_general(SL_ds, SL_symps, dn_t, preferred_element_type=f32))

    # --------- negative sampling (Gumbel top-k) + prediction gather ----------
    # TODO(synk): torch.multinomial(replacement=False) has no Pallas equivalent;
    # Gumbel top-k on log-weights gives the same distribution.
    def sample_and_pred(score, mask, gumbel, pos_idx, n):
        colf = iota_f((batch, n), 1)
        pos_onehot = (colf == pos_idx.astype(f32)).astype(f32)
        # pred[b, k] == score[b, sampled_idx[b, k]] (identical to gathering the
        # embeddings and re-doing the row-wise dot products in the reference).
        pred_cols = [jnp.sum(score * pos_onehot, axis=1, keepdims=True)]
        w = jax.nn.sigmoid(score) * mask
        avail = jnp.log(jnp.maximum(w, 1e-30)) + gumbel
        for _ in range(neg_num):
            m = jnp.max(avail, axis=1, keepdims=True)
            idx = jnp.min(jnp.where(avail >= m, colf, jnp.float32(n)),
                          axis=1, keepdims=True)
            sel = (colf == idx).astype(f32)
            pred_cols.append(jnp.sum(score * sel, axis=1, keepdims=True))
            avail = jnp.where(sel > 0.5, jnp.float32(-1e30), avail)
        return pred_cols  # [0] positive, rest sampled negatives; each (batch,1)

    pred_d = sample_and_pred(sympset_drugs_score, drug_mask_ref[...],
                             gumbel_d_ref[...], drug_pos_ref[...], num_drugs)
    pred_s = sample_and_pred(drugset_symps_score, symp_mask_ref[...],
                             gumbel_s_ref[...], symp_pos_ref[...], num_symps)

    # ------------------------------ BPR loss ---------------------------------
    # TODO(synk): cal_bpr_loss is not defined in the provided source; the
    # standard -mean(log_sigmoid(pos - neg)) formulation is used (stable form).
    def bpr(pred_cols):
        pos = pred_cols[0]
        tot = 0.0
        for negv in pred_cols[1:]:
            tot = tot + jnp.sum(log_sigmoid(pos - negv))
        return -tot / float(batch * (len(pred_cols) - 1))

    alpha = 0.5
    bpr_loss = alpha * bpr(pred_d) + (1.0 - alpha) * bpr(pred_s)

    # ---------------------- contrastive (InfoNCE) losses ---------------------
    def c_loss(pos, aug):
        pos = l2norm(pos)
        aug = l2norm(aug)
        pos_score = jnp.sum(pos * aug, axis=1, keepdims=True) / c_temp
        ttl = lax.dot_general(pos, aug, dn_t, preferred_element_type=f32) / c_temp
        m = jnp.max(ttl, axis=1, keepdims=True)
        lse = m + jnp.log(jnp.sum(jnp.exp(ttl - m), axis=1, keepdims=True))
        return -jnp.mean(pos_score - lse)

    pos_d_onehot = (lax.broadcasted_iota(jnp.int32, (batch, num_drugs), 1)
                    == drug_pos_ref[...]).astype(f32)
    pos_s_onehot = (lax.broadcasted_iota(jnp.int32, (batch, num_symps), 1)
                    == symp_pos_ref[...]).astype(f32)
    IL_d_pos = jnp.dot(pos_d_onehot, IL_drugs, preferred_element_type=f32)
    SL_d_pos = jnp.dot(pos_d_onehot, SL_drugs, preferred_element_type=f32)
    IL_s_pos = jnp.dot(pos_s_onehot, IL_symps, preferred_element_type=f32)
    SL_s_pos = jnp.dot(pos_s_onehot, SL_symps, preferred_element_type=f32)

    c_total = (c_loss(IL_d_pos, SL_d_pos) + c_loss(IL_s_pos, SL_s_pos)
               + c_loss(IL_ds, SL_ds) + c_loss(IL_ss, SL_ss)) / 4.0

    # ------------------------------- DDI loss --------------------------------
    # TODO(synk): cal_ddi_loss is not defined in the provided source; the
    # standard mean(sigmoid(drug2drug_score) * ddi_A) formulation is used.
    agg_drug = 0.5 * IL_drugs + 0.5 * SL_drugs
    d2d = lax.dot_general(agg_drug, agg_drug, dn_t, preferred_element_type=f32)
    ddi_loss = jnp.mean(jax.nn.sigmoid(d2d) * ddi_ref[...])

    # ------------------ pack losses lane-dense into one row ------------------
    lane = lax.broadcasted_iota(jnp.int32, (1, 128), 1)
    packed = jnp.where(lane == 0, bpr_loss, 0.0)
    packed = jnp.where(lane == 1, c_total, packed)
    packed = jnp.where(lane == 2, ddi_loss, packed)
    out_ref[...] = packed.astype(f32)


# ----------------------------- model (glue in JAX) ---------------------------
def xavier_normal(key, shape):
    fan_out, fan_in = shape
    std = (2.0 / (fan_in + fan_out)) ** 0.5
    return std * jax.random.normal(key, shape, dtype=jnp.float32)


def bipartite_laplacian(key, n_a, n_b):
    """Dense symmetric-normalized bipartite adjacency (graph_to_sp stand-in)."""
    inc = (jax.random.uniform(key, (n_a, n_b)) > 0.5).astype(jnp.float32)
    n = n_a + n_b
    A = jnp.zeros((n, n), jnp.float32)
    A = A.at[:n_a, n_a:].set(inc)
    A = A.at[n_a:, :n_a].set(inc.T)
    deg = jnp.sum(A, axis=1)
    d_inv_sqrt = jnp.where(deg > 0, 1.0 / jnp.sqrt(jnp.maximum(deg, 1e-12)), 0.0)
    return d_inv_sqrt[:, None] * A * d_inv_sqrt[None, :]


def set2item_agg_graph(key, n_sets, n_items):
    """Row-normalized set->item aggregation (get_set2item_agg_graph stand-in)."""
    inc = (jax.random.uniform(key, (n_sets, n_items)) > 0.5).astype(jnp.float32)
    inc = inc.at[:, 0].set(1.0)  # guarantee non-empty sets
    return inc / jnp.maximum(jnp.sum(inc, axis=1, keepdims=True), 1.0)


class RepresentModelPallas:
    def __init__(self, key):
        keys = jax.random.split(key, 10)
        # All parameters / graphs stored in float32 once at init (no per-call
        # astype, per perf review).
        self.drugs_feature = xavier_normal(keys[0], (NUM_DRUGS, EMB))
        self.drugsets_feature = xavier_normal(keys[1], (NUM_DRUGSETS, EMB))
        self.symps_feature = xavier_normal(keys[2], (NUM_SYMPS, EMB))
        self.sympsets_feature = xavier_normal(keys[3], (NUM_SYMPSETS, EMB))

        self.item_level_graph = bipartite_laplacian(keys[4], NUM_DRUGS, NUM_SYMPS)
        self.set_level_drug_sympset_graph = bipartite_laplacian(
            keys[5], NUM_DRUGS, NUM_SYMPSETS)
        self.set_level_symp_drugset_graph = bipartite_laplacian(
            keys[6], NUM_SYMPS, NUM_DRUGSETS)
        self.sympset_agg_graph = set2item_agg_graph(keys[7], NUM_SYMPSETS, NUM_SYMPS)
        self.drugset_agg_graph = set2item_agg_graph(keys[8], NUM_DRUGSETS, NUM_DRUGS)

        # Synthetic DDI matrix (original loads ddi_A_final.pkl from disk).
        r = (jax.random.uniform(keys[9], (NUM_DRUGS, NUM_DRUGS)) > 0.9)
        ddi = jnp.maximum(r, r.T).astype(jnp.float32)
        self.ddi_A = ddi * (1.0 - jnp.eye(NUM_DRUGS, dtype=jnp.float32))

        # Build the single fused pallas_call once.
        kernel = functools.partial(
            fused_forward_kernel,
            num_layers=NUM_LAYERS, c_temp=C_TEMP, neg_num=NEG_NUM,
            num_drugs=NUM_DRUGS, num_symps=NUM_SYMPS,
            num_drugsets=NUM_DRUGSETS, num_sympsets=NUM_SYMPSETS, batch=BATCH)
        self._fused_call = pl.pallas_call(
            kernel,
            out_shape=jax.ShapeDtypeStruct((1, 128), jnp.float32),
            in_specs=[VMEM_SPEC] * 18,
            out_specs=VMEM_SPEC,
        )

    # ----- forward: one fused Pallas kernel -----
    def forward(self, batch, key):
        sympset_id, drugs, drugset_id, symps = batch
        drug_pos = drugs[:, 0:1].astype(jnp.int32)
        drug_mask = drugs[:, 1:].astype(jnp.float32)
        symp_pos = symps[:, 0:1].astype(jnp.int32)
        symp_mask = symps[:, 1:].astype(jnp.float32)

        k1, k2 = jax.random.split(key)
        gumbel_d = jax.random.gumbel(k1, (BATCH, NUM_DRUGS), dtype=jnp.float32)
        gumbel_s = jax.random.gumbel(k2, (BATCH, NUM_SYMPS), dtype=jnp.float32)

        out = self._fused_call(
            self.item_level_graph, self.set_level_drug_sympset_graph,
            self.set_level_symp_drugset_graph, self.sympset_agg_graph,
            self.drugset_agg_graph, self.drugs_feature, self.symps_feature,
            self.sympsets_feature, self.drugsets_feature, self.ddi_A,
            sympset_id.astype(jnp.int32), drugset_id.astype(jnp.int32),
            drug_pos, symp_pos, drug_mask, symp_mask, gumbel_d, gumbel_s)

        bpr_loss, c_loss, ddi_loss = out[0, 0], out[0, 1], out[0, 2]
        return bpr_loss, c_loss, ddi_loss, [bpr_loss, c_loss, ddi_loss]


# --------------------------------- main ---------------------------------------
if __name__ == "__main__":
    root = jax.random.PRNGKey(0)
    k_model, k_batch, k_sample = jax.random.split(root, 3)
    model = RepresentModelPallas(k_model)

    kb = jax.random.split(k_batch, 4)
    sympset_id = jax.random.randint(kb[0], (BATCH, 1), 0, NUM_SYMPSETS, jnp.int32)
    drugset_id = jax.random.randint(kb[1], (BATCH, 1), 0, NUM_DRUGSETS, jnp.int32)
    drug_pos = jax.random.randint(kb[2], (BATCH, 1), 0, NUM_DRUGS, jnp.int32)
    symp_pos = jax.random.randint(kb[3], (BATCH, 1), 0, NUM_SYMPS, jnp.int32)
    drug_mask = (jax.random.uniform(kb[2], (BATCH, NUM_DRUGS)) > 0.3).astype(jnp.int32)
    drug_mask = drug_mask.at[:, 0].set(1)
    symp_mask = (jax.random.uniform(kb[3], (BATCH, NUM_SYMPS)) > 0.3).astype(jnp.int32)
    symp_mask = symp_mask.at[:, 0].set(1)
    drugs = jnp.concatenate([drug_pos, drug_mask], axis=1)   # [B, 1 + num_drugs]
    symps = jnp.concatenate([symp_pos, symp_mask], axis=1)   # [B, 1 + num_symps]

    batch = (sympset_id, drugs, drugset_id, symps)
    bpr_loss, c_loss, ddi_loss, loss_list = model.forward(batch, k_sample)

    jax.block_until_ready((bpr_loss, c_loss, ddi_loss, loss_list))
    print("KERNEL_OK")
</pallas_src>

<mosaic_0001>
module attributes {stable_mosaic.version = 11 : i64} {
  func.func @fused_forward_kernel(%arg0: memref<32x32xf32, #tpu.memory_space<vmem>>, %arg1: memref<24x24xf32, #tpu.memory_space<vmem>>, %arg2: memref<24x24xf32, #tpu.memory_space<vmem>>, %arg3: memref<8x16xf32, #tpu.memory_space<vmem>>, %arg4: memref<8x16xf32, #tpu.memory_space<vmem>>, %arg5: memref<16x32xf32, #tpu.memory_space<vmem>>, %arg6: memref<16x32xf32, #tpu.memory_space<vmem>>, %arg7: memref<8x32xf32, #tpu.memory_space<vmem>>, %arg8: memref<8x32xf32, #tpu.memory_space<vmem>>, %arg9: memref<16x16xf32, #tpu.memory_space<vmem>>, %arg10: memref<4x1xi32, #tpu.memory_space<vmem>>, %arg11: memref<4x1xi32, #tpu.memory_space<vmem>>, %arg12: memref<4x1xi32, #tpu.memory_space<vmem>>, %arg13: memref<4x1xi32, #tpu.memory_space<vmem>>, %arg14: memref<4x16xf32, #tpu.memory_space<vmem>>, %arg15: memref<4x16xf32, #tpu.memory_space<vmem>>, %arg16: memref<4x16xf32, #tpu.memory_space<vmem>>, %arg17: memref<4x16xf32, #tpu.memory_space<vmem>>, %arg18: memref<1x128xf32, #tpu.memory_space<vmem>>) attributes {dimension_semantics = [], scalar_prefetch = 0 : i64, scratch_operands = 0 : i64, tpu.core_type = #tpu.core_type<tc>} {
    %c0 = arith.constant 0 : index
    %c0_0 = arith.constant 0 : index
    %0 = vector.load %arg5[%c0, %c0_0] : memref<16x32xf32, #tpu.memory_space<vmem>>, vector<16x32xf32>
    %c0_1 = arith.constant 0 : index
    %c0_2 = arith.constant 0 : index
    %1 = vector.load %arg6[%c0_1, %c0_2] : memref<16x32xf32, #tpu.memory_space<vmem>>, vector<16x32xf32>
    %c0_3 = arith.constant 0 : index
    %c0_4 = arith.constant 0 : index
    %2 = vector.load %arg7[%c0_3, %c0_4] : memref<8x32xf32, #tpu.memory_space<vmem>>, vector<8x32xf32>
    %c0_5 = arith.constant 0 : index
    %c0_6 = arith.constant 0 : index
    %3 = vector.load %arg8[%c0_5, %c0_6] : memref<8x32xf32, #tpu.memory_space<vmem>>, vector<8x32xf32>
    %c0_7 = arith.constant 0 : index
    %c0_8 = arith.constant 0 : index
    %4 = vector.load %arg0[%c0_7, %c0_8] : memref<32x32xf32, #tpu.memory_space<vmem>>, vector<32x32xf32>
    %5 = tpu.concatenate %0, %1 in 0 : vector<16x32xf32>, vector<16x32xf32> -> vector<32x32xf32>
    %cst = arith.constant dense<0.000000e+00> : vector<32x32xf32>
    %6 = tpu.matmul %4, %5, %cst {dimension_numbers = #tpu.dot_dimension_numbers<[1], [0], [0], [1], [0, 0, 1, 1], [], []>} : vector<32x32xf32>, vector<32x32xf32>, vector<32x32xf32> -> vector<32x32xf32>
    %cst_9 = arith.constant 2.000000e+00 : f32
    %7 = vector.broadcast %cst_9 : f32 to vector<32x32xf32>
    %8 = arith.divf %6, %7 : vector<32x32xf32>
    %9 = arith.mulf %8, %8 : vector<32x32xf32>
    %cst_10 = arith.constant dense<0.000000e+00> : vector<32xf32>
    %10 = vector.multi_reduction <add>, %9, %cst_10 [1] : vector<32x32xf32> to vector<32xf32>
    %11 = vector.shape_cast %10 : vector<32xf32> to vector<32x1xf32>
    %cst_11 = arith.constant 1.000000e-24 : f32
    %12 = vector.broadcast %cst_11 : f32 to vector<32x1xf32>
    %13 = arith.maximumf %11, %12 : vector<32x1xf32>
    %14 = math.rsqrt %13 : vector<32x1xf32>
    %15 = vector.broadcast %14 : vector<32x1xf32> to vector<32x32xf32>
    %16 = arith.mulf %8, %15 : vector<32x32xf32>
    %17 = arith.addf %5, %16 : vector<32x32xf32>
    %cst_12 = arith.constant dense<0.000000e+00> : vector<32x32xf32>
    %18 = tpu.matmul %4, %8, %cst_12 {dimension_numbers = #tpu.dot_dimension_numbers<[1], [0], [0], [1], [0, 0, 1, 1], [], []>} : vector<32x32xf32>, vector<32x32xf32>, vector<32x32xf32> -> vector<32x32xf32>
    %cst_13 = arith.constant 3.000000e+00 : f32
    %19 = vector.broadcast %cst_13 : f32 to vector<32x32xf32>
    %20 = arith.divf %18, %19 : vector<32x32xf32>
    %21 = arith.mulf %20, %20 : vector<32x32xf32>
    %cst_14 = arith.constant dense<0.000000e+00> : vector<32xf32>
    %22 = vector.multi_reduction <add>, %21, %cst_14 [1] : vector<32x32xf32> to vector<32xf32>
    %23 = vector.shape_cast %22 : vector<32xf32> to vector<32x1xf32>
    %cst_15 = arith.constant 1.000000e-24 : f32
    %24 = vector.broadcast %cst_15 : f32 to vector<32x1xf32>
    %25 = arith.maximumf %23, %24 : vector<32x1xf32>
    %26 = math.rsqrt %25 : vector<32x1xf32>
    %27 = vector.broadcast %26 : vector<32x1xf32> to vector<32x32xf32>
    %28 = arith.mulf %20, %27 : vector<32x32xf32>
    %29 = arith.addf %17, %28 : vector<32x32xf32>
    %30 = vector.extract_strided_slice %29 {offsets = [0, 0], sizes = [16, 32], strides = [1, 1]} : vector<32x32xf32> to vector<16x32xf32>
    %31 = vector.extract_strided_slice %29 {offsets = [16, 0], sizes = [16, 32], strides = [1, 1]} : vector<32x32xf32> to vector<16x32xf32>
    %c0_16 = arith.constant 0 : index
    %c0_17 = arith.constant 0 : index
    %32 = vector.load %arg3[%c0_16, %c0_17] : memref<8x16xf32, #tpu.memory_space<vmem>>, vector<8x16xf32>
    %cst_18 = arith.constant dense<0.000000e+00> : vector<8x32xf32>
    %33 = tpu.matmul %32, %31, %cst_18 {dimension_numbers = #tpu.dot_dimension_numbers<[1], [0], [0], [1], [0, 0, 1, 1], [], []>} : vector<8x16xf32>, vector<16x32xf32>, vector<8x32xf32> -> vector<8x32xf32>
    %c0_19 = arith.constant 0 : index
    %c0_20 = arith.constant 0 : index
    %34 = vector.load %arg4[%c0_19, %c0_20] : memref<8x16xf32, #tpu.memory_space<vmem>>, vector<8x16xf32>
    %cst_21 = arith.constant dense<0.000000e+00> : vector<8x32xf32>
    %35 = tpu.matmul %34, %30, %cst_21 {dimension_numbers = #tpu.dot_dimension_numbers<[1], [0], [0], [1], [0, 0, 1, 1], [], []>} : vector<8x16xf32>, vector<16x32xf32>, vector<8x32xf32> -> vector<8x32xf32>
    %c0_22 = arith.constant 0 : index
    %c0_23 = arith.constant 0 : index
    %36 = vector.load %arg1[%c0_22, %c0_23] : memref<24x24xf32, #tpu.memory_space<vmem>>, vector<24x24xf32>
    %37 = tpu.concatenate %0, %2 in 0 : vector<16x32xf32>, vector<8x32xf32> -> vector<24x32xf32>
    %cst_24 = arith.constant dense<0.000000e+00> : vector<24x32xf32>
    %38 = tpu.matmul %36, %37, %cst_24 {dimension_numbers = #tpu.dot_dimension_numbers<[1], [0], [0], [1], [0, 0, 1, 1], [], []>} : vector<24x24xf32>, vector<24x32xf32>, vector<24x32xf32> -> vector<24x32xf32>
    %cst_25 = arith.constant 2.000000e+00 : f32
    %39 = vector.broadcast %cst_25 : f32 to vector<24x32xf32>
    %40 = arith.divf %38, %39 : vector<24x32xf32>
    %41 = arith.mulf %40, %40 : vector<24x32xf32>
    %cst_26 = arith.constant dense<0.000000e+00> : vector<24xf32>
    %42 = vector.multi_reduction <add>, %41, %cst_26 [1] : vector<24x32xf32> to vector<24xf32>
    %43 = vector.shape_cast %42 : vector<24xf32> to vector<24x1xf32>
    %cst_27 = arith.constant 1.000000e-24 : f32
    %44 = vector.broadcast %cst_27 : f32 to vector<24x1xf32>
    %45 = arith.maximumf %43, %44 : vector<24x1xf32>
    %46 = math.rsqrt %45 : vector<24x1xf32>
    %47 = vector.broadcast %46 : vector<24x1xf32> to vector<24x32xf32>
    %48 = arith.mulf %40, %47 : vector<24x32xf32>
    %49 = arith.addf %37, %48 : vector<24x32xf32>
    %cst_28 = arith.constant dense<0.000000e+00> : vector<24x32xf32>
    %50 = tpu.matmul %36, %40, %cst_28 {dimension_numbers = #tpu.dot_dimension_numbers<[1], [0], [0], [1], [0, 0, 1, 1], [], []>} : vector<24x24xf32>, vector<24x32xf32>, vector<24x32xf32> -> vector<24x32xf32>
    %cst_29 = arith.constant 3.000000e+00 : f32
    %51 = vector.broadcast %cst_29 : f32 to vector<24x32xf32>
    %52 = arith.divf %50, %51 : vector<24x32xf32>
    %53 = arith.mulf %52, %52 : vector<24x32xf32>
    %cst_30 = arith.constant dense<0.000000e+00> : vector<24xf32>
    %54 = vector.multi_reduction <add>, %53, %cst_30 [1] : vector<24x32xf32> to vector<24xf32>
    %55 = vector.shape_cast %54 : vector<24xf32> to vector<24x1xf32>
    %cst_31 = arith.constant 1.000000e-24 : f32
    %56 = vector.broadcast %cst_31 : f32 to vector<24x1xf32>
    %57 = arith.maximumf %55, %56 : vector<24x1xf32>
    %58 = math.rsqrt %57 : vector<24x1xf32>
    %59 = vector.broadcast %58 : vector<24x1xf32> to vector<24x32xf32>
    %60 = arith.mulf %52, %59 : vector<24x32xf32>
    %61 = arith.addf %49, %60 : vector<24x32xf32>
    %62 = vector.extract_strided_slice %61 {offsets = [0, 0], sizes = [16, 32], strides = [1, 1]} : vector<24x32xf32> to vector<16x32xf32>
    %63 = vector.extract_strided_slice %61 {offsets = [16, 0], sizes = [8, 32], strides = [1, 1]} : vector<24x32xf32> to vector<8x32xf32>
    %c0_32 = arith.constant 0 : index
    %c0_33 = arith.constant 0 : index
    %64 = vector.load %arg2[%c0_32, %c0_33] : memref<24x24xf32, #tpu.memory_space<vmem>>, vector<24x24xf32>
    %65 = tpu.concatenate %1, %3 in 0 : vector<16x32xf32>, vector<8x32xf32> -> vector<24x32xf32>
    %cst_34 = arith.constant dense<0.000000e+00> : vector<24x32xf32>
    %66 = tpu.matmul %64, %65, %cst_34 {dimension_numbers = #tpu.dot_dimension_numbers<[1], [0], [0], [1], [0, 0, 1, 1], [], []>} : vector<24x24xf32>, vector<24x32xf32>, vector<24x32xf32> -> vector<24x32xf32>
    %cst_35 = arith.constant 2.000000e+00 : f32
    %67 = vector.broadcast %cst_35 : f32 to vector<24x32xf32>
    %68 = arith.divf %66, %67 : vector<24x32xf32>
    %69 = arith.mulf %68, %68 : vector<24x32xf32>
    %cst_36 = arith.constant dense<0.000000e+00> : vector<24xf32>
    %70 = vector.multi_reduction <add>, %69, %cst_36 [1] : vector<24x32xf32> to vector<24xf32>
    %71 = vector.shape_cast %70 : vector<24xf32> to vector<24x1xf32>
    %cst_37 = arith.constant 1.000000e-24 : f32
    %72 = vector.broadcast %cst_37 : f32 to vector<24x1xf32>
    %73 = arith.maximumf %71, %72 : vector<24x1xf32>
    %74 = math.rsqrt %73 : vector<24x1xf32>
    %75 = vector.broadcast %74 : vector<24x1xf32> to vector<24x32xf32>
    %76 = arith.mulf %68, %75 : vector<24x32xf32>
    %77 = arith.addf %65, %76 : vector<24x32xf32>
    %cst_38 = arith.constant dense<0.000000e+00> : vector<24x32xf32>
    %78 = tpu.matmul %64, %68, %cst_38 {dimension_numbers = #tpu.dot_dimension_numbers<[1], [0], [0], [1], [0, 0, 1, 1], [], []>} : vector<24x24xf32>, vector<24x32xf32>, vector<24x32xf32> -> vector<24x32xf32>
    %cst_39 = arith.constant 3.000000e+00 : f32
    %79 = vector.broadcast %cst_39 : f32 to vector<24x32xf32>
    %80 = arith.divf %78, %79 : vector<24x32xf32>
    %81 = arith.mulf %80, %80 : vector<24x32xf32>
    %cst_40 = arith.constant dense<0.000000e+00> : vector<24xf32>
    %82 = vector.multi_reduction <add>, %81, %cst_40 [1] : vector<24x32xf32> to vector<24xf32>
    %83 = vector.shape_cast %82 : vector<24xf32> to vector<24x1xf32>
    %cst_41 = arith.constant 1.000000e-24 : f32
    %84 = vector.broadcast %cst_41 : f32 to vector<24x1xf32>
    %85 = arith.maximumf %83, %84 : vector<24x1xf32>
    %86 = math.rsqrt %85 : vector<24x1xf32>
    %87 = vector.broadcast %86 : vector<24x1xf32> to vector<24x32xf32>
    %88 = arith.mulf %80, %87 : vector<24x32xf32>
    %89 = arith.addf %77, %88 : vector<24x32xf32>
    %90 = vector.extract_strided_slice %89 {offsets = [0, 0], sizes = [16, 32], strides = [1, 1]} : vector<24x32xf32> to vector<16x32xf32>
    %91 = vector.extract_strided_slice %89 {offsets = [16, 0], sizes = [8, 32], strides = [1, 1]} : vector<24x32xf32> to vector<8x32xf32>
    %92 = tpu.iota {dimensions = array<i32: 1>} : vector<4x8xi32>
    %c0_42 = arith.constant 0 : index
    %c0_43 = arith.constant 0 : index
    %93 = vector.load %arg10[%c0_42, %c0_43] : memref<4x1xi32, #tpu.memory_space<vmem>>, vector<4x1xi32>
    %94 = vector.broadcast %93 : vector<4x1xi32> to vector<4x8xi32>
    %95 = arith.cmpi eq, %92, %94 : vector<4x8xi32>
    %96 = arith.extui %95 : vector<4x8xi1> to vector<4x8xi32>
    %97 = arith.sitofp %96 : vector<4x8xi32> to vector<4x8xf32>
    %98 = tpu.iota {dimensions = array<i32: 1>} : vector<4x8xi32>
    %c0_44 = arith.constant 0 : index
    %c0_45 = arith.constant 0 : index
    %99 = vector.load %arg11[%c0_44, %c0_45] : memref<4x1xi32, #tpu.memory_space<vmem>>, vector<4x1xi32>
    %100 = vector.broadcast %99 : vector<4x1xi32> to vector<4x8xi32>
    %101 = arith.cmpi eq, %98, %100 : vector<4x8xi32>
    %102 = arith.extui %101 : vector<4x8xi1> to vector<4x8xi32>
    %103 = arith.sitofp %102 : vector<4x8xi32> to vector<4x8xf32>
    %cst_46 = arith.constant dense<0.000000e+00> : vector<4x32xf32>
    %104 = tpu.matmul %97, %33, %cst_46 {dimension_numbers = #tpu.dot_dimension_numbers<[1], [0], [0], [1], [0, 0, 1, 1], [], []>} : vector<4x8xf32>, vector<8x32xf32>, vector<4x32xf32> -> vector<4x32xf32>
    %cst_47 = arith.constant dense<0.000000e+00> : vector<4x32xf32>
    %105 = tpu.matmul %97, %63, %cst_47 {dimension_numbers = #tpu.dot_dimension_numbers<[1], [0], [0], [1], [0, 0, 1, 1], [], []>} : vector<4x8xf32>, vector<8x32xf32>, vector<4x32xf32> -> vector<4x32xf32>
    %cst_48 = arith.constant dense<0.000000e+00> : vector<4x32xf32>
    %106 = tpu.matmul %103, %35, %cst_48 {dimension_numbers = #tpu.dot_dimension_numbers<[1], [0], [0], [1], [0, 0, 1, 1], [], []>} : vector<4x8xf32>, vector<8x32xf32>, vector<4x32xf32> -> vector<4x32xf32>
    %cst_49 = arith.constant dense<0.000000e+00> : vector<4x32xf32>
    %107 = tpu.matmul %103, %91, %cst_49 {dimension_numbers = #tpu.dot_dimension_numbers<[1], [0], [0], [1], [0, 0, 1, 1], [], []>} : vector<4x8xf32>, vector<8x32xf32>, vector<4x32xf32> -> vector<4x32xf32>
    %cst_50 = arith.constant dense<0.000000e+00> : vector<4x16xf32>
    %108 = tpu.matmul %104, %30, %cst_50 {dimension_numbers = #tpu.dot_dimension_numbers<[1], [1], [0], [0], [0, 0, 1, 0], [], []>} : vector<4x32xf32>, vector<16x32xf32>, vector<4x16xf32> -> vector<4x16xf32>
    %cst_51 = arith.constant dense<0.000000e+00> : vector<4x16xf32>
    %109 = tpu.matmul %105, %62, %cst_51 {dimension_numbers = #tpu.dot_dimension_numbers<[1], [1], [0], [0], [0, 0, 1, 0], [], []>} : vector<4x32xf32>, vector<16x32xf32>, vector<4x16xf32> -> vector<4x16xf32>
    %110 = arith.addf %108, %109 : vector<4x16xf32>
    %cst_52 = arith.constant dense<0.000000e+00> : vector<4x16xf32>
    %111 = tpu.matmul %106, %31, %cst_52 {dimension_numbers = #tpu.dot_dimension_numbers<[1], [1], [0], [0], [0, 0, 1, 0], [], []>} : vector<4x32xf32>, vector<16x32xf32>, vector<4x16xf32> -> vector<4x16xf32>
    %cst_53 = arith.constant dense<0.000000e+00> : vector<4x16xf32>
    %112 = tpu.matmul %107, %90, %cst_53 {dimension_numbers = #tpu.dot_dimension_numbers<[1], [1], [0], [0], [0, 0, 1, 0], [], []>} : vector<4x32xf32>, vector<16x32xf32>, vector<4x16xf32> -> vector<4x16xf32>
    %113 = arith.addf %111, %112 : vector<4x16xf32>
    %c0_54 = arith.constant 0 : index
    %c0_55 = arith.constant 0 : index
    %114 = vector.load %arg14[%c0_54, %c0_55] : memref<4x16xf32, #tpu.memory_space<vmem>>, vector<4x16xf32>
    %c0_56 = arith.constant 0 : index
    %c0_57 = arith.constant 0 : index
    %115 = vector.load %arg16[%c0_56, %c0_57] : memref<4x16xf32, #tpu.memory_space<vmem>>, vector<4x16xf32>
    %c0_58 = arith.constant 0 : index
    %c0_59 = arith.constant 0 : index
    %116 = vector.load %arg12[%c0_58, %c0_59] : memref<4x1xi32, #tpu.memory_space<vmem>>, vector<4x1xi32>
    %117 = tpu.iota {dimensions = array<i32: 1>} : vector<4x16xi32>
    %118 = arith.sitofp %117 : vector<4x16xi32> to vector<4x16xf32>
    %119 = arith.sitofp %116 : vector<4x1xi32> to vector<4x1xf32>
    %120 = vector.broadcast %119 : vector<4x1xf32> to vector<4x16xf32>
    %121 = arith.cmpf oeq, %118, %120 : vector<4x16xf32>
    %122 = arith.extui %121 : vector<4x16xi1> to vector<4x16xi32>
    %123 = arith.sitofp %122 : vector<4x16xi32> to vector<4x16xf32>
    %124 = arith.mulf %110, %123 : vector<4x16xf32>
    %cst_60 = arith.constant dense<0.000000e+00> : vector<4xf32>
    %125 = vector.multi_reduction <add>, %124, %cst_60 [1] : vector<4x16xf32> to vector<4xf32>
    %126 = vector.shape_cast %125 : vector<4xf32> to vector<4x1xf32>
    %127 = arith.negf %110 : vector<4x16xf32>
    %128 = math.exp %127 : vector<4x16xf32>
    %cst_61 = arith.constant 1.000000e+00 : f32
    %129 = vector.broadcast %cst_61 : f32 to vector<4x16xf32>
    %130 = arith.addf %129, %128 : vector<4x16xf32>
    %131 = arith.divf %129, %130 : vector<4x16xf32>
    %132 = arith.mulf %131, %114 : vector<4x16xf32>
    %cst_62 = arith.constant 1.000000e-30 : f32
    %133 = vector.broadcast %cst_62 : f32 to vector<4x16xf32>
    %134 = arith.maximumf %132, %133 : vector<4x16xf32>
    %135 = math.log %134 : vector<4x16xf32>
    %136 = arith.addf %135, %115 : vector<4x16xf32>
    %cst_63 = arith.constant dense<0xFF800000> : vector<4xf32>
    %137 = vector.multi_reduction <maximumf>, %136, %cst_63 [1] : vector<4x16xf32> to vector<4xf32>
    %138 = vector.shape_cast %137 : vector<4xf32> to vector<4x1xf32>
    %139 = vector.broadcast %138 : vector<4x1xf32> to vector<4x16xf32>
    %140 = arith.cmpf oge, %136, %139 : vector<4x16xf32>
    %cst_64 = arith.constant 1.600000e+01 : f32
    %141 = vector.broadcast %cst_64 : f32 to vector<4x16xf32>
    %142 = arith.select %140, %118, %141 : vector<4x16xi1>, vector<4x16xf32>
    %cst_65 = arith.constant dense<0x7F800000> : vector<4xf32>
    %143 = vector.multi_reduction <minimumf>, %142, %cst_65 [1] : vector<4x16xf32> to vector<4xf32>
    %144 = vector.shape_cast %143 : vector<4xf32> to vector<4x1xf32>
    %145 = vector.broadcast %144 : vector<4x1xf32> to vector<4x16xf32>
    %146 = arith.cmpf oeq, %118, %145 : vector<4x16xf32>
    %147 = arith.extui %146 : vector<4x16xi1> to vector<4x16xi32>
    %148 = arith.sitofp %147 : vector<4x16xi32> to vector<4x16xf32>
    %149 = arith.mulf %110, %148 : vector<4x16xf32>
    %cst_66 = arith.constant dense<0.000000e+00> : vector<4xf32>
    %150 = vector.multi_reduction <add>, %149, %cst_66 [1] : vector<4x16xf32> to vector<4xf32>
    %151 = vector.shape_cast %150 : vector<4xf32> to vector<4x1xf32>
    %cst_67 = arith.constant 5.000000e-01 : f32
    %152 = vector.broadcast %cst_67 : f32 to vector<4x16xf32>
    %153 = arith.cmpf ogt, %148, %152 : vector<4x16xf32>
    %cst_68 = arith.constant -1.000000e+30 : f32
    %154 = vector.broadcast %cst_68 : f32 to vector<4x16xf32>
    %155 = arith.select %153, %154, %136 : vector<4x16xi1>, vector<4x16xf32>
    %cst_69 = arith.constant dense<0xFF800000> : vector<4xf32>
    %156 = vector.multi_reduction <maximumf>, %155, %cst_69 [1] : vector<4x16xf32> to vector<4xf32>
    %157 = vector.shape_cast %156 : vector<4xf32> to vector<4x1xf32>
    %158 = vector.broadcast %157 : vector<4x1xf32> to vector<4x16xf32>
    %159 = arith.cmpf oge, %155, %158 : vector<4x16xf32>
    %cst_70 = arith.constant 1.600000e+01 : f32
    %160 = vector.broadcast %cst_70 : f32 to vector<4x16xf32>
    %161 = arith.select %159, %118, %160 : vector<4x16xi1>, vector<4x16xf32>
    %cst_71 = arith.constant dense<0x7F800000> : vector<4xf32>
    %162 = vector.multi_reduction <minimumf>, %161, %cst_71 [1] : vector<4x16xf32> to vector<4xf32>
    %163 = vector.shape_cast %162 : vector<4xf32> to vector<4x1xf32>
    %164 = vector.broadcast %163 : vector<4x1xf32> to vector<4x16xf32>
    %165 = arith.cmpf oeq, %118, %164 : vector<4x16xf32>
    %166 = arith.extui %165 : vector<4x16xi1> to vector<4x16xi32>
    %167 = arith.sitofp %166 : vector<4x16xi32> to vector<4x16xf32>
    %168 = arith.mulf %110, %167 : vector<4x16xf32>
    %cst_72 = arith.constant dense<0.000000e+00> : vector<4xf32>
    %169 = vector.multi_reduction <add>, %168, %cst_72 [1] : vector<4x16xf32> to vector<4xf32>
    %170 = vector.shape_cast %169 : vector<4xf32> to vector<4x1xf32>
    %c0_73 = arith.constant 0 : index
    %c0_74 = arith.constant 0 : index
    %171 = vector.load %arg15[%c0_73, %c0_74] : memref<4x16xf32, #tpu.memory_space<vmem>>, vector<4x16xf32>
    %c0_75 = arith.constant 0 : index
    %c0_76 = arith.constant 0 : index
    %172 = vector.load %arg17[%c0_75, %c0_76] : memref<4x16xf32, #tpu.memory_space<vmem>>, vector<4x16xf32>
    %c0_77 = arith.constant 0 : index
    %c0_78 = arith.constant 0 : index
    %173 = vector.load %arg13[%c0_77, %c0_78] : memref<4x1xi32, #tpu.memory_space<vmem>>, vector<4x1xi32>
    %174 = tpu.iota {dimensions = array<i32: 1>} : vector<4x16xi32>
    %175 = arith.sitofp %174 : vector<4x16xi32> to vector<4x16xf32>
    %176 = arith.sitofp %173 : vector<4x1xi32> to vector<4x1xf32>
    %177 = vector.broadcast %176 : vector<4x1xf32> to vector<4x16xf32>
    %178 = arith.cmpf oeq, %175, %177 : vector<4x16xf32>
    %179 = arith.extui %178 : vector<4x16xi1> to vector<4x16xi32>
    %180 = arith.sitofp %179 : vector<4x16xi32> to vector<4x16xf32>
    %181 = arith.mulf %113, %180 : vector<4x16xf32>
    %cst_79 = arith.constant dense<0.000000e+00> : vector<4xf32>
    %182 = vector.multi_reduction <add>, %181, %cst_79 [1] : vector<4x16xf32> to vector<4xf32>
    %183 = vector.shape_cast %182 : vector<4xf32> to vector<4x1xf32>
    %184 = arith.negf %113 : vector<4x16xf32>
    %185 = math.exp %184 : vector<4x16xf32>
    %cst_80 = arith.constant 1.000000e+00 : f32
    %186 = vector.broadcast %cst_80 : f32 to vector<4x16xf32>
    %187 = arith.addf %186, %185 : vector<4x16xf32>
    %188 = arith.divf %186, %187 : vector<4x16xf32>
    %189 = arith.mulf %188, %171 : vector<4x16xf32>
    %cst_81 = arith.constant 1.000000e-30 : f32
    %190 = vector.broadcast %cst_81 : f32 to vector<4x16xf32>
    %191 = arith.maximumf %189, %190 : vector<4x16xf32>
    %192 = math.log %191 : vector<4x16xf32>
    %193 = arith.addf %192, %172 : vector<4x16xf32>
    %cst_82 = arith.constant dense<0xFF800000> : vector<4xf32>
    %194 = vector.multi_reduction <maximumf>, %193, %cst_82 [1] : vector<4x16xf32> to vector<4xf32>
    %195 = vector.shape_cast %194 : vector<4xf32> to vector<4x1xf32>
    %196 = vector.broadcast %195 : vector<4x1xf32> to vector<4x16xf32>
    %197 = arith.cmpf oge, %193, %196 : vector<4x16xf32>
    %cst_83 = arith.constant 1.600000e+01 : f32
    %198 = vector.broadcast %cst_83 : f32 to vector<4x16xf32>
    %199 = arith.select %197, %175, %198 : vector<4x16xi1>, vector<4x16xf32>
    %cst_84 = arith.constant dense<0x7F800000> : vector<4xf32>
    %200 = vector.multi_reduction <minimumf>, %199, %cst_84 [1] : vector<4x16xf32> to vector<4xf32>
    %201 = vector.shape_cast %200 : vector<4xf32> to vector<4x1xf32>
    %202 = vector.broadcast %201 : vector<4x1xf32> to vector<4x16xf32>
    %203 = arith.cmpf oeq, %175, %202 : vector<4x16xf32>
    %204 = arith.extui %203 : vector<4x16xi1> to vector<4x16xi32>
    %205 = arith.sitofp %204 : vector<4x16xi32> to vector<4x16xf32>
    %206 = arith.mulf %113, %205 : vector<4x16xf32>
    %cst_85 = arith.constant dense<0.000000e+00> : vector<4xf32>
    %207 = vector.multi_reduction <add>, %206, %cst_85 [1] : vector<4x16xf32> to vector<4xf32>
    %208 = vector.shape_cast %207 : vector<4xf32> to vector<4x1xf32>
    %cst_86 = arith.constant 5.000000e-01 : f32
    %209 = vector.broadcast %cst_86 : f32 to vector<4x16xf32>
    %210 = arith.cmpf ogt, %205, %209 : vector<4x16xf32>
    %cst_87 = arith.constant -1.000000e+30 : f32
    %211 = vector.broadcast %cst_87 : f32 to vector<4x16xf32>
    %212 = arith.select %210, %211, %193 : vector<4x16xi1>, vector<4x16xf32>
    %cst_88 = arith.constant dense<0xFF800000> : vector<4xf32>
    %213 = vector.multi_reduction <maximumf>, %212, %cst_88 [1] : vector<4x16xf32> to vector<4xf32>
    %214 = vector.shape_cast %213 : vector<4xf32> to vector<4x1xf32>
    %215 = vector.broadcast %214 : vector<4x1xf32> to vector<4x16xf32>
    %216 = arith.cmpf oge, %212, %215 : vector<4x16xf32>
    %cst_89 = arith.constant 1.600000e+01 : f32
    %217 = vector.broadcast %cst_89 : f32 to vector<4x16xf32>
    %218 = arith.select %216, %175, %217 : vector<4x16xi1>, vector<4x16xf32>
    %cst_90 = arith.constant dense<0x7F800000> : vector<4xf32>
    %219 = vector.multi_reduction <minimumf>, %218, %cst_90 [1] : vector<4x16xf32> to vector<4xf32>
    %220 = vector.shape_cast %219 : vector<4xf32> to vector<4x1xf32>
    %221 = vector.broadcast %220 : vector<4x1xf32> to vector<4x16xf32>
    %222 = arith.cmpf oeq, %175, %221 : vector<4x16xf32>
    %223 = arith.extui %222 : vector<4x16xi1> to vector<4x16xi32>
    %224 = arith.sitofp %223 : vector<4x16xi32> to vector<4x16xf32>
    %225 = arith.mulf %113, %224 : vector<4x16xf32>
    %cst_91 = arith.constant dense<0.000000e+00> : vector<4xf32>
    %226 = vector.multi_reduction <add>, %225, %cst_91 [1] : vector<4x16xf32> to vector<4xf32>
    %227 = vector.shape_cast %226 : vector<4xf32> to vector<4x1xf32>
    %228 = arith.subf %126, %151 : vector<4x1xf32>
    %cst_92 = arith.constant 0.000000e+00 : f32
    %229 = vector.broadcast %cst_92 : f32 to vector<4x1xf32>
    %230 = arith.subf %229, %228 : vector<4x1xf32>
    %cst_93 = arith.constant 0.000000e+00 : f32
    %231 = vector.broadcast %cst_93 : f32 to vector<4x1xf32>
    %232 = arith.maximumf %230, %231 : vector<4x1xf32>
    %233 = math.absf %228 : vector<4x1xf32>
    %cst_94 = arith.constant 0.000000e+00 : f32
    %234 = vector.broadcast %cst_94 : f32 to vector<4x1xf32>
    %235 = arith.subf %234, %233 : vector<4x1xf32>
    %236 = math.exp %235 : vector<4x1xf32>
    %cst_95 = arith.constant 1.000000e+00 : f32
    %237 = vector.broadcast %cst_95 : f32 to vector<4x1xf32>
    %238 = arith.addf %237, %236 : vector<4x1xf32>
    %239 = math.log %238 : vector<4x1xf32>
    %240 = arith.addf %232, %239 : vector<4x1xf32>
    %cst_96 = arith.constant 0.000000e+00 : f32
    %241 = vector.broadcast %cst_96 : f32 to vector<4x1xf32>
    %242 = arith.subf %241, %240 : vector<4x1xf32>
    %243 = vector.shape_cast %242 : vector<4x1xf32> to vector<1x4x1xf32>
    %cst_97 = arith.constant dense<0.000000e+00> : vector<1xf32>
    %244 = vector.multi_reduction <add>, %243, %cst_97 [1, 2] : vector<1x4x1xf32> to vector<1xf32>
    %245 = vector.shape_cast %244 : vector<1xf32> to vector<1x1x1xf32>
    %246 = vector.extract %245[0, 0, 0] : f32 from vector<1x1x1xf32>
    %cst_98 = arith.constant 0.000000e+00 : f32
    %247 = arith.addf %cst_98, %246 : f32
    %248 = arith.subf %126, %170 : vector<4x1xf32>
    %cst_99 = arith.constant 0.000000e+00 : f32
    %249 = vector.broadcast %cst_99 : f32 to vector<4x1xf32>
    %250 = arith.subf %249, %248 : vector<4x1xf32>
    %cst_100 = arith.constant 0.000000e+00 : f32
    %251 = vector.broadcast %cst_100 : f32 to vector<4x1xf32>
    %252 = arith.maximumf %250, %251 : vector<4x1xf32>
    %253 = math.absf %248 : vector<4x1xf32>
    %cst_101 = arith.constant 0.000000e+00 : f32
    %254 = vector.broadcast %cst_101 : f32 to vector<4x1xf32>
    %255 = arith.subf %254, %253 : vector<4x1xf32>
    %256 = math.exp %255 : vector<4x1xf32>
    %cst_102 = arith.constant 1.000000e+00 : f32
    %257 = vector.broadcast %cst_102 : f32 to vector<4x1xf32>
    %258 = arith.addf %257, %256 : vector<4x1xf32>
    %259 = math.log %258 : vector<4x1xf32>
    %260 = arith.addf %252, %259 : vector<4x1xf32>
    %cst_103 = arith.constant 0.000000e+00 : f32
    %261 = vector.broadcast %cst_103 : f32 to vector<4x1xf32>
    %262 = arith.subf %261, %260 : vector<4x1xf32>
    %263 = vector.shape_cast %262 : vector<4x1xf32> to vector<1x4x1xf32>
    %cst_104 = arith.constant dense<0.000000e+00> : vector<1xf32>
    %264 = vector.multi_reduction <add>, %263, %cst_104 [1, 2] : vector<1x4x1xf32> to vector<1xf32>
    %265 = vector.shape_cast %264 : vector<1xf32> to vector<1x1x1xf32>
    %266 = vector.extract %265[0, 0, 0] : f32 from vector<1x1x1xf32>
    %267 = arith.addf %247, %266 : f32
    %cst_105 = arith.constant 0.000000e+00 : f32
    %268 = arith.subf %cst_105, %267 : f32
    %cst_106 = arith.constant 8.000000e+00 : f32
    %269 = arith.divf %268, %cst_106 : f32
    %cst_107 = arith.constant 5.000000e-01 : f32
    %270 = arith.mulf %cst_107, %269 : f32
    %271 = arith.subf %183, %208 : vector<4x1xf32>
    %cst_108 = arith.constant 0.000000e+00 : f32
    %272 = vector.broadcast %cst_108 : f32 to vector<4x1xf32>
    %273 = arith.subf %272, %271 : vector<4x1xf32>
    %cst_109 = arith.constant 0.000000e+00 : f32
    %274 = vector.broadcast %cst_109 : f32 to vector<4x1xf32>
    %275 = arith.maximumf %273, %274 : vector<4x1xf32>
    %276 = math.absf %271 : vector<4x1xf32>
    %cst_110 = arith.constant 0.000000e+00 : f32
    %277 = vector.broadcast %cst_110 : f32 to vector<4x1xf32>
    %278 = arith.subf %277, %276 : vector<4x1xf32>
    %279 = math.exp %278 : vector<4x1xf32>
    %cst_111 = arith.constant 1.000000e+00 : f32
    %280 = vector.broadcast %cst_111 : f32 to vector<4x1xf32>
    %281 = arith.addf %280, %279 : vector<4x1xf32>
    %282 = math.log %281 : vector<4x1xf32>
    %283 = arith.addf %275, %282 : vector<4x1xf32>
    %cst_112 = arith.constant 0.000000e+00 : f32
    %284 = vector.broadcast %cst_112 : f32 to vector<4x1xf32>
    %285 = arith.subf %284, %283 : vector<4x1xf32>
    %286 = vector.shape_cast %285 : vector<4x1xf32> to vector<1x4x1xf32>
    %cst_113 = arith.constant dense<0.000000e+00> : vector<1xf32>
    %287 = vector.multi_reduction <add>, %286, %cst_113 [1, 2] : vector<1x4x1xf32> to vector<1xf32>
    %288 = vector.shape_cast %287 : vector<1xf32> to vector<1x1x1xf32>
    %289 = vector.extract %288[0, 0, 0] : f32 from vector<1x1x1xf32>
    %cst_114 = arith.constant 0.000000e+00 : f32
    %290 = arith.addf %cst_114, %289 : f32
    %291 = arith.subf %183, %227 : vector<4x1xf32>
    %cst_115 = arith.constant 0.000000e+00 : f32
    %292 = vector.broadcast %cst_115 : f32 to vector<4x1xf32>
    %293 = arith.subf %292, %291 : vector<4x1xf32>
    %cst_116 = arith.constant 0.000000e+00 : f32
    %294 = vector.broadcast %cst_116 : f32 to vector<4x1xf32>
    %295 = arith.maximumf %293, %294 : vector<4x1xf32>
    %296 = math.absf %291 : vector<4x1xf32>
    %cst_117 = arith.constant 0.000000e+00 : f32
    %297 = vector.broadcast %cst_117 : f32 to vector<4x1xf32>
    %298 = arith.subf %297, %296 : vector<4x1xf32>
    %299 = math.exp %298 : vector<4x1xf32>
    %cst_118 = arith.constant 1.000000e+00 : f32
    %300 = vector.broadcast %cst_118 : f32 to vector<4x1xf32>
    %301 = arith.addf %300, %299 : vector<4x1xf32>
    %302 = math.log %301 : vector<4x1xf32>
    %303 = arith.addf %295, %302 : vector<4x1xf32>
    %cst_119 = arith.constant 0.000000e+00 : f32
    %304 = vector.broadcast %cst_119 : f32 to vector<4x1xf32>
    %305 = arith.subf %304, %303 : vector<4x1xf32>
    %306 = vector.shape_cast %305 : vector<4x1xf32> to vector<1x4x1xf32>
    %cst_120 = arith.constant dense<0.000000e+00> : vector<1xf32>
    %307 = vector.multi_reduction <add>, %306, %cst_120 [1, 2] : vector<1x4x1xf32> to vector<1xf32>
    %308 = vector.shape_cast %307 : vector<1xf32> to vector<1x1x1xf32>
    %309 = vector.extract %308[0, 0, 0] : f32 from vector<1x1x1xf32>
    %310 = arith.addf %290, %309 : f32
    %cst_121 = arith.constant 0.000000e+00 : f32
    %311 = arith.subf %cst_121, %310 : f32
    %cst_122 = arith.constant 8.000000e+00 : f32
    %312 = arith.divf %311, %cst_122 : f32
    %cst_123 = arith.constant 5.000000e-01 : f32
    %313 = arith.mulf %cst_123, %312 : f32
    %314 = arith.addf %270, %313 : f32
    %315 = tpu.iota {dimensions = array<i32: 1>} : vector<4x16xi32>
    %c0_124 = arith.constant 0 : index
    %c0_125 = arith.constant 0 : index
    %316 = vector.load %arg12[%c0_124, %c0_125] : memref<4x1xi32, #tpu.memory_space<vmem>>, vector<4x1xi32>
    %317 = vector.broadcast %316 : vector<4x1xi32> to vector<4x16xi32>
    %318 = arith.cmpi eq, %315, %317 : vector<4x16xi32>
    %319 = arith.extui %318 : vector<4x16xi1> to vector<4x16xi32>
    %320 = arith.sitofp %319 : vector<4x16xi32> to vector<4x16xf32>
    %321 = tpu.iota {dimensions = array<i32: 1>} : vector<4x16xi32>
    %c0_126 = arith.constant 0 : index
    %c0_127 = arith.constant 0 : index
    %322 = vector.load %arg13[%c0_126, %c0_127] : memref<4x1xi32, #tpu.memory_space<vmem>>, vector<4x1xi32>
    %323 = vector.broadcast %322 : vector<4x1xi32> to vector<4x16xi32>
    %324 = arith.cmpi eq, %321, %323 : vector<4x16xi32>
    %325 = arith.extui %324 : vector<4x16xi1> to vector<4x16xi32>
    %326 = arith.sitofp %325 : vector<4x16xi32> to vector<4x16xf32>
    %cst_128 = arith.constant dense<0.000000e+00> : vector<4x32xf32>
    %327 = tpu.matmul %320, %30, %cst_128 {dimension_numbers = #tpu.dot_dimension_numbers<[1], [0], [0], [1], [0, 0, 1, 1], [], []>} : vector<4x16xf32>, vector<16x32xf32>, vector<4x32xf32> -> vector<4x32xf32>
    %cst_129 = arith.constant dense<0.000000e+00> : vector<4x32xf32>
    %328 = tpu.matmul %320, %62, %cst_129 {dimension_numbers = #tpu.dot_dimension_numbers<[1], [0], [0], [1], [0, 0, 1, 1], [], []>} : vector<4x16xf32>, vector<16x32xf32>, vector<4x32xf32> -> vector<4x32xf32>
    %cst_130 = arith.constant dense<0.000000e+00> : vector<4x32xf32>
    %329 = tpu.matmul %326, %31, %cst_130 {dimension_numbers = #tpu.dot_dimension_numbers<[1], [0], [0], [1], [0, 0, 1, 1], [], []>} : vector<4x16xf32>, vector<16x32xf32>, vector<4x32xf32> -> vector<4x32xf32>
    %cst_131 = arith.constant dense<0.000000e+00> : vector<4x32xf32>
    %330 = tpu.matmul %326, %90, %cst_131 {dimension_numbers = #tpu.dot_dimension_numbers<[1], [0], [0], [1], [0, 0, 1, 1], [], []>} : vector<4x16xf32>, vector<16x32xf32>, vector<4x32xf32> -> vector<4x32xf32>
    %331 = arith.mulf %327, %327 : vector<4x32xf32>
    %cst_132 = arith.constant dense<0.000000e+00> : vector<4xf32>
    %332 = vector.multi_reduction <add>, %331, %cst_132 [1] : vector<4x32xf32> to vector<4xf32>
    %333 = vector.shape_cast %332 : vector<4xf32> to vector<4x1xf32>
    %cst_133 = arith.constant 1.000000e-24 : f32
    %334 = vector.broadcast %cst_133 : f32 to vector<4x1xf32>
    %335 = arith.maximumf %333, %334 : vector<4x1xf32>
    %336 = math.rsqrt %335 : vector<4x1xf32>
    %337 = vector.broadcast %336 : vector<4x1xf32> to vector<4x32xf32>
    %338 = arith.mulf %327, %337 : vector<4x32xf32>
    %339 = arith.mulf %328, %328 : vector<4x32xf32>
    %cst_134 = arith.constant dense<0.000000e+00> : vector<4xf32>
    %340 = vector.multi_reduction <add>, %339, %cst_134 [1] : vector<4x32xf32> to vector<4xf32>
    %341 = vector.shape_cast %340 : vector<4xf32> to vector<4x1xf32>
    %cst_135 = arith.constant 1.000000e-24 : f32
    %342 = vector.broadcast %cst_135 : f32 to vector<4x1xf32>
    %343 = arith.maximumf %341, %342 : vector<4x1xf32>
    %344 = math.rsqrt %343 : vector<4x1xf32>
    %345 = vector.broadcast %344 : vector<4x1xf32> to vector<4x32xf32>
    %346 = arith.mulf %328, %345 : vector<4x32xf32>
    %347 = arith.mulf %338, %346 : vector<4x32xf32>
    %cst_136 = arith.constant dense<0.000000e+00> : vector<4xf32>
    %348 = vector.multi_reduction <add>, %347, %cst_136 [1] : vector<4x32xf32> to vector<4xf32>
    %349 = vector.shape_cast %348 : vector<4xf32> to vector<4x1xf32>
    %cst_137 = arith.constant 2.000000e-01 : f32
    %350 = vector.broadcast %cst_137 : f32 to vector<4x1xf32>
    %351 = arith.divf %349, %350 : vector<4x1xf32>
    %cst_138 = arith.constant dense<0.000000e+00> : vector<4x4xf32>
    %352 = tpu.matmul %338, %346, %cst_138 {dimension_numbers = #tpu.dot_dimension_numbers<[1], [1], [0], [0], [0, 0, 1, 0], [], []>} : vector<4x32xf32>, vector<4x32xf32>, vector<4x4xf32> -> vector<4x4xf32>
    %cst_139 = arith.constant 2.000000e-01 : f32
    %353 = vector.broadcast %cst_139 : f32 to vector<4x4xf32>
    %354 = arith.divf %352, %353 : vector<4x4xf32>
    %cst_140 = arith.constant dense<0xFF800000> : vector<4xf32>
    %355 = vector.multi_reduction <maximumf>, %354, %cst_140 [1] : vector<4x4xf32> to vector<4xf32>
    %356 = vector.shape_cast %355 : vector<4xf32> to vector<4x1xf32>
    %357 = vector.broadcast %356 : vector<4x1xf32> to vector<4x4xf32>
    %358 = arith.subf %354, %357 : vector<4x4xf32>
    %359 = math.exp %358 : vector<4x4xf32>
    %cst_141 = arith.constant dense<0.000000e+00> : vector<4xf32>
    %360 = vector.multi_reduction <add>, %359, %cst_141 [1] : vector<4x4xf32> to vector<4xf32>
    %361 = vector.shape_cast %360 : vector<4xf32> to vector<4x1xf32>
    %362 = math.log %361 : vector<4x1xf32>
    %363 = arith.addf %356, %362 : vector<4x1xf32>
    %364 = arith.subf %351, %363 : vector<4x1xf32>
    %365 = vector.shape_cast %364 : vector<4x1xf32> to vector<1x4x1xf32>
    %cst_142 = arith.constant dense<0.000000e+00> : vector<1xf32>
    %366 = vector.multi_reduction <add>, %365, %cst_142 [1, 2] : vector<1x4x1xf32> to vector<1xf32>
    %367 = vector.shape_cast %366 : vector<1xf32> to vector<1x1x1xf32>
    %368 = vector.extract %367[0, 0, 0] : f32 from vector<1x1x1xf32>
    %cst_143 = arith.constant 4.000000e+00 : f32
    %369 = arith.divf %368, %cst_143 : f32
    %cst_144 = arith.constant 0.000000e+00 : f32
    %370 = arith.subf %cst_144, %369 : f32
    %371 = arith.mulf %329, %329 : vector<4x32xf32>
    %cst_145 = arith.constant dense<0.000000e+00> : vector<4xf32>
    %372 = vector.multi_reduction <add>, %371, %cst_145 [1] : vector<4x32xf32> to vector<4xf32>
    %373 = vector.shape_cast %372 : vector<4xf32> to vector<4x1xf32>
    %cst_146 = arith.constant 1.000000e-24 : f32
    %374 = vector.broadcast %cst_146 : f32 to vector<4x1xf32>
    %375 = arith.maximumf %373, %374 : vector<4x1xf32>
    %376 = math.rsqrt %375 : vector<4x1xf32>
    %377 = vector.broadcast %376 : vector<4x1xf32> to vector<4x32xf32>
    %378 = arith.mulf %329, %377 : vector<4x32xf32>
    %379 = arith.mulf %330, %330 : vector<4x32xf32>
    %cst_147 = arith.constant dense<0.000000e+00> : vector<4xf32>
    %380 = vector.multi_reduction <add>, %379, %cst_147 [1] : vector<4x32xf32> to vector<4xf32>
    %381 = vector.shape_cast %380 : vector<4xf32> to vector<4x1xf32>
    %cst_148 = arith.constant 1.000000e-24 : f32
    %382 = vector.broadcast %cst_148 : f32 to vector<4x1xf32>
    %383 = arith.maximumf %381, %382 : vector<4x1xf32>
    %384 = math.rsqrt %383 : vector<4x1xf32>
    %385 = vector.broadcast %384 : vector<4x1xf32> to vector<4x32xf32>
    %386 = arith.mulf %330, %385 : vector<4x32xf32>
    %387 = arith.mulf %378, %386 : vector<4x32xf32>
    %cst_149 = arith.constant dense<0.000000e+00> : vector<4xf32>
    %388 = vector.multi_reduction <add>, %387, %cst_149 [1] : vector<4x32xf32> to vector<4xf32>
    %389 = vector.shape_cast %388 : vector<4xf32> to vector<4x1xf32>
    %cst_150 = arith.constant 2.000000e-01 : f32
    %390 = vector.broadcast %cst_150 : f32 to vector<4x1xf32>
    %391 = arith.divf %389, %390 : vector<4x1xf32>
    %cst_151 = arith.constant dense<0.000000e+00> : vector<4x4xf32>
    %392 = tpu.matmul %378, %386, %cst_151 {dimension_numbers = #tpu.dot_dimension_numbers<[1], [1], [0], [0], [0, 0, 1, 0], [], []>} : vector<4x32xf32>, vector<4x32xf32>, vector<4x4xf32> -> vector<4x4xf32>
    %cst_152 = arith.constant 2.000000e-01 : f32
    %393 = vector.broadcast %cst_152 : f32 to vector<4x4xf32>
    %394 = arith.divf %392, %393 : vector<4x4xf32>
    %cst_153 = arith.constant dense<0xFF800000> : vector<4xf32>
    %395 = vector.multi_reduction <maximumf>, %394, %cst_153 [1] : vector<4x4xf32> to vector<4xf32>
    %396 = vector.shape_cast %395 : vector<4xf32> to vector<4x1xf32>
    %397 = vector.broadcast %396 : vector<4x1xf32> to vector<4x4xf32>
    %398 = arith.subf %394, %397 : vector<4x4xf32>
    %399 = math.exp %398 : vector<4x4xf32>
    %cst_154 = arith.constant dense<0.000000e+00> : vector<4xf32>
    %400 = vector.multi_reduction <add>, %399, %cst_154 [1] : vector<4x4xf32> to vector<4xf32>
    %401 = vector.shape_cast %400 : vector<4xf32> to vector<4x1xf32>
    %402 = math.log %401 : vector<4x1xf32>
    %403 = arith.addf %396, %402 : vector<4x1xf32>
    %404 = arith.subf %391, %403 : vector<4x1xf32>
    %405 = vector.shape_cast %404 : vector<4x1xf32> to vector<1x4x1xf32>
    %cst_155 = arith.constant dense<0.000000e+00> : vector<1xf32>
    %406 = vector.multi_reduction <add>, %405, %cst_155 [1, 2] : vector<1x4x1xf32> to vector<1xf32>
    %407 = vector.shape_cast %406 : vector<1xf32> to vector<1x1x1xf32>
    %408 = vector.extract %407[0, 0, 0] : f32 from vector<1x1x1xf32>
    %cst_156 = arith.constant 4.000000e+00 : f32
    %409 = arith.divf %408, %cst_156 : f32
    %cst_157 = arith.constant 0.000000e+00 : f32
    %410 = arith.subf %cst_157, %409 : f32
    %411 = arith.addf %370, %410 : f32
    %412 = arith.mulf %106, %106 : vector<4x32xf32>
    %cst_158 = arith.constant dense<0.000000e+00> : vector<4xf32>
    %413 = vector.multi_reduction <add>, %412, %cst_158 [1] : vector<4x32xf32> to vector<4xf32>
    %414 = vector.shape_cast %413 : vector<4xf32> to vector<4x1xf32>
    %cst_159 = arith.constant 1.000000e-24 : f32
    %415 = vector.broadcast %cst_159 : f32 to vector<4x1xf32>
    %416 = arith.maximumf %414, %415 : vector<4x1xf32>
    %417 = math.rsqrt %416 : vector<4x1xf32>
    %418 = vector.broadcast %417 : vector<4x1xf32> to vector<4x32xf32>
    %419 = arith.mulf %106, %418 : vector<4x32xf32>
    %420 = arith.mulf %107, %107 : vector<4x32xf32>
    %cst_160 = arith.constant dense<0.000000e+00> : vector<4xf32>
    %421 = vector.multi_reduction <add>, %420, %cst_160 [1] : vector<4x32xf32> to vector<4xf32>
    %422 = vector.shape_cast %421 : vector<4xf32> to vector<4x1xf32>
    %cst_161 = arith.constant 1.000000e-24 : f32
    %423 = vector.broadcast %cst_161 : f32 to vector<4x1xf32>
    %424 = arith.maximumf %422, %423 : vector<4x1xf32>
    %425 = math.rsqrt %424 : vector<4x1xf32>
    %426 = vector.broadcast %425 : vector<4x1xf32> to vector<4x32xf32>
    %427 = arith.mulf %107, %426 : vector<4x32xf32>
    %428 = arith.mulf %419, %427 : vector<4x32xf32>
    %cst_162 = arith.constant dense<0.000000e+00> : vector<4xf32>
    %429 = vector.multi_reduction <add>, %428, %cst_162 [1] : vector<4x32xf32> to vector<4xf32>
    %430 = vector.shape_cast %429 : vector<4xf32> to vector<4x1xf32>
    %cst_163 = arith.constant 2.000000e-01 : f32
    %431 = vector.broadcast %cst_163 : f32 to vector<4x1xf32>
    %432 = arith.divf %430, %431 : vector<4x1xf32>
    %cst_164 = arith.constant dense<0.000000e+00> : vector<4x4xf32>
    %433 = tpu.matmul %419, %427, %cst_164 {dimension_numbers = #tpu.dot_dimension_numbers<[1], [1], [0], [0], [0, 0, 1, 0], [], []>} : vector<4x32xf32>, vector<4x32xf32>, vector<4x4xf32> -> vector<4x4xf32>
    %cst_165 = arith.constant 2.000000e-01 : f32
    %434 = vector.broadcast %cst_165 : f32 to vector<4x4xf32>
    %435 = arith.divf %433, %434 : vector<4x4xf32>
    %cst_166 = arith.constant dense<0xFF800000> : vector<4xf32>
    %436 = vector.multi_reduction <maximumf>, %435, %cst_166 [1] : vector<4x4xf32> to vector<4xf32>
    %437 = vector.shape_cast %436 : vector<4xf32> to vector<4x1xf32>
    %438 = vector.broadcast %437 : vector<4x1xf32> to vector<4x4xf32>
    %439 = arith.subf %435, %438 : vector<4x4xf32>
    %440 = math.exp %439 : vector<4x4xf32>
    %cst_167 = arith.constant dense<0.000000e+00> : vector<4xf32>
    %441 = vector.multi_reduction <add>, %440, %cst_167 [1] : vector<4x4xf32> to vector<4xf32>
    %442 = vector.shape_cast %441 : vector<4xf32> to vector<4x1xf32>
    %443 = math.log %442 : vector<4x1xf32>
    %444 = arith.addf %437, %443 : vector<4x1xf32>
    %445 = arith.subf %432, %444 : vector<4x1xf32>
    %446 = vector.shape_cast %445 : vector<4x1xf32> to vector<1x4x1xf32>
    %cst_168 = arith.constant dense<0.000000e+00> : vector<1xf32>
    %447 = vector.multi_reduction <add>, %446, %cst_168 [1, 2] : vector<1x4x1xf32> to vector<1xf32>
    %448 = vector.shape_cast %447 : vector<1xf32> to vector<1x1x1xf32>
    %449 = vector.extract %448[0, 0, 0] : f32 from vector<1x1x1xf32>
    %cst_169 = arith.constant 4.000000e+00 : f32
    %450 = arith.divf %449, %cst_169 : f32
    %cst_170 = arith.constant 0.000000e+00 : f32
    %451 = arith.subf %cst_170, %450 : f32
    %452 = arith.addf %411, %451 : f32
    %453 = arith.mulf %104, %104 : vector<4x32xf32>
    %cst_171 = arith.constant dense<0.000000e+00> : vector<4xf32>
    %454 = vector.multi_reduction <add>, %453, %cst_171 [1] : vector<4x32xf32> to vector<4xf32>
    %455 = vector.shape_cast %454 : vector<4xf32> to vector<4x1xf32>
    %cst_172 = arith.constant 1.000000e-24 : f32
    %456 = vector.broadcast %cst_172 : f32 to vector<4x1xf32>
    %457 = arith.maximumf %455, %456 : vector<4x1xf32>
    %458 = math.rsqrt %457 : vector<4x1xf32>
    %459 = vector.broadcast %458 : vector<4x1xf32> to vector<4x32xf32>
    %460 = arith.mulf %104, %459 : vector<4x32xf32>
    %461 = arith.mulf %105, %105 : vector<4x32xf32>
    %cst_173 = arith.constant dense<0.000000e+00> : vector<4xf32>
    %462 = vector.multi_reduction <add>, %461, %cst_173 [1] : vector<4x32xf32> to vector<4xf32>
    %463 = vector.shape_cast %462 : vector<4xf32> to vector<4x1xf32>
    %cst_174 = arith.constant 1.000000e-24 : f32
    %464 = vector.broadcast %cst_174 : f32 to vector<4x1xf32>
    %465 = arith.maximumf %463, %464 : vector<4x1xf32>
    %466 = math.rsqrt %465 : vector<4x1xf32>
    %467 = vector.broadcast %466 : vector<4x1xf32> to vector<4x32xf32>
    %468 = arith.mulf %105, %467 : vector<4x32xf32>
    %469 = arith.mulf %460, %468 : vector<4x32xf32>
    %cst_175 = arith.constant dense<0.000000e+00> : vector<4xf32>
    %470 = vector.multi_reduction <add>, %469, %cst_175 [1] : vector<4x32xf32> to vector<4xf32>
    %471 = vector.shape_cast %470 : vector<4xf32> to vector<4x1xf32>
    %cst_176 = arith.constant 2.000000e-01 : f32
    %472 = vector.broadcast %cst_176 : f32 to vector<4x1xf32>
    %473 = arith.divf %471, %472 : vector<4x1xf32>
    %cst_177 = arith.constant dense<0.000000e+00> : vector<4x4xf32>
    %474 = tpu.matmul %460, %468, %cst_177 {dimension_numbers = #tpu.dot_dimension_numbers<[1], [1], [0], [0], [0, 0, 1, 0], [], []>} : vector<4x32xf32>, vector<4x32xf32>, vector<4x4xf32> -> vector<4x4xf32>
    %cst_178 = arith.constant 2.000000e-01 : f32
    %475 = vector.broadcast %cst_178 : f32 to vector<4x4xf32>
    %476 = arith.divf %474, %475 : vector<4x4xf32>
    %cst_179 = arith.constant dense<0xFF800000> : vector<4xf32>
    %477 = vector.multi_reduction <maximumf>, %476, %cst_179 [1] : vector<4x4xf32> to vector<4xf32>
    %478 = vector.shape_cast %477 : vector<4xf32> to vector<4x1xf32>
    %479 = vector.broadcast %478 : vector<4x1xf32> to vector<4x4xf32>
    %480 = arith.subf %476, %479 : vector<4x4xf32>
    %481 = math.exp %480 : vector<4x4xf32>
    %cst_180 = arith.constant dense<0.000000e+00> : vector<4xf32>
    %482 = vector.multi_reduction <add>, %481, %cst_180 [1] : vector<4x4xf32> to vector<4xf32>
    %483 = vector.shape_cast %482 : vector<4xf32> to vector<4x1xf32>
    %484 = math.log %483 : vector<4x1xf32>
    %485 = arith.addf %478, %484 : vector<4x1xf32>
    %486 = arith.subf %473, %485 : vector<4x1xf32>
    %487 = vector.shape_cast %486 : vector<4x1xf32> to vector<1x4x1xf32>
    %cst_181 = arith.constant dense<0.000000e+00> : vector<1xf32>
    %488 = vector.multi_reduction <add>, %487, %cst_181 [1, 2] : vector<1x4x1xf32> to vector<1xf32>
    %489 = vector.shape_cast %488 : vector<1xf32> to vector<1x1x1xf32>
    %490 = vector.extract %489[0, 0, 0] : f32 from vector<1x1x1xf32>
    %cst_182 = arith.constant 4.000000e+00 : f32
    %491 = arith.divf %490, %cst_182 : f32
    %cst_183 = arith.constant 0.000000e+00 : f32
    %492 = arith.subf %cst_183, %491 : f32
    %493 = arith.addf %452, %492 : f32
    %cst_184 = arith.constant 4.000000e+00 : f32
    %494 = arith.divf %493, %cst_184 : f32
    %cst_185 = arith.constant 5.000000e-01 : f32
    %495 = vector.broadcast %cst_185 : f32 to vector<16x32xf32>
    %496 = arith.mulf %495, %30 : vector<16x32xf32>
    %cst_186 = arith.constant 5.000000e-01 : f32
    %497 = vector.broadcast %cst_186 : f32 to vector<16x32xf32>
    %498 = arith.mulf %497, %62 : vector<16x32xf32>
    %499 = arith.addf %496, %498 : vector<16x32xf32>
    %cst_187 = arith.constant dense<0.000000e+00> : vector<16x16xf32>
    %500 = tpu.matmul %499, %499, %cst_187 {dimension_numbers = #tpu.dot_dimension_numbers<[1], [1], [0], [0], [0, 0, 1, 0], [], []>} : vector<16x32xf32>, vector<16x32xf32>, vector<16x16xf32> -> vector<16x16xf32>
    %501 = arith.negf %500 : vector<16x16xf32>
    %502 = math.exp %501 : vector<16x16xf32>
    %cst_188 = arith.constant 1.000000e+00 : f32
    %503 = vector.broadcast %cst_188 : f32 to vector<16x16xf32>
    %504 = arith.addf %503, %502 : vector<16x16xf32>
    %505 = arith.divf %503, %504 : vector<16x16xf32>
    %c0_189 = arith.constant 0 : index
    %c0_190 = arith.constant 0 : index
    %506 = vector.load %arg9[%c0_189, %c0_190] : memref<16x16xf32, #tpu.memory_space<vmem>>, vector<16x16xf32>
    %507 = arith.mulf %505, %506 : vector<16x16xf32>
    %508 = vector.shape_cast %507 : vector<16x16xf32> to vector<1x16x16xf32>
    %cst_191 = arith.constant dense<0.000000e+00> : vector<1xf32>
    %509 = vector.multi_reduction <add>, %508, %cst_191 [1, 2] : vector<1x16x16xf32> to vector<1xf32>
    %510 = vector.shape_cast %509 : vector<1xf32> to vector<1x1x1xf32>
    %511 = vector.extract %510[0, 0, 0] : f32 from vector<1x1x1xf32>
    %cst_192 = arith.constant 2.560000e+02 : f32
    %512 = arith.divf %511, %cst_192 : f32
    %513 = tpu.iota {dimensions = array<i32: 1>} : vector<1x128xi32>
    %c0_i32 = arith.constant 0 : i32
    %514 = vector.broadcast %c0_i32 : i32 to vector<1x128xi32>
    %515 = arith.cmpi eq, %513, %514 : vector<1x128xi32>
    %cst_193 = arith.constant 0.000000e+00 : f32
    %516 = vector.broadcast %314 : f32 to vector<1x128xf32>
    %517 = vector.broadcast %cst_193 : f32 to vector<1x128xf32>
    %518 = arith.select %515, %516, %517 : vector<1x128xi1>, vector<1x128xf32>
    %c1_i32 = arith.constant 1 : i32
    %519 = vector.broadcast %c1_i32 : i32 to vector<1x128xi32>
    %520 = arith.cmpi eq, %513, %519 : vector<1x128xi32>
    %521 = vector.broadcast %494 : f32 to vector<1x128xf32>
    %522 = arith.select %520, %521, %518 : vector<1x128xi1>, vector<1x128xf32>
    %c2_i32 = arith.constant 2 : i32
    %523 = vector.broadcast %c2_i32 : i32 to vector<1x128xi32>
    %524 = arith.cmpi eq, %513, %523 : vector<1x128xi32>
    %525 = vector.broadcast %512 : f32 to vector<1x128xf32>
    %526 = arith.select %524, %525, %522 : vector<1x128xi1>, vector<1x128xf32>
    %c0_194 = arith.constant 0 : index
    %c0_195 = arith.constant 0 : index
    %527 = vector.load %arg18[%c0_194, %c0_195] : memref<1x128xf32, #tpu.memory_space<vmem>>, vector<1x128xf32>
    tpu.vector_store %arg18[%c0_194, %c0_195], %526 {strides = array<i32>} : memref<1x128xf32, #tpu.memory_space<vmem>>, vector<1x128xf32>,
    return
  }
}

</mosaic_0001>

<llo_original>
// kernel: tpu_custom_call.1
$region0: #{tpu_custom_call.1}
  #allocation0 [shape = 'u32[]', space=smem, size = 0x4, offset = 0x4, fixed_abs, tag = 'smem constant byte address 0x4 - core index']
  #allocation1 [shape = 'u32[144,128]{1,0:T(1,128)}', space=vmem, size = 0x12000, scoped, tag = 'internal scratch']
  %s0 = inlined_call_operand.hbm [shape: f32[32,32], index: 0, kind: input, shape index: {}]
  %s1 = inlined_call_operand.hbm [shape: f32[24,24], index: 1, kind: input, shape index: {}]
  %s2 = inlined_call_operand.hbm [shape: f32[24,24], index: 2, kind: input, shape index: {}]
  %s3 = inlined_call_operand.hbm [shape: f32[8,16], index: 3, kind: input, shape index: {}]
  %s4 = inlined_call_operand.hbm [shape: f32[8,16], index: 4, kind: input, shape index: {}]
  %s5 = inlined_call_operand.vmem [shape: f32[16,32], index: 5, kind: input, shape index: {}]
  %s6 = inlined_call_operand.hbm [shape: f32[16,32], index: 6, kind: input, shape index: {}]
  %s7 = inlined_call_operand.hbm [shape: f32[8,32], index: 7, kind: input, shape index: {}]
  %s8 = inlined_call_operand.hbm [shape: f32[8,32], index: 8, kind: input, shape index: {}]
  %s9 = inlined_call_operand.vmem [shape: f32[16,16], index: 9, kind: input, shape index: {}]
  %s10 = inlined_call_operand.vmem [shape: s32[4,1], index: 10, kind: input, shape index: {}]
  %s11 = inlined_call_operand.vmem [shape: s32[4,1], index: 11, kind: input, shape index: {}]
  %s12 = inlined_call_operand.vmem [shape: s32[4,1], index: 12, kind: input, shape index: {}]
  %s13 = inlined_call_operand.vmem [shape: s32[4,1], index: 13, kind: input, shape index: {}]
  %s14 = inlined_call_operand.vmem [shape: f32[4,16], index: 14, kind: input, shape index: {}]
  %s15 = inlined_call_operand.vmem [shape: f32[4,16], index: 15, kind: input, shape index: {}]
  %s16 = inlined_call_operand.vmem [shape: f32[4,16], index: 16, kind: input, shape index: {}]
  %s17 = inlined_call_operand.vmem [shape: f32[4,16], index: 17, kind: input, shape index: {}]
  %s18 = inlined_call_operand.hbm [shape: f32[1,128], index: 18, kind: output, shape index: {}]
  %s19 = sld [smem:[#allocation0]]
  $region114: #{tpu_custom_call.1} parent=0
    _
  %s21 = ssub.s32 1, %s19
  %s22 = scalar_select 0, %s21, %s19
  $region1: #{tpu_custom_call.1} parent=0
    #allocation2 [shape = 'u8[16384]{0}', space=vmem, size = 0x4000, scoped, tag = 'input window, operand 0, single buffered']
    #allocation3 [shape = 's32[1]{0}', space=sflag, size = 0x4, scoped, tag = 'scoped memory for tpu_custom_call.1']
    #allocation4 [shape = 's32[1]{0}', space=sflag, size = 0x4, scoped, tag = 'scoped memory for tpu_custom_call.1']
    #allocation5 [shape = 'u8[12288]{0}', space=vmem, size = 0x3000, scoped, tag = 'input window, operand 1, single buffered']
    #allocation6 [shape = 's32[1]{0}', space=sflag, size = 0x4, scoped, tag = 'scoped memory for tpu_custom_call.1']
    #allocation7 [shape = 'u8[12288]{0}', space=vmem, size = 0x3000, scoped, tag = 'input window, operand 2, single buffered']
    #allocation8 [shape = 'u8[4096]{0}', space=vmem, size = 0x1000, scoped, tag = 'input window, operand 3, single buffered']
    #allocation9 [shape = 's32[1]{0}', space=sflag, size = 0x4, scoped, tag = 'scoped memory for tpu_custom_call.1']
    #allocation10 [shape = 'u8[4096]{0}', space=vmem, size = 0x1000, scoped, tag = 'input window, operand 4, single buffered']
    #allocation11 [shape = 'u8[8192]{0}', space=vmem, size = 0x2000, scoped, tag = 'input window, operand 6, single buffered']
    #allocation12 [shape = 's32[1]{0}', space=sflag, size = 0x4, scoped, tag = 'scoped memory for tpu_custom_call.1']
    #allocation13 [shape = 'u8[4096]{0}', space=vmem, size = 0x1000, scoped, tag = 'input window, operand 7, single buffered']
    #allocation14 [shape = 'u8[4096]{0}', space=vmem, size = 0x1000, scoped, tag = 'input window, operand 8, single buffered']
    #allocation15 [shape = 's32[1]{0}', space=sflag, size = 0x4, scoped, tag = 'scoped memory for tpu_custom_call.1']
    #allocation16 [shape = 'u8[512]{0}', space=vmem, size = 0x400, scoped, tag = 'output window, operand 0, single buffered']
    %23 = vsyncpa [#allocation3], 0
    %24 = vsyncpa [#allocation6], 0
    %25 = vsyncpa [#allocation9], 0
    %26 = vsyncpa [#allocation12], 0
    %27 = vsyncpa [#allocation15], 0
    %28 = vsyncpa [#allocation4], 0
    // Predicated region
    $region2: #{tpu_custom_call.1} parent=1 // pred_check
      _
    $region3: #{tpu_custom_call.1} parent=1 // pred_check_branch
      %30 = sbr.rel (0) target = $region5
    $region4: #{tpu_custom_call.1} parent=1 // pred_region
      %s32 = ssub.s32 512, 512
      %33 = vsyncadd [#allocation3], %s32
      %s34 = sshll.u32 [#allocation2], 4
      %s35 = int_to_ptr.vmem [resolvable:$true] %s34
      %40 = dma.hbm_to_vmem [thread:$0]  %s0, 512, %s35, [#allocation3], 128, 128, 8
    $region5: #{tpu_custom_call.1} parent=1 // pred_fallthru
      _
    // Predicated region
    $region6: #{tpu_custom_call.1} parent=1 // pred_check
      _
    $region7: #{tpu_custom_call.1} parent=1 // pred_check_branch
      %42 = sbr.rel (0) target = $region9
    $region8: #{tpu_custom_call.1} parent=1 // pred_region
      %s44 = ssub.s32 384, 384
      %45 = vsyncadd [#allocation6], %s44
      %s46 = sshll.u32 [#allocation5], 4
      %s47 = int_to_ptr.vmem [resolvable:$true] %s46
      %52 = dma.hbm_to_vmem [thread:$0]  %s1, 384, %s47, [#allocation6], 128, 128, 8
    $region9: #{tpu_custom_call.1} parent=1 // pred_fallthru
      _
    // Predicated region
    $region10: #{tpu_custom_call.1} parent=1 // pred_check
      _
    $region11: #{tpu_custom_call.1} parent=1 // pred_check_branch
      %54 = sbr.rel (0) target = $region13
    $region12: #{tpu_custom_call.1} parent=1 // pred_region
      %s56 = ssub.s32 384, 384
      %57 = vsyncadd [#allocation6], %s56
      %s58 = sshll.u32 [#allocation7], 4
      %s59 = int_to_ptr.vmem [resolvable:$true] %s58
      %64 = dma.hbm_to_vmem [thread:$0]  %s2, 384, %s59, [#allocation6], 128, 128, 8
    $region13: #{tpu_custom_call.1} parent=1 // pred_fallthru
      _
    // Predicated region
    $region14: #{tpu_custom_call.1} parent=1 // pred_check
      _
    $region15: #{tpu_custom_call.1} parent=1 // pred_check_branch
      %66 = sbr.rel (0) target = $region17
    $region16: #{tpu_custom_call.1} parent=1 // pred_region
      %s68 = ssub.s32 128, 128
      %69 = vsyncadd [#allocation9], %s68
      %s71 = sshll.u32 [#allocation8], 4
      %s72 = int_to_ptr.vmem [resolvable:$true] %s71
      %74 = dma.hbm_to_vmem [thread:$0]  %s3, 128, %s72, [#allocation9]
    $region17: #{tpu_custom_call.1} parent=1 // pred_fallthru
      _
    // Predicated region
    $region18: #{tpu_custom_call.1} parent=1 // pred_check
      _
    $region19: #{tpu_custom_call.1} parent=1 // pred_check_branch
      %76 = sbr.rel (0) target = $region21
    $region20: #{tpu_custom_call.1} parent=1 // pred_region
      %s78 = ssub.s32 128, 128
      %79 = vsyncadd [#allocation9], %s78
      %s81 = sshll.u32 [#allocation10], 4
      %s82 = int_to_ptr.vmem [resolvable:$true] %s81
      %84 = dma.hbm_to_vmem [thread:$0]  %s4, 128, %s82, [#allocation9]
    $region21: #{tpu_custom_call.1} parent=1 // pred_fallthru
      _
    // Predicated region
    $region22: #{tpu_custom_call.1} parent=1 // pred_check
      _
    $region23: #{tpu_custom_call.1} parent=1 // pred_check_branch
      %86 = sbr.rel (0) target = $region25
    $region24: #{tpu_custom_call.1} parent=1 // pred_region
      _
    $region25: #{tpu_custom_call.1} parent=1 // pred_fallthru
      _
    // Predicated region
    $region26: #{tpu_custom_call.1} parent=1 // pred_check
      _
    $region27: #{tpu_custom_call.1} parent=1 // pred_check_branch
      %88 = sbr.rel (0) target = $region29
    $region28: #{tpu_custom_call.1} parent=1 // pred_region
      %s90 = ssub.s32 256, 256
      %91 = vsyncadd [#allocation12], %s90
      %s92 = sshll.u32 [#allocation11], 4
      %s93 = int_to_ptr.vmem [resolvable:$true] %s92
      %98 = dma.hbm_to_vmem [thread:$0]  %s6, 256, %s93, [#allocation12], 128, 128, 8
    $region29: #{tpu_custom_call.1} parent=1 // pred_fallthru
      _
    // Predicated region
    $region30: #{tpu_custom_call.1} parent=1 // pred_check
      _
    $region31: #{tpu_custom_call.1} parent=1 // pred_check_branch
      %100 = sbr.rel (0) target = $region33
    $region32: #{tpu_custom_call.1} parent=1 // pred_region
      %s102 = ssub.s32 128, 128
      %103 = vsyncadd [#allocation12], %s102
      %s105 = sshll.u32 [#allocation13], 4
      %s106 = int_to_ptr.vmem [resolvable:$true] %s105
      %108 = dma.hbm_to_vmem [thread:$0]  %s7, 128, %s106, [#allocation12]
    $region33: #{tpu_custom_call.1} parent=1 // pred_fallthru
      _
    // Predicated region
    $region34: #{tpu_custom_call.1} parent=1 // pred_check
      _
    $region35: #{tpu_custom_call.1} parent=1 // pred_check_branch
      %110 = sbr.rel (0) target = $region37
    $region36: #{tpu_custom_call.1} parent=1 // pred_region
      %s112 = ssub.s32 128, 128
      %113 = vsyncadd [#allocation15], %s112
      %s115 = sshll.u32 [#allocation14], 4
      %s116 = int_to_ptr.vmem [resolvable:$true] %s115
      %118 = dma.hbm_to_vmem [thread:$0]  %s8, 128, %s116, [#allocation15]
    $region37: #{tpu_custom_call.1} parent=1 // pred_fallthru
      _
    // Predicated region
    $region38: #{tpu_custom_call.1} parent=1 // pred_check
      _
    $region39: #{tpu_custom_call.1} parent=1 // pred_check_branch
      %120 = sbr.rel (0) target = $region41
    $region40: #{tpu_custom_call.1} parent=1 // pred_region
      _
    $region41: #{tpu_custom_call.1} parent=1 // pred_fallthru
      _
    // Predicated region
    $region42: #{tpu_custom_call.1} parent=1 // pred_check
      _
    $region43: #{tpu_custom_call.1} parent=1 // pred_check_branch
      %122 = sbr.rel (0) target = $region45
    $region44: #{tpu_custom_call.1} parent=1 // pred_region
      _
    $region45: #{tpu_custom_call.1} parent=1 // pred_fallthru
      _
    // Predicated region
    $region46: #{tpu_custom_call.1} parent=1 // pred_check
      _
    $region47: #{tpu_custom_call.1} parent=1 // pred_check_branch
      %124 = sbr.rel (0) target = $region49
    $region48: #{tpu_custom_call.1} parent=1 // pred_region
      _
    $region49: #{tpu_custom_call.1} parent=1 // pred_fallthru
      _
    // Predicated region
    $region50: #{tpu_custom_call.1} parent=1 // pred_check
      _
    $region51: #{tpu_custom_call.1} parent=1 // pred_check_branch
      %126 = sbr.rel (0) target = $region53
    $region52: #{tpu_custom_call.1} parent=1 // pred_region
      _
    $region53: #{tpu_custom_call.1} parent=1 // pred_fallthru
      _
    // Predicated region
    $region54: #{tpu_custom_call.1} parent=1 // pred_check
      _
    $region55: #{tpu_custom_call.1} parent=1 // pred_check_branch
      %128 = sbr.rel (0) target = $region57
    $region56: #{tpu_custom_call.1} parent=1 // pred_region
      _
    $region57: #{tpu_custom_call.1} parent=1 // pred_fallthru
      _
    // Predicated region
    $region58: #{tpu_custom_call.1} parent=1 // pred_check
      _
    $region59: #{tpu_custom_call.1} parent=1 // pred_check_branch
      %130 = sbr.rel (0) target = $region61
    $region60: #{tpu_custom_call.1} parent=1 // pred_region
      _
    $region61: #{tpu_custom_call.1} parent=1 // pred_fallthru
      _
    // Predicated region
    $region62: #{tpu_custom_call.1} parent=1 // pred_check
      _
    $region63: #{tpu_custom_call.1} parent=1 // pred_check_branch
      %132 = sbr.rel (0) target = $region65
    $region64: #{tpu_custom_call.1} parent=1 // pred_region
      _
    $region65: #{tpu_custom_call.1} parent=1 // pred_fallthru
      _
    // Predicated region
    $region66: #{tpu_custom_call.1} parent=1 // pred_check
      _
    $region67: #{tpu_custom_call.1} parent=1 // pred_check_branch
      %134 = sbr.rel (0) target = $region69
    $region68: #{tpu_custom_call.1} parent=1 // pred_region
      _
    $region69: #{tpu_custom_call.1} parent=1 // pred_fallthru
      _
    // Predicated region
    $region70: #{tpu_custom_call.1} parent=1 // pred_check
      _
    $region71: #{tpu_custom_call.1} parent=1 // pred_check_branch
      %136 = sbr.rel (0) target = $region73
    $region72: #{tpu_custom_call.1} parent=1 // pred_region
      _
    $region73: #{tpu_custom_call.1} parent=1 // pred_fallthru
      _
    // Predicated region
    $region74: #{tpu_custom_call.1} parent=1 // pred_check
      _
    $region75: #{tpu_custom_call.1} parent=1 // pred_check_branch
      %138 = sbr.rel (0) target = $region77
    $region76: #{tpu_custom_call.1} parent=1 // pred_region
      %139 = dma.done [#allocation3], 512
    $region77: #{tpu_custom_call.1} parent=1 // pred_fallthru
      _
    // Predicated region
    $region78: #{tpu_custom_call.1} parent=1 // pred_check
      _
    $region79: #{tpu_custom_call.1} parent=1 // pred_check_branch
      %141 = sbr.rel (0) target = $region81
    $region80: #{tpu_custom_call.1} parent=1 // pred_region
      %142 = dma.done [#allocation6], 384
    $region81: #{tpu_custom_call.1} parent=1 // pred_fallthru
      _
    // Predicated region
    $region82: #{tpu_custom_call.1} parent=1 // pred_check
      _
    $region83: #{tpu_custom_call.1} parent=1 // pred_check_branch
      %144 = sbr.rel (0) target = $region85
    $region84: #{tpu_custom_call.1} parent=1 // pred_region
      %145 = dma.done [#allocation6], 384
    $region85: #{tpu_custom_call.1} parent=1 // pred_fallthru
      _
    // Predicated region
    $region86: #{tpu_custom_call.1} parent=1 // pred_check
      _
    $region87: #{tpu_custom_call.1} parent=1 // pred_check_branch
      %147 = sbr.rel (0) target = $region89
    $region88: #{tpu_custom_call.1} parent=1 // pred_region
      %148 = dma.done [#allocation9], 128
    $region89: #{tpu_custom_call.1} parent=1 // pred_fallthru
      _
    // Predicated region
    $region90: #{tpu_custom_call.1} parent=1 // pred_check
      _
    $region91: #{tpu_custom_call.1} parent=1 // pred_check_branch
      %150 = sbr.rel (0) target = $region93
    $region92: #{tpu_custom_call.1} parent=1 // pred_region
      %151 = dma.done [#allocation9], 128
    $region93: #{tpu_custom_call.1} parent=1 // pred_fallthru
      _
    // Predicated region
    $region94: #{tpu_custom_call.1} parent=1 // pred_check
      _
    $region95: #{tpu_custom_call.1} parent=1 // pred_check_branch
      %153 = sbr.rel (0) target = $region97
    $region96: #{tpu_custom_call.1} parent=1 // pred_region
      %154 = dma.done [#allocation12], 256
    $region97: #{tpu_custom_call.1} parent=1 // pred_fallthru
      _
    // Predicated region
    $region98: #{tpu_custom_call.1} parent=1 // pred_check
      _
    $region99: #{tpu_custom_call.1} parent=1 // pred_check_branch
      %156 = sbr.rel (0) target = $region101
    $region100: #{tpu_custom_call.1} parent=1 // pred_region
      %157 = dma.done [#allocation12], 128
    $region101: #{tpu_custom_call.1} parent=1 // pred_fallthru
      _
    // Predicated region
    $region102: #{tpu_custom_call.1} parent=1 // pred_check
      _
    $region103: #{tpu_custom_call.1} parent=1 // pred_check_branch
      %159 = sbr.rel (0) target = $region105
    $region104: #{tpu_custom_call.1} parent=1 // pred_region
      %160 = dma.done [#allocation15], 128
    $region105: #{tpu_custom_call.1} parent=1 // pred_fallthru
      _
    %v161 = vld [vmem:[%s5] sm:$0xff]
    %v162 = vld [vmem:[%s5 + $0x8] sm:$0xff]
    %v163 = vld [vmem:[#allocation11] sm:$0xff]
    %v164 = vld [vmem:[#allocation11 + $0x8] sm:$0xff]
    %v165 = vld [vmem:[#allocation13] sm:$0xff]
    %v166 = vld [vmem:[#allocation14] sm:$0xff]
    %v167 = vld [vmem:[#allocation2] sm:$0xff]
    %v168 = vld [vmem:[#allocation2 + $0x8] sm:$0xff]
    %v169 = vld [vmem:[#allocation2 + $0x10] sm:$0xff]
    %v170 = vld [vmem:[#allocation2 + $0x18] sm:$0xff]
    %vm171 = vcmask 261120
    %v173 = vsel %vm171, %v167, 0
    %v176 = vsel %vm171, %v168, 0
    %v179 = vsel %vm171, %v169, 0
    %v182 = vsel %vm171, %v170, 0
    %184 = vmatprep.subr.mxu0 0.0
    %185 = vmatpush1.msra.mxu0 0.0
    %186 = vmatprep.subr.mxu0 0.0
    %187 = vmatpush1.msra.mxu0 0.0
    %188 = vmatprep.subr.mxu0 0.0
    %189 = vmatpush1.msra.mxu0 0.0
    %190 = vmatprep.subr.mxu0 0.0
    %191 = vmatpush1.msra.mxu0 0.0
    %192 = vmatprep.subr.mxu0 0.0
    %193 = vmatpush1.msra.mxu0 0.0
    %194 = vmatprep.subr.mxu0 0.0
    %195 = vmatpush1.msra.mxu0 0.0
    %196 = vmatprep.subr.mxu0 0.0
    %197 = vmatpush1.msra.mxu0 0.0
    %198 = vmatprep.subr.mxu0 0.0
    %199 = vmatpush1.msra.mxu0 0.0
    %200 = vmatprep.subr.mxu0 0.0
    %201 = vmatpush1.msra.mxu0 0.0
    %202 = vmatprep.subr.mxu0 0.0
    %203 = vmatpush1.msra.mxu0 0.0
    %204 = vmatprep.subr.mxu0 0.0
    %205 = vmatpush1.msra.mxu0 0.0
    %206 = vmatprep.subr.mxu0 0.0
    %207 = vmatpush1.msra.mxu0 0.0
    %208 = vmatprep.subr.mxu0 0.0
    %209 = vmatpush1.msra.mxu0 %v164
    %210 = vmatprep.subr.mxu0 0.0
    %211 = vmatpush1.msra.mxu0 %v163
    %212 = vmatprep.subr.mxu0 0.0
    %213 = vmatpush1.msra.mxu0 %v162
    %214 = vmatprep.subr.mxu0 0.0
    %215 = vmatpush1.msra.mxu0 %v161
    %216 = vmatprep.subr.mxu0 0.0
    %217 = vmatpush2.msra.mxu0 0.0
    %218 = vmatprep.subr.mxu0 0.0
    %219 = vmatpush2.msra.mxu0 0.0
    %220 = vmatprep.subr.mxu0 0.0
    %221 = vmatpush2.msra.mxu0 0.0
    %222 = vmatprep.subr.mxu0 0.0
    %223 = vmatpush2.msra.mxu0 0.0
    %224 = vmatprep.subr.mxu0 0.0
    %225 = vmatpush2.msra.mxu0 0.0
    %226 = vmatprep.subr.mxu0 0.0
    %227 = vmatpush2.msra.mxu0 0.0
    %228 = vmatprep.subr.mxu0 0.0
    %229 = vmatpush2.msra.mxu0 0.0
    %230 = vmatprep.subr.mxu0 0.0
    %231 = vmatpush2.msra.mxu0 0.0
    %232 = vmatprep.subr.mxu0 0.0
    %233 = vmatpush2.msra.mxu0 0.0
    %234 = vmatprep.subr.mxu0 0.0
    %235 = vmatpush2.msra.mxu0 0.0
    %236 = vmatprep.subr.mxu0 0.0
    %237 = vmatpush2.msra.mxu0 0.0
    %238 = vmatprep.subr.mxu0 0.0
    %239 = vmatpush2.msra.mxu0 0.0
    %240 = vmatprep.subr.mxu0 0.0
    %241 = vmatpush2.msra.mxu0 0.0
    %242 = vmatprep.subr.mxu0 0.0
    %243 = vmatpush2.msra.mxu0 0.0
    %244 = vmatprep.subr.mxu0 0.0
    %245 = vmatpush2.msra.mxu0 0.0
    %246 = vmatprep.subr.mxu0 0.0
    %247 = vmatpush2.msra.mxu0 0.0
    %248 = vmatprep.mubr.f32.mxu0 0.0
    %249 = vmatmul.mubr.f32.gmra.mxu0 %v173
    %v250 = vpop.f32.mrf.mxu0
    %v251 = vadd.f32 0.0, %v250
    %v252 = vpop.f32.mrf.mxu0
    %253 = vmatprep.mubr.f32.mxu0 0.0
    %254 = vmatmul.mubr.f32.gmra.mxu0 %v176
    %v255 = vpop.f32.mrf.mxu0
    %v256 = vadd.f32 0.0, %v255
    %v257 = vpop.f32.mrf.mxu0
    %258 = vmatprep.mubr.f32.mxu0 0.0
    %259 = vmatmul.mubr.f32.gmra.mxu0 %v179
    %v260 = vpop.f32.mrf.mxu0
    %v261 = vadd.f32 0.0, %v260
    %v262 = vpop.f32.mrf.mxu0
    %263 = vmatprep.mubr.f32.mxu0 0.0
    %264 = vmatmul.mubr.f32.gmra.mxu0 %v182
    %v265 = vpop.f32.mrf.mxu0
    %v266 = vadd.f32 0.0, %v265
    %v267 = vpop.f32.mrf.mxu0
    %268 = vdwg.mxu0
    %v269 = vrcp.pop 2.0
    %v270 = vmul.f32 %v251, %v269
    %v271 = vmul.f32 %v256, %v269
    %v272 = vmul.f32 %v261, %v269
    %v273 = vmul.f32 %v266, %v269
    %v274 = vmul.f32 %v270, %v270
    %v275 = vmul.f32 %v271, %v271
    %v276 = vmul.f32 %v272, %v272
    %v277 = vmul.f32 %v273, %v273
    %v278 = vsel %vm171, %v274, 0.0
    %279 = vadd.xlane.f32.xlu0 %v278
    %v280 = vpop.xlane.xlu0 %279
    %v281 = vsel %vm171, %v275, 0.0
    %282 = vadd.xlane.f32.xlu0 %v281
    %v283 = vpop.xlane.xlu0 %282
    %v284 = vsel %vm171, %v276, 0.0
    %285 = vadd.xlane.f32.xlu0 %v284
    %v286 = vpop.xlane.xlu0 %285
    %v287 = vsel %vm171, %v277, 0.0
    %288 = vadd.xlane.f32.xlu0 %v287
    %v289 = vpop.xlane.xlu0 %288
    %v290 = vmax.f32 %v280, 1e-24
    %v291 = vmax.f32 %v283, 1e-24
    %v292 = vmax.f32 %v286, 1e-24
    %v293 = vmax.f32 %v289, 1e-24
    %v294 = vrsqrt.pop %v290
    %v295 = vrsqrt.pop %v291
    %v296 = vrsqrt.pop %v292
    %v297 = vrsqrt.pop %v293
    %v298 = vmul.f32 %v270, %v294
    %v299 = vmul.f32 %v271, %v295
    %v300 = vmul.f32 %v272, %v296
    %v301 = vmul.f32 %v273, %v297
    %v302 = vadd.f32 %v161, %v298
    %v303 = vadd.f32 %v162, %v299
    %v304 = vadd.f32 %v163, %v300
    %v305 = vadd.f32 %v164, %v301
    %306 = vmatprep.subr.mxu0 0.0
    %307 = vmatpush1.msra.mxu0 0.0
    %308 = vmatprep.subr.mxu0 0.0
    %309 = vmatpush1.msra.mxu0 0.0
    %310 = vmatprep.subr.mxu0 0.0
    %311 = vmatpush1.msra.mxu0 0.0
    %312 = vmatprep.subr.mxu0 0.0
    %313 = vmatpush1.msra.mxu0 0.0
    %314 = vmatprep.subr.mxu0 0.0
    %315 = vmatpush1.msra.mxu0 0.0
    %316 = vmatprep.subr.mxu0 0.0
    %317 = vmatpush1.msra.mxu0 0.0
    %318 = vmatprep.subr.mxu0 0.0
    %319 = vmatpush1.msra.mxu0 0.0
    %320 = vmatprep.subr.mxu0 0.0
    %321 = vmatpush1.msra.mxu0 0.0
    %322 = vmatprep.subr.mxu0 0.0
    %323 = vmatpush1.msra.mxu0 0.0
    %324 = vmatprep.subr.mxu0 0.0
    %325 = vmatpush1.msra.mxu0 0.0
    %326 = vmatprep.subr.mxu0 0.0
    %327 = vmatpush1.msra.mxu0 0.0
    %328 = vmatprep.subr.mxu0 0.0
    %329 = vmatpush1.msra.mxu0 0.0
    %330 = vmatprep.subr.mxu0 0.0
    %331 = vmatpush1.msra.mxu0 %v273
    %332 = vmatprep.subr.mxu0 0.0
    %333 = vmatpush1.msra.mxu0 %v272
    %334 = vmatprep.subr.mxu0 0.0
    %335 = vmatpush1.msra.mxu0 %v271
    %336 = vmatprep.subr.mxu0 0.0
    %337 = vmatpush1.msra.mxu0 %v270
    %338 = vmatprep.subr.mxu0 0.0
    %339 = vmatpush2.msra.mxu0 0.0
    %340 = vmatprep.subr.mxu0 0.0
    %341 = vmatpush2.msra.mxu0 0.0
    %342 = vmatprep.subr.mxu0 0.0
    %343 = vmatpush2.msra.mxu0 0.0
    %344 = vmatprep.subr.mxu0 0.0
    %345 = vmatpush2.msra.mxu0 0.0
    %346 = vmatprep.subr.mxu0 0.0
    %347 = vmatpush2.msra.mxu0 0.0
    %348 = vmatprep.subr.mxu0 0.0
    %349 = vmatpush2.msra.mxu0 0.0
    %350 = vmatprep.subr.mxu0 0.0
    %351 = vmatpush2.msra.mxu0 0.0
    %352 = vmatprep.subr.mxu0 0.0
    %353 = vmatpush2.msra.mxu0 0.0
    %354 = vmatprep.subr.mxu0 0.0
    %355 = vmatpush2.msra.mxu0 0.0
    %356 = vmatprep.subr.mxu0 0.0
    %357 = vmatpush2.msra.mxu0 0.0
    %358 = vmatprep.subr.mxu0 0.0
    %359 = vmatpush2.msra.mxu0 0.0
    %360 = vmatprep.subr.mxu0 0.0
    %361 = vmatpush2.msra.mxu0 0.0
    %362 = vmatprep.subr.mxu0 0.0
    %363 = vmatpush2.msra.mxu0 0.0
    %364 = vmatprep.subr.mxu0 0.0
    %365 = vmatpush2.msra.mxu0 0.0
    %366 = vmatprep.subr.mxu0 0.0
    %367 = vmatpush2.msra.mxu0 0.0
    %368 = vmatprep.subr.mxu0 0.0
    %369 = vmatpush2.msra.mxu0 0.0
    %370 = vmatprep.mubr.f32.mxu0 0.0
    %371 = vmatmul.mubr.f32.gmra.mxu0 %v173
    %v372 = vpop.f32.mrf.mxu0
    %v373 = vadd.f32 0.0, %v372
    %v374 = vpop.f32.mrf.mxu0
    %375 = vmatprep.mubr.f32.mxu0 0.0
    %376 = vmatmul.mubr.f32.gmra.mxu0 %v176
    %v377 = vpop.f32.mrf.mxu0
    %v378 = vadd.f32 0.0, %v377
    %v379 = vpop.f32.mrf.mxu0
    %380 = vmatprep.mubr.f32.mxu0 0.0
    %381 = vmatmul.mubr.f32.gmra.mxu0 %v179
    %v382 = vpop.f32.mrf.mxu0
    %v383 = vadd.f32 0.0, %v382
    %v384 = vpop.f32.mrf.mxu0
    %385 = vmatprep.mubr.f32.mxu0 0.0
    %386 = vmatmul.mubr.f32.gmra.mxu0 %v182
    %v387 = vpop.f32.mrf.mxu0
    %v388 = vadd.f32 0.0, %v387
    %v389 = vpop.f32.mrf.mxu0
    %390 = vdwg.mxu0
    %v391 = vrcp.pop 3.0
    %v392 = vmul.f32 %v373, %v391
    %v393 = vmul.f32 %v378, %v391
    %v394 = vmul.f32 %v383, %v391
    %v395 = vmul.f32 %v388, %v391
    %v396 = vmul.f32 %v392, %v392
    %v397 = vmul.f32 %v393, %v393
    %v398 = vmul.f32 %v394, %v394
    %v399 = vmul.f32 %v395, %v395
    %v400 = vsel %vm171, %v396, 0.0
    %401 = vadd.xlane.f32.xlu0 %v400
    %v402 = vpop.xlane.xlu0 %401
    %v403 = vsel %vm171, %v397, 0.0
    %404 = vadd.xlane.f32.xlu0 %v403
    %v405 = vpop.xlane.xlu0 %404
    %v406 = vsel %vm171, %v398, 0.0
    %407 = vadd.xlane.f32.xlu0 %v406
    %v408 = vpop.xlane.xlu0 %407
    %v409 = vsel %vm171, %v399, 0.0
    %410 = vadd.xlane.f32.xlu0 %v409
    %v411 = vpop.xlane.xlu0 %410
    %v412 = vmax.f32 %v402, 1e-24
    %v413 = vmax.f32 %v405, 1e-24
    %v414 = vmax.f32 %v408, 1e-24
    %v415 = vmax.f32 %v411, 1e-24
    %v416 = vrsqrt.pop %v412
    %v417 = vrsqrt.pop %v413
    %v418 = vrsqrt.pop %v414
    %v419 = vrsqrt.pop %v415
    %v420 = vmul.f32 %v392, %v416
    %v421 = vmul.f32 %v393, %v417
    %v422 = vmul.f32 %v394, %v418
    %v423 = vmul.f32 %v395, %v419
    %v424 = vadd.f32 %v302, %v420
    %v425 = vadd.f32 %v303, %v421
    %v426 = vadd.f32 %v304, %v422
    %v427 = vadd.f32 %v305, %v423
    %v428 = vld [vmem:[#allocation8] sm:$0xff]
    %vm429 = vcmask 130048
    %v431 = vsel %vm429, %v428, 0
    %433 = vmatprep.subr.mxu0 0.0
    %434 = vmatpush1.msra.mxu0 0.0
    %435 = vmatprep.subr.mxu0 0.0
    %436 = vmatpush1.msra.mxu0 0.0
    %437 = vmatprep.subr.mxu0 0.0
    %438 = vmatpush1.msra.mxu0 0.0
    %439 = vmatprep.subr.mxu0 0.0
    %440 = vmatpush1.msra.mxu0 0.0
    %441 = vmatprep.subr.mxu0 0.0
    %442 = vmatpush1.msra.mxu0 0.0
    %443 = vmatprep.subr.mxu0 0.0
    %444 = vmatpush1.msra.mxu0 0.0
    %445 = vmatprep.subr.mxu0 0.0
    %446 = vmatpush1.msra.mxu0 0.0
    %447 = vmatprep.subr.mxu0 0.0
    %448 = vmatpush1.msra.mxu0 0.0
    %449 = vmatprep.subr.mxu0 0.0
    %450 = vmatpush1.msra.mxu0 0.0
    %451 = vmatprep.subr.mxu0 0.0
    %452 = vmatpush1.msra.mxu0 0.0
    %453 = vmatprep.subr.mxu0 0.0
    %454 = vmatpush1.msra.mxu0 0.0
    %455 = vmatprep.subr.mxu0 0.0
    %456 = vmatpush1.msra.mxu0 0.0
    %457 = vmatprep.subr.mxu0 0.0
    %458 = vmatpush1.msra.mxu0 0.0
    %459 = vmatprep.subr.mxu0 0.0
    %460 = vmatpush1.msra.mxu0 0.0
    %461 = vmatprep.subr.mxu0 0.0
    %462 = vmatpush1.msra.mxu0 %v427
    %463 = vmatprep.subr.mxu0 0.0
    %464 = vmatpush1.msra.mxu0 %v426
    %465 = vmatprep.subr.mxu0 0.0
    %466 = vmatpush2.msra.mxu0 0.0
    %467 = vmatprep.subr.mxu0 0.0
    %468 = vmatpush2.msra.mxu0 0.0
    %469 = vmatprep.subr.mxu0 0.0
    %470 = vmatpush2.msra.mxu0 0.0
    %471 = vmatprep.subr.mxu0 0.0
    %472 = vmatpush2.msra.mxu0 0.0
    %473 = vmatprep.subr.mxu0 0.0
    %474 = vmatpush2.msra.mxu0 0.0
    %475 = vmatprep.subr.mxu0 0.0
    %476 = vmatpush2.msra.mxu0 0.0
    %477 = vmatprep.subr.mxu0 0.0
    %478 = vmatpush2.msra.mxu0 0.0
    %479 = vmatprep.subr.mxu0 0.0
    %480 = vmatpush2.msra.mxu0 0.0
    %481 = vmatprep.subr.mxu0 0.0
    %482 = vmatpush2.msra.mxu0 0.0
    %483 = vmatprep.subr.mxu0 0.0
    %484 = vmatpush2.msra.mxu0 0.0
    %485 = vmatprep.subr.mxu0 0.0
    %486 = vmatpush2.msra.mxu0 0.0
    %487 = vmatprep.subr.mxu0 0.0
    %488 = vmatpush2.msra.mxu0 0.0
    %489 = vmatprep.subr.mxu0 0.0
    %490 = vmatpush2.msra.mxu0 0.0
    %491 = vmatprep.subr.mxu0 0.0
    %492 = vmatpush2.msra.mxu0 0.0
    %493 = vmatprep.subr.mxu0 0.0
    %494 = vmatpush2.msra.mxu0 0.0
    %495 = vmatprep.subr.mxu0 0.0
    %496 = vmatpush2.msra.mxu0 0.0
    %497 = vmatprep.mubr.f32.mxu0 0.0
    %498 = vmatmul.mubr.f32.gmra.mxu0 %v431
    %v499 = vpop.f32.mrf.mxu0
    %v500 = vadd.f32 0.0, %v499
    %v501 = vpop.f32.mrf.mxu0
    %502 = vdwg.mxu0
    %v503 = vld [vmem:[#allocation10] sm:$0xff]
    %v505 = vsel %vm429, %v503, 0
    %507 = vmatprep.subr.mxu0 0.0
    %508 = vmatpush1.msra.mxu0 0.0
    %509 = vmatprep.subr.mxu0 0.0
    %510 = vmatpush1.msra.mxu0 0.0
    %511 = vmatprep.subr.mxu0 0.0
    %512 = vmatpush1.msra.mxu0 0.0
    %513 = vmatprep.subr.mxu0 0.0
    %514 = vmatpush1.msra.mxu0 0.0
    %515 = vmatprep.subr.mxu0 0.0
    %516 = vmatpush1.msra.mxu0 0.0
    %517 = vmatprep.subr.mxu0 0.0
    %518 = vmatpush1.msra.mxu0 0.0
    %519 = vmatprep.subr.mxu0 0.0
    %520 = vmatpush1.msra.mxu0 0.0
    %521 = vmatprep.subr.mxu0 0.0
    %522 = vmatpush1.msra.mxu0 0.0
    %523 = vmatprep.subr.mxu0 0.0
    %524 = vmatpush1.msra.mxu0 0.0
    %525 = vmatprep.subr.mxu0 0.0
    %526 = vmatpush1.msra.mxu0 0.0
    %527 = vmatprep.subr.mxu0 0.0
    %528 = vmatpush1.msra.mxu0 0.0
    %529 = vmatprep.subr.mxu0 0.0
    %530 = vmatpush1.msra.mxu0 0.0
    %531 = vmatprep.subr.mxu0 0.0
    %532 = vmatpush1.msra.mxu0 0.0
    %533 = vmatprep.subr.mxu0 0.0
    %534 = vmatpush1.msra.mxu0 0.0
    %535 = vmatprep.subr.mxu0 0.0
    %536 = vmatpush1.msra.mxu0 %v425
    %537 = vmatprep.subr.mxu0 0.0
    %538 = vmatpush1.msra.mxu0 %v424
    %539 = vmatprep.subr.mxu0 0.0
    %540 = vmatpush2.msra.mxu0 0.0
    %541 = vmatprep.subr.mxu0 0.0
    %542 = vmatpush2.msra.mxu0 0.0
    %543 = vmatprep.subr.mxu0 0.0
    %544 = vmatpush2.msra.mxu0 0.0
    %545 = vmatprep.subr.mxu0 0.0
    %546 = vmatpush2.msra.mxu0 0.0
    %547 = vmatprep.subr.mxu0 0.0
    %548 = vmatpush2.msra.mxu0 0.0
    %549 = vmatprep.subr.mxu0 0.0
    %550 = vmatpush2.msra.mxu0 0.0
    %551 = vmatprep.subr.mxu0 0.0
    %552 = vmatpush2.msra.mxu0 0.0
    %553 = vmatprep.subr.mxu0 0.0
    %554 = vmatpush2.msra.mxu0 0.0
    %555 = vmatprep.subr.mxu0 0.0
    %556 = vmatpush2.msra.mxu0 0.0
    %557 = vmatprep.subr.mxu0 0.0
    %558 = vmatpush2.msra.mxu0 0.0
    %559 = vmatprep.subr.mxu0 0.0
    %560 = vmatpush2.msra.mxu0 0.0
    %561 = vmatprep.subr.mxu0 0.0
    %562 = vmatpush2.msra.mxu0 0.0
    %563 = vmatprep.subr.mxu0 0.0
    %564 = vmatpush2.msra.mxu0 0.0
    %565 = vmatprep.subr.mxu0 0.0
    %566 = vmatpush2.msra.mxu0 0.0
    %567 = vmatprep.subr.mxu0 0.0
    %568 = vmatpush2.msra.mxu0 0.0
    %569 = vmatprep.subr.mxu0 0.0
    %570 = vmatpush2.msra.mxu0 0.0
    %571 = vmatprep.mubr.f32.mxu0 0.0
    %572 = vmatmul.mubr.f32.gmra.mxu0 %v505
    %v573 = vpop.f32.mrf.mxu0
    %v574 = vadd.f32 0.0, %v573
    %v575 = vpop.f32.mrf.mxu0
    %576 = vdwg.mxu0
    %v577 = vld [vmem:[#allocation5] sm:$0xff]
    %v578 = vld [vmem:[#allocation5 + $0x8] sm:$0xff]
    %v579 = vld [vmem:[#allocation5 + $0x10] sm:$0xff]
    %vm580 = vcmask 195584
    %v582 = vsel %vm580, %v577, 0
    %v585 = vsel %vm580, %v578, 0
    %v588 = vsel %vm580, %v579, 0
    %590 = vmatprep.subr.mxu0 0.0
    %591 = vmatpush1.msra.mxu0 0.0
    %592 = vmatprep.subr.mxu0 0.0
    %593 = vmatpush1.msra.mxu0 0.0
    %594 = vmatprep.subr.mxu0 0.0
    %595 = vmatpush1.msra.mxu0 0.0
    %596 = vmatprep.subr.mxu0 0.0
    %597 = vmatpush1.msra.mxu0 0.0
    %598 = vmatprep.subr.mxu0 0.0
    %599 = vmatpush1.msra.mxu0 0.0
    %600 = vmatprep.subr.mxu0 0.0
    %601 = vmatpush1.msra.mxu0 0.0
    %602 = vmatprep.subr.mxu0 0.0
    %603 = vmatpush1.msra.mxu0 0.0
    %604 = vmatprep.subr.mxu0 0.0
    %605 = vmatpush1.msra.mxu0 0.0
    %606 = vmatprep.subr.mxu0 0.0
    %607 = vmatpush1.msra.mxu0 0.0
    %608 = vmatprep.subr.mxu0 0.0
    %609 = vmatpush1.msra.mxu0 0.0
    %610 = vmatprep.subr.mxu0 0.0
    %611 = vmatpush1.msra.mxu0 0.0
    %612 = vmatprep.subr.mxu0 0.0
    %613 = vmatpush1.msra.mxu0 0.0
    %614 = vmatprep.subr.mxu0 0.0
    %615 = vmatpush1.msra.mxu0 0.0
    %616 = vmatprep.subr.mxu0 0.0
    %617 = vmatpush1.msra.mxu0 %v165
    %618 = vmatprep.subr.mxu0 0.0
    %619 = vmatpush1.msra.mxu0 %v162
    %620 = vmatprep.subr.mxu0 0.0
    %621 = vmatpush1.msra.mxu0 %v161
    %622 = vmatprep.subr.mxu0 0.0
    %623 = vmatpush2.msra.mxu0 0.0
    %624 = vmatprep.subr.mxu0 0.0
    %625 = vmatpush2.msra.mxu0 0.0
    %626 = vmatprep.subr.mxu0 0.0
    %627 = vmatpush2.msra.mxu0 0.0
    %628 = vmatprep.subr.mxu0 0.0
    %629 = vmatpush2.msra.mxu0 0.0
    %630 = vmatprep.subr.mxu0 0.0
    %631 = vmatpush2.msra.mxu0 0.0
    %632 = vmatprep.subr.mxu0 0.0
    %633 = vmatpush2.msra.mxu0 0.0
    %634 = vmatprep.subr.mxu0 0.0
    %635 = vmatpush2.msra.mxu0 0.0
    %636 = vmatprep.subr.mxu0 0.0
    %637 = vmatpush2.msra.mxu0 0.0
    %638 = vmatprep.subr.mxu0 0.0
    %639 = vmatpush2.msra.mxu0 0.0
    %640 = vmatprep.subr.mxu0 0.0
    %641 = vmatpush2.msra.mxu0 0.0
    %642 = vmatprep.subr.mxu0 0.0
    %643 = vmatpush2.msra.mxu0 0.0
    %644 = vmatprep.subr.mxu0 0.0
    %645 = vmatpush2.msra.mxu0 0.0
    %646 = vmatprep.subr.mxu0 0.0
    %647 = vmatpush2.msra.mxu0 0.0
    %648 = vmatprep.subr.mxu0 0.0
    %649 = vmatpush2.msra.mxu0 0.0
    %650 = vmatprep.subr.mxu0 0.0
    %651 = vmatpush2.msra.mxu0 0.0
    %652 = vmatprep.subr.mxu0 0.0
    %653 = vmatpush2.msra.mxu0 0.0
    %654 = vmatprep.mubr.f32.mxu0 0.0
    %655 = vmatmul.mubr.f32.gmra.mxu0 %v582
    %v656 = vpop.f32.mrf.mxu0
    %v657 = vadd.f32 0.0, %v656
    %v658 = vpop.f32.mrf.mxu0
    %659 = vmatprep.mubr.f32.mxu0 0.0
    %660 = vmatmul.mubr.f32.gmra.mxu0 %v585
    %v661 = vpop.f32.mrf.mxu0
    %v662 = vadd.f32 0.0, %v661
    %v663 = vpop.f32.mrf.mxu0
    %664 = vmatprep.mubr.f32.mxu0 0.0
    %665 = vmatmul.mubr.f32.gmra.mxu0 %v588
    %v666 = vpop.f32.mrf.mxu0
    %v667 = vadd.f32 0.0, %v666
    %v668 = vpop.f32.mrf.mxu0
    %669 = vdwg.mxu0
    %v670 = vmul.f32 %v657, %v269
    %v671 = vmul.f32 %v662, %v269
    %v672 = vmul.f32 %v667, %v269
    %v673 = vmul.f32 %v670, %v670
    %v674 = vmul.f32 %v671, %v671
    %v675 = vmul.f32 %v672, %v672
    %v676 = vsel %vm171, %v673, 0.0
    %677 = vadd.xlane.f32.xlu0 %v676
    %v678 = vpop.xlane.xlu0 %677
    %v679 = vsel %vm171, %v674, 0.0
    %680 = vadd.xlane.f32.xlu0 %v679
    %v681 = vpop.xlane.xlu0 %680
    %v682 = vsel %vm171, %v675, 0.0
    %683 = vadd.xlane.f32.xlu0 %v682
    %v684 = vpop.xlane.xlu0 %683
    %v685 = vmax.f32 %v678, 1e-24
    %v686 = vmax.f32 %v681, 1e-24
    %v687 = vmax.f32 %v684, 1e-24
    %v688 = vrsqrt.pop %v685
    %v689 = vrsqrt.pop %v686
    %v690 = vrsqrt.pop %v687
    %v691 = vmul.f32 %v670, %v688
    %v692 = vmul.f32 %v671, %v689
    %v693 = vmul.f32 %v672, %v690
    %v694 = vadd.f32 %v161, %v691
    %v695 = vadd.f32 %v162, %v692
    %v696 = vadd.f32 %v165, %v693
    %697 = vmatprep.subr.mxu0 0.0
    %698 = vmatpush1.msra.mxu0 0.0
    %699 = vmatprep.subr.mxu0 0.0
    %700 = vmatpush1.msra.mxu0 0.0
    %701 = vmatprep.subr.mxu0 0.0
    %702 = vmatpush1.msra.mxu0 0.0
    %703 = vmatprep.subr.mxu0 0.0
    %704 = vmatpush1.msra.mxu0 0.0
    %705 = vmatprep.subr.mxu0 0.0
    %706 = vmatpush1.msra.mxu0 0.0
    %707 = vmatprep.subr.mxu0 0.0
    %708 = vmatpush1.msra.mxu0 0.0
    %709 = vmatprep.subr.mxu0 0.0
    %710 = vmatpush1.msra.mxu0 0.0
    %711 = vmatprep.subr.mxu0 0.0
    %712 = vmatpush1.msra.mxu0 0.0
    %713 = vmatprep.subr.mxu0 0.0
    %714 = vmatpush1.msra.mxu0 0.0
    %715 = vmatprep.subr.mxu0 0.0
    %716 = vmatpush1.msra.mxu0 0.0
    %717 = vmatprep.subr.mxu0 0.0
    %718 = vmatpush1.msra.mxu0 0.0
    %719 = vmatprep.subr.mxu0 0.0
    %720 = vmatpush1.msra.mxu0 0.0
    %721 = vmatprep.subr.mxu0 0.0
    %722 = vmatpush1.msra.mxu0 0.0
    %723 = vmatprep.subr.mxu0 0.0
    %724 = vmatpush1.msra.mxu0 %v672
    %725 = vmatprep.subr.mxu0 0.0
    %726 = vmatpush1.msra.mxu0 %v671
    %727 = vmatprep.subr.mxu0 0.0
    %728 = vmatpush1.msra.mxu0 %v670
    %729 = vmatprep.subr.mxu0 0.0
    %730 = vmatpush2.msra.mxu0 0.0
    %731 = vmatprep.subr.mxu0 0.0
    %732 = vmatpush2.msra.mxu0 0.0
    %733 = vmatprep.subr.mxu0 0.0
    %734 = vmatpush2.msra.mxu0 0.0
    %735 = vmatprep.subr.mxu0 0.0
    %736 = vmatpush2.msra.mxu0 0.0
    %737 = vmatprep.subr.mxu0 0.0
    %738 = vmatpush2.msra.mxu0 0.0
    %739 = vmatprep.subr.mxu0 0.0
    %740 = vmatpush2.msra.mxu0 0.0
    %741 = vmatprep.subr.mxu0 0.0
    %742 = vmatpush2.msra.mxu0 0.0
    %743 = vmatprep.subr.mxu0 0.0
    %744 = vmatpush2.msra.mxu0 0.0
    %745 = vmatprep.subr.mxu0 0.0
    %746 = vmatpush2.msra.mxu0 0.0
    %747 = vmatprep.subr.mxu0 0.0
    %748 = vmatpush2.msra.mxu0 0.0
    %749 = vmatprep.subr.mxu0 0.0
    %750 = vmatpush2.msra.mxu0 0.0
    %751 = vmatprep.subr.mxu0 0.0
    %752 = vmatpush2.msra.mxu0 0.0
    %753 = vmatprep.subr.mxu0 0.0
    %754 = vmatpush2.msra.mxu0 0.0
    %755 = vmatprep.subr.mxu0 0.0
    %756 = vmatpush2.msra.mxu0 0.0
    %757 = vmatprep.subr.mxu0 0.0
    %758 = vmatpush2.msra.mxu0 0.0
    %759 = vmatprep.subr.mxu0 0.0
    %760 = vmatpush2.msra.mxu0 0.0
    %761 = vmatprep.mubr.f32.mxu0 0.0
    %762 = vmatmul.mubr.f32.gmra.mxu0 %v582
    %v763 = vpop.f32.mrf.mxu0
    %v764 = vadd.f32 0.0, %v763
    %v765 = vpop.f32.mrf.mxu0
    %766 = vmatprep.mubr.f32.mxu0 0.0
    %767 = vmatmul.mubr.f32.gmra.mxu0 %v585
    %v768 = vpop.f32.mrf.mxu0
    %v769 = vadd.f32 0.0, %v768
    %v770 = vpop.f32.mrf.mxu0
    %771 = vmatprep.mubr.f32.mxu0 0.0
    %772 = vmatmul.mubr.f32.gmra.mxu0 %v588
    %v773 = vpop.f32.mrf.mxu0
    %v774 = vadd.f32 0.0, %v773
    %v775 = vpop.f32.mrf.mxu0
    %776 = vdwg.mxu0
    %v777 = vmul.f32 %v764, %v391
    %v778 = vmul.f32 %v769, %v391
    %v779 = vmul.f32 %v774, %v391
    %v780 = vmul.f32 %v777, %v777
    %v781 = vmul.f32 %v778, %v778
    %v782 = vmul.f32 %v779, %v779
    %v783 = vsel %vm171, %v780, 0.0
    %784 = vadd.xlane.f32.xlu0 %v783
    %v785 = vpop.xlane.xlu0 %784
    %v786 = vsel %vm171, %v781, 0.0
    %787 = vadd.xlane.f32.xlu0 %v786
    %v788 = vpop.xlane.xlu0 %787
    %v789 = vsel %vm171, %v782, 0.0
    %790 = vadd.xlane.f32.xlu0 %v789
    %v791 = vpop.xlane.xlu0 %790
    %v792 = vmax.f32 %v785, 1e-24
    %v793 = vmax.f32 %v788, 1e-24
    %v794 = vmax.f32 %v791, 1e-24
    %v795 = vrsqrt.pop %v792
    %v796 = vrsqrt.pop %v793
    %v797 = vrsqrt.pop %v794
    %v798 = vmul.f32 %v777, %v795
    %v799 = vmul.f32 %v778, %v796
    %v800 = vmul.f32 %v779, %v797
    %v801 = vadd.f32 %v694, %v798
    %v802 = vadd.f32 %v695, %v799
    %v803 = vadd.f32 %v696, %v800
    %v804 = vld [vmem:[#allocation7] sm:$0xff]
    %v805 = vld [vmem:[#allocation7 + $0x8] sm:$0xff]
    %v806 = vld [vmem:[#allocation7 + $0x10] sm:$0xff]
    %v808 = vsel %vm580, %v804, 0
    %v811 = vsel %vm580, %v805, 0
    %v814 = vsel %vm580, %v806, 0
    %816 = vmatprep.subr.mxu0 0.0
    %817 = vmatpush1.msra.mxu0 0.0
    %818 = vmatprep.subr.mxu0 0.0
    %819 = vmatpush1.msra.mxu0 0.0
    %820 = vmatprep.subr.mxu0 0.0
    %821 = vmatpush1.msra.mxu0 0.0
    %822 = vmatprep.subr.mxu0 0.0
    %823 = vmatpush1.msra.mxu0 0.0
    %824 = vmatprep.subr.mxu0 0.0
    %825 = vmatpush1.msra.mxu0 0.0
    %826 = vmatprep.subr.mxu0 0.0
    %827 = vmatpush1.msra.mxu0 0.0
    %828 = vmatprep.subr.mxu0 0.0
    %829 = vmatpush1.msra.mxu0 0.0
    %830 = vmatprep.subr.mxu0 0.0
    %831 = vmatpush1.msra.mxu0 0.0
    %832 = vmatprep.subr.mxu0 0.0
    %833 = vmatpush1.msra.mxu0 0.0
    %834 = vmatprep.subr.mxu0 0.0
    %835 = vmatpush1.msra.mxu0 0.0
    %836 = vmatprep.subr.mxu0 0.0
    %837 = vmatpush1.msra.mxu0 0.0
    %838 = vmatprep.subr.mxu0 0.0
    %839 = vmatpush1.msra.mxu0 0.0
    %840 = vmatprep.subr.mxu0 0.0
    %841 = vmatpush1.msra.mxu0 0.0
    %842 = vmatprep.subr.mxu0 0.0
    %843 = vmatpush1.msra.mxu0 %v166
    %844 = vmatprep.subr.mxu0 0.0
    %845 = vmatpush1.msra.mxu0 %v164
    %846 = vmatprep.subr.mxu0 0.0
    %847 = vmatpush1.msra.mxu0 %v163
    %848 = vmatprep.subr.mxu0 0.0
    %849 = vmatpush2.msra.mxu0 0.0
    %850 = vmatprep.subr.mxu0 0.0
    %851 = vmatpush2.msra.mxu0 0.0
    %852 = vmatprep.subr.mxu0 0.0
    %853 = vmatpush2.msra.mxu0 0.0
    %854 = vmatprep.subr.mxu0 0.0
    %855 = vmatpush2.msra.mxu0 0.0
    %856 = vmatprep.subr.mxu0 0.0
    %857 = vmatpush2.msra.mxu0 0.0
    %858 = vmatprep.subr.mxu0 0.0
    %859 = vmatpush2.msra.mxu0 0.0
    %860 = vmatprep.subr.mxu0 0.0
    %861 = vmatpush2.msra.mxu0 0.0
    %862 = vmatprep.subr.mxu0 0.0
    %863 = vmatpush2.msra.mxu0 0.0
    %864 = vmatprep.subr.mxu0 0.0
    %865 = vmatpush2.msra.mxu0 0.0
    %866 = vmatprep.subr.mxu0 0.0
    %867 = vmatpush2.msra.mxu0 0.0
    %868 = vmatprep.subr.mxu0 0.0
    %869 = vmatpush2.msra.mxu0 0.0
    %870 = vmatprep.subr.mxu0 0.0
    %871 = vmatpush2.msra.mxu0 0.0
    %872 = vmatprep.subr.mxu0 0.0
    %873 = vmatpush2.msra.mxu0 0.0
    %874 = vmatprep.subr.mxu0 0.0
    %875 = vmatpush2.msra.mxu0 0.0
    %876 = vmatprep.subr.mxu0 0.0
    %877 = vmatpush2.msra.mxu0 0.0
    %878 = vmatprep.subr.mxu0 0.0
    %879 = vmatpush2.msra.mxu0 0.0
    %880 = vmatprep.mubr.f32.mxu0 0.0
    %881 = vmatmul.mubr.f32.gmra.mxu0 %v808
    %v882 = vpop.f32.mrf.mxu0
    %v883 = vadd.f32 0.0, %v882
    %v884 = vpop.f32.mrf.mxu0
    %885 = vmatprep.mubr.f32.mxu0 0.0
    %886 = vmatmul.mubr.f32.gmra.mxu0 %v811
    %v887 = vpop.f32.mrf.mxu0
    %v888 = vadd.f32 0.0, %v887
    %v889 = vpop.f32.mrf.mxu0
    %890 = vmatprep.mubr.f32.mxu0 0.0
    %891 = vmatmul.mubr.f32.gmra.mxu0 %v814
    %v892 = vpop.f32.mrf.mxu0
    %v893 = vadd.f32 0.0, %v892
    %v894 = vpop.f32.mrf.mxu0
    %895 = vdwg.mxu0
    %v896 = vmul.f32 %v883, %v269
    %v897 = vmul.f32 %v888, %v269
    %v898 = vmul.f32 %v893, %v269
    %v899 = vmul.f32 %v896, %v896
    %v900 = vmul.f32 %v897, %v897
    %v901 = vmul.f32 %v898, %v898
    %v902 = vsel %vm171, %v899, 0.0
    %903 = vadd.xlane.f32.xlu0 %v902
    %v904 = vpop.xlane.xlu0 %903
    %v905 = vsel %vm171, %v900, 0.0
    %906 = vadd.xlane.f32.xlu0 %v905
    %v907 = vpop.xlane.xlu0 %906
    %v908 = vsel %vm171, %v901, 0.0
    %909 = vadd.xlane.f32.xlu0 %v908
    %v910 = vpop.xlane.xlu0 %909
    %v911 = vmax.f32 %v904, 1e-24
    %v912 = vmax.f32 %v907, 1e-24
    %v913 = vmax.f32 %v910, 1e-24
    %v914 = vrsqrt.pop %v911
    %v915 = vrsqrt.pop %v912
    %v916 = vrsqrt.pop %v913
    %v917 = vmul.f32 %v896, %v914
    %v918 = vmul.f32 %v897, %v915
    %v919 = vmul.f32 %v898, %v916
    %v920 = vadd.f32 %v163, %v917
    %v921 = vadd.f32 %v164, %v918
    %v922 = vadd.f32 %v166, %v919
    %923 = vmatprep.subr.mxu0 0.0
    %924 = vmatpush1.msra.mxu0 0.0
    %925 = vmatprep.subr.mxu0 0.0
    %926 = vmatpush1.msra.mxu0 0.0
    %927 = vmatprep.subr.mxu0 0.0
    %928 = vmatpush1.msra.mxu0 0.0
    %929 = vmatprep.subr.mxu0 0.0
    %930 = vmatpush1.msra.mxu0 0.0
    %931 = vmatprep.subr.mxu0 0.0
    %932 = vmatpush1.msra.mxu0 0.0
    %933 = vmatprep.subr.mxu0 0.0
    %934 = vmatpush1.msra.mxu0 0.0
    %935 = vmatprep.subr.mxu0 0.0
    %936 = vmatpush1.msra.mxu0 0.0
    %937 = vmatprep.subr.mxu0 0.0
    %938 = vmatpush1.msra.mxu0 0.0
    %939 = vmatprep.subr.mxu0 0.0
    %940 = vmatpush1.msra.mxu0 0.0
    %941 = vmatprep.subr.mxu0 0.0
    %942 = vmatpush1.msra.mxu0 0.0
    %943 = vmatprep.subr.mxu0 0.0
    %944 = vmatpush1.msra.mxu0 0.0
    %945 = vmatprep.subr.mxu0 0.0
    %946 = vmatpush1.msra.mxu0 0.0
    %947 = vmatprep.subr.mxu0 0.0
    %948 = vmatpush1.msra.mxu0 0.0
    %949 = vmatprep.subr.mxu0 0.0
    %950 = vmatpush1.msra.mxu0 %v898
    %951 = vmatprep.subr.mxu0 0.0
    %952 = vmatpush1.msra.mxu0 %v897
    %953 = vmatprep.subr.mxu0 0.0
    %954 = vmatpush1.msra.mxu0 %v896
    %955 = vmatprep.subr.mxu0 0.0
    %956 = vmatpush2.msra.mxu0 0.0
    %957 = vmatprep.subr.mxu0 0.0
    %958 = vmatpush2.msra.mxu0 0.0
    %959 = vmatprep.subr.mxu0 0.0
    %960 = vmatpush2.msra.mxu0 0.0
    %961 = vmatprep.subr.mxu0 0.0
    %962 = vmatpush2.msra.mxu0 0.0
    %963 = vmatprep.subr.mxu0 0.0
    %964 = vmatpush2.msra.mxu0 0.0
    %965 = vmatprep.subr.mxu0 0.0
    %966 = vmatpush2.msra.mxu0 0.0
    %967 = vmatprep.subr.mxu0 0.0
    %968 = vmatpush2.msra.mxu0 0.0
    %969 = vmatprep.subr.mxu0 0.0
    %970 = vmatpush2.msra.mxu0 0.0
    %971 = vmatprep.subr.mxu0 0.0
    %972 = vmatpush2.msra.mxu0 0.0
    %973 = vmatprep.subr.mxu0 0.0
    %974 = vmatpush2.msra.mxu0 0.0
    %975 = vmatprep.subr.mxu0 0.0
    %976 = vmatpush2.msra.mxu0 0.0
    %977 = vmatprep.subr.mxu0 0.0
    %978 = vmatpush2.msra.mxu0 0.0
    %979 = vmatprep.subr.mxu0 0.0
    %980 = vmatpush2.msra.mxu0 0.0
    %981 = vmatprep.subr.mxu0 0.0
    %982 = vmatpush2.msra.mxu0 0.0
    %983 = vmatprep.subr.mxu0 0.0
    %984 = vmatpush2.msra.mxu0 0.0
    %985 = vmatprep.subr.mxu0 0.0
    %986 = vmatpush2.msra.mxu0 0.0
    %987 = vmatprep.mubr.f32.mxu0 0.0
    %988 = vmatmul.mubr.f32.gmra.mxu0 %v808
    %v989 = vpop.f32.mrf.mxu0
    %v990 = vadd.f32 0.0, %v989
    %v991 = vpop.f32.mrf.mxu0
    %992 = vmatprep.mubr.f32.mxu0 0.0
    %993 = vmatmul.mubr.f32.gmra.mxu0 %v811
    %v994 = vpop.f32.mrf.mxu0
    %v995 = vadd.f32 0.0, %v994
    %v996 = vpop.f32.mrf.mxu0
    %997 = vmatprep.mubr.f32.mxu0 0.0
    %998 = vmatmul.mubr.f32.gmra.mxu0 %v814
    %v999 = vpop.f32.mrf.mxu0
    %v1000 = vadd.f32 0.0, %v999
    %v1001 = vpop.f32.mrf.mxu0
    %1002 = vdwg.mxu0
    %v1003 = vmul.f32 %v990, %v391
    %v1004 = vmul.f32 %v995, %v391
    %v1005 = vmul.f32 %v1000, %v391
    %v1006 = vmul.f32 %v1003, %v1003
    %v1007 = vmul.f32 %v1004, %v1004
    %v1008 = vmul.f32 %v1005, %v1005
    %v1009 = vsel %vm171, %v1006, 0.0
    %1010 = vadd.xlane.f32.xlu0 %v1009
    %v1011 = vpop.xlane.xlu0 %1010
    %v1012 = vsel %vm171, %v1007, 0.0
    %1013 = vadd.xlane.f32.xlu0 %v1012
    %v1014 = vpop.xlane.xlu0 %1013
    %v1015 = vsel %vm171, %v1008, 0.0
    %1016 = vadd.xlane.f32.xlu0 %v1015
    %v1017 = vpop.xlane.xlu0 %1016
    %v1018 = vmax.f32 %v1011, 1e-24
    %v1019 = vmax.f32 %v1014, 1e-24
    %v1020 = vmax.f32 %v1017, 1e-24
    %v1021 = vrsqrt.pop %v1018
    %v1022 = vrsqrt.pop %v1019
    %v1023 = vrsqrt.pop %v1020
    %v1024 = vmul.f32 %v1003, %v1021
    %v1025 = vmul.f32 %v1004, %v1022
    %v1026 = vmul.f32 %v1005, %v1023
    %v1027 = vadd.f32 %v920, %v1024
    %v1028 = vadd.f32 %v921, %v1025
    %v1029 = vadd.f32 %v922, %v1026
    %v1030 = vlaneseq
    %v1031 = vand.u32 %v1030, 127
    %v1032 = vld [vmem:[%s10] sm:$0xf]
    %1033 = vset.pattern.permute.xlu0 0
    %1034 = vperm.xlu0 %1033, %v1032
    %v1035 = vpop.permute.xlu0 %1034
    %vm1036 = vcmp.eq.s32.totalorder %v1031, %v1035
    %v1037 = vsel %vm1036, 1, 0
    %v1038 = vcvt.s32.f32 %v1037
    %v1039 = vld [vmem:[%s11] sm:$0xf]
    %1040 = vset.pattern.permute.xlu0 0
    %1041 = vperm.xlu0 %1040, %v1039
    %v1042 = vpop.permute.xlu0 %1041
    %vm1043 = vcmp.eq.s32.totalorder %v1031, %v1042
    %v1044 = vsel %vm1043, 1, 0
    %v1045 = vcvt.s32.f32 %v1044
    %vm1046 = vcmask 64512
    %v1048 = vsel %vm1046, %v1038, 0
    %1050 = vmatprep.subr.mxu0 0.0
    %1051 = vmatpush1.msra.mxu0 0.0
    %1052 = vmatprep.subr.mxu0 0.0
    %1053 = vmatpush1.msra.mxu0 0.0
    %1054 = vmatprep.subr.mxu0 0.0
    %1055 = vmatpush1.msra.mxu0 0.0
    %1056 = vmatprep.subr.mxu0 0.0
    %1057 = vmatpush1.msra.mxu0 0.0
    %1058 = vmatprep.subr.mxu0 0.0
    %1059 = vmatpush1.msra.mxu0 0.0
    %1060 = vmatprep.subr.mxu0 0.0
    %1061 = vmatpush1.msra.mxu0 0.0
    %1062 = vmatprep.subr.mxu0 0.0
    %1063 = vmatpush1.msra.mxu0 0.0
    %1064 = vmatprep.subr.mxu0 0.0
    %1065 = vmatpush1.msra.mxu0 0.0
    %1066 = vmatprep.subr.mxu0 0.0
    %1067 = vmatpush1.msra.mxu0 0.0
    %1068 = vmatprep.subr.mxu0 0.0
    %1069 = vmatpush1.msra.mxu0 0.0
    %1070 = vmatprep.subr.mxu0 0.0
    %1071 = vmatpush1.msra.mxu0 0.0
    %1072 = vmatprep.subr.mxu0 0.0
    %1073 = vmatpush1.msra.mxu0 0.0
    %1074 = vmatprep.subr.mxu0 0.0
    %1075 = vmatpush1.msra.mxu0 0.0
    %1076 = vmatprep.subr.mxu0 0.0
    %1077 = vmatpush1.msra.mxu0 0.0
    %1078 = vmatprep.subr.mxu0 0.0
    %1079 = vmatpush1.msra.mxu0 0.0
    %1080 = vmatprep.subr.mxu0 0.0
    %1081 = vmatpush1.msra.mxu0 %v500
    %1082 = vmatprep.subr.mxu0 0.0
    %1083 = vmatpush2.msra.mxu0 0.0
    %1084 = vmatprep.subr.mxu0 0.0
    %1085 = vmatpush2.msra.mxu0 0.0
    %1086 = vmatprep.subr.mxu0 0.0
    %1087 = vmatpush2.msra.mxu0 0.0
    %1088 = vmatprep.subr.mxu0 0.0
    %1089 = vmatpush2.msra.mxu0 0.0
    %1090 = vmatprep.subr.mxu0 0.0
    %1091 = vmatpush2.msra.mxu0 0.0
    %1092 = vmatprep.subr.mxu0 0.0
    %1093 = vmatpush2.msra.mxu0 0.0
    %1094 = vmatprep.subr.mxu0 0.0
    %1095 = vmatpush2.msra.mxu0 0.0
    %1096 = vmatprep.subr.mxu0 0.0
    %1097 = vmatpush2.msra.mxu0 0.0
    %1098 = vmatprep.subr.mxu0 0.0
    %1099 = vmatpush2.msra.mxu0 0.0
    %1100 = vmatprep.subr.mxu0 0.0
    %1101 = vmatpush2.msra.mxu0 0.0
    %1102 = vmatprep.subr.mxu0 0.0
    %1103 = vmatpush2.msra.mxu0 0.0
    %1104 = vmatprep.subr.mxu0 0.0
    %1105 = vmatpush2.msra.mxu0 0.0
    %1106 = vmatprep.subr.mxu0 0.0
    %1107 = vmatpush2.msra.mxu0 0.0
    %1108 = vmatprep.subr.mxu0 0.0
    %1109 = vmatpush2.msra.mxu0 0.0
    %1110 = vmatprep.subr.mxu0 0.0
    %1111 = vmatpush2.msra.mxu0 0.0
    %1112 = vmatprep.subr.mxu0 0.0
    %1113 = vmatpush2.msra.mxu0 0.0
    %1114 = vmatprep.mubr.f32.mxu0 0.0
    %1115 = vmatmul.mubr.f32.gmra.mxu0 %v1048
    %v1116 = vpop.f32.mrf.mxu0
    %v1117 = vadd.f32 0.0, %v1116
    %v1118 = vpop.f32.mrf.mxu0
    %1119 = vdwg.mxu0
    %1120 = vmatprep.subr.mxu0 0.0
    %1121 = vmatpush1.msra.mxu0 0.0
    %1122 = vmatprep.subr.mxu0 0.0
    %1123 = vmatpush1.msra.mxu0 0.0
    %1124 = vmatprep.subr.mxu0 0.0
    %1125 = vmatpush1.msra.mxu0 0.0
    %1126 = vmatprep.subr.mxu0 0.0
    %1127 = vmatpush1.msra.mxu0 0.0
    %1128 = vmatprep.subr.mxu0 0.0
    %1129 = vmatpush1.msra.mxu0 0.0
    %1130 = vmatprep.subr.mxu0 0.0
    %1131 = vmatpush1.msra.mxu0 0.0
    %1132 = vmatprep.subr.mxu0 0.0
    %1133 = vmatpush1.msra.mxu0 0.0
    %1134 = vmatprep.subr.mxu0 0.0
    %1135 = vmatpush1.msra.mxu0 0.0
    %1136 = vmatprep.subr.mxu0 0.0
    %1137 = vmatpush1.msra.mxu0 0.0
    %1138 = vmatprep.subr.mxu0 0.0
    %1139 = vmatpush1.msra.mxu0 0.0
    %1140 = vmatprep.subr.mxu0 0.0
    %1141 = vmatpush1.msra.mxu0 0.0
    %1142 = vmatprep.subr.mxu0 0.0
    %1143 = vmatpush1.msra.mxu0 0.0
    %1144 = vmatprep.subr.mxu0 0.0
    %1145 = vmatpush1.msra.mxu0 0.0
    %1146 = vmatprep.subr.mxu0 0.0
    %1147 = vmatpush1.msra.mxu0 0.0
    %1148 = vmatprep.subr.mxu0 0.0
    %1149 = vmatpush1.msra.mxu0 0.0
    %1150 = vmatprep.subr.mxu0 0.0
    %1151 = vmatpush1.msra.mxu0 %v803
    %1152 = vmatprep.subr.mxu0 0.0
    %1153 = vmatpush2.msra.mxu0 0.0
    %1154 = vmatprep.subr.mxu0 0.0
    %1155 = vmatpush2.msra.mxu0 0.0
    %1156 = vmatprep.subr.mxu0 0.0
    %1157 = vmatpush2.msra.mxu0 0.0
    %1158 = vmatprep.subr.mxu0 0.0
    %1159 = vmatpush2.msra.mxu0 0.0
    %1160 = vmatprep.subr.mxu0 0.0
    %1161 = vmatpush2.msra.mxu0 0.0
    %1162 = vmatprep.subr.mxu0 0.0
    %1163 = vmatpush2.msra.mxu0 0.0
    %1164 = vmatprep.subr.mxu0 0.0
    %1165 = vmatpush2.msra.mxu0 0.0
    %1166 = vmatprep.subr.mxu0 0.0
    %1167 = vmatpush2.msra.mxu0 0.0
    %1168 = vmatprep.subr.mxu0 0.0
    %1169 = vmatpush2.msra.mxu0 0.0
    %1170 = vmatprep.subr.mxu0 0.0
    %1171 = vmatpush2.msra.mxu0 0.0
    %1172 = vmatprep.subr.mxu0 0.0
    %1173 = vmatpush2.msra.mxu0 0.0
    %1174 = vmatprep.subr.mxu0 0.0
    %1175 = vmatpush2.msra.mxu0 0.0
    %1176 = vmatprep.subr.mxu0 0.0
    %1177 = vmatpush2.msra.mxu0 0.0
    %1178 = vmatprep.subr.mxu0 0.0
    %1179 = vmatpush2.msra.mxu0 0.0
    %1180 = vmatprep.subr.mxu0 0.0
    %1181 = vmatpush2.msra.mxu0 0.0
    %1182 = vmatprep.subr.mxu0 0.0
    %1183 = vmatpush2.msra.mxu0 0.0
    %1184 = vmatprep.mubr.f32.mxu0 0.0
    %1185 = vmatmul.mubr.f32.gmra.mxu0 %v1048
    %v1186 = vpop.f32.mrf.mxu0
    %v1187 = vadd.f32 0.0, %v1186
    %v1188 = vpop.f32.mrf.mxu0
    %1189 = vdwg.mxu0
    %v1191 = vsel %vm1046, %v1045, 0
    %1193 = vmatprep.subr.mxu0 0.0
    %1194 = vmatpush1.msra.mxu0 0.0
    %1195 = vmatprep.subr.mxu0 0.0
    %1196 = vmatpush1.msra.mxu0 0.0
    %1197 = vmatprep.subr.mxu0 0.0
    %1198 = vmatpush1.msra.mxu0 0.0
    %1199 = vmatprep.subr.mxu0 0.0
    %1200 = vmatpush1.msra.mxu0 0.0
    %1201 = vmatprep.subr.mxu0 0.0
    %1202 = vmatpush1.msra.mxu0 0.0
    %1203 = vmatprep.subr.mxu0 0.0
    %1204 = vmatpush1.msra.mxu0 0.0
    %1205 = vmatprep.subr.mxu0 0.0
    %1206 = vmatpush1.msra.mxu0 0.0
    %1207 = vmatprep.subr.mxu0 0.0
    %1208 = vmatpush1.msra.mxu0 0.0
    %1209 = vmatprep.subr.mxu0 0.0
    %1210 = vmatpush1.msra.mxu0 0.0
    %1211 = vmatprep.subr.mxu0 0.0
    %1212 = vmatpush1.msra.mxu0 0.0
    %1213 = vmatprep.subr.mxu0 0.0
    %1214 = vmatpush1.msra.mxu0 0.0
    %1215 = vmatprep.subr.mxu0 0.0
    %1216 = vmatpush1.msra.mxu0 0.0
    %1217 = vmatprep.subr.mxu0 0.0
    %1218 = vmatpush1.msra.mxu0 0.0
    %1219 = vmatprep.subr.mxu0 0.0
    %1220 = vmatpush1.msra.mxu0 0.0
    %1221 = vmatprep.subr.mxu0 0.0
    %1222 = vmatpush1.msra.mxu0 0.0
    %1223 = vmatprep.subr.mxu0 0.0
    %1224 = vmatpush1.msra.mxu0 %v574
    %1225 = vmatprep.subr.mxu0 0.0
    %1226 = vmatpush2.msra.mxu0 0.0
    %1227 = vmatprep.subr.mxu0 0.0
    %1228 = vmatpush2.msra.mxu0 0.0
    %1229 = vmatprep.subr.mxu0 0.0
    %1230 = vmatpush2.msra.mxu0 0.0
    %1231 = vmatprep.subr.mxu0 0.0
    %1232 = vmatpush2.msra.mxu0 0.0
    %1233 = vmatprep.subr.mxu0 0.0
    %1234 = vmatpush2.msra.mxu0 0.0
    %1235 = vmatprep.subr.mxu0 0.0
    %1236 = vmatpush2.msra.mxu0 0.0
    %1237 = vmatprep.subr.mxu0 0.0
    %1238 = vmatpush2.msra.mxu0 0.0
    %1239 = vmatprep.subr.mxu0 0.0
    %1240 = vmatpush2.msra.mxu0 0.0
    %1241 = vmatprep.subr.mxu0 0.0
    %1242 = vmatpush2.msra.mxu0 0.0
    %1243 = vmatprep.subr.mxu0 0.0
    %1244 = vmatpush2.msra.mxu0 0.0
    %1245 = vmatprep.subr.mxu0 0.0
    %1246 = vmatpush2.msra.mxu0 0.0
    %1247 = vmatprep.subr.mxu0 0.0
    %1248 = vmatpush2.msra.mxu0 0.0
    %1249 = vmatprep.subr.mxu0 0.0
    %1250 = vmatpush2.msra.mxu0 0.0
    %1251 = vmatprep.subr.mxu0 0.0
    %1252 = vmatpush2.msra.mxu0 0.0
    %1253 = vmatprep.subr.mxu0 0.0
    %1254 = vmatpush2.msra.mxu0 0.0
    %1255 = vmatprep.subr.mxu0 0.0
    %1256 = vmatpush2.msra.mxu0 0.0
    %1257 = vmatprep.mubr.f32.mxu0 0.0
    %1258 = vmatmul.mubr.f32.gmra.mxu0 %v1191
    %v1259 = vpop.f32.mrf.mxu0
    %v1260 = vadd.f32 0.0, %v1259
    %v1261 = vpop.f32.mrf.mxu0
    %1262 = vdwg.mxu0
    %1263 = vmatprep.subr.mxu0 0.0
    %1264 = vmatpush1.msra.mxu0 0.0
    %1265 = vmatprep.subr.mxu0 0.0
    %1266 = vmatpush1.msra.mxu0 0.0
    %1267 = vmatprep.subr.mxu0 0.0
    %1268 = vmatpush1.msra.mxu0 0.0
    %1269 = vmatprep.subr.mxu0 0.0
    %1270 = vmatpush1.msra.mxu0 0.0
    %1271 = vmatprep.subr.mxu0 0.0
    %1272 = vmatpush1.msra.mxu0 0.0
    %1273 = vmatprep.subr.mxu0 0.0
    %1274 = vmatpush1.msra.mxu0 0.0
    %1275 = vmatprep.subr.mxu0 0.0
    %1276 = vmatpush1.msra.mxu0 0.0
    %1277 = vmatprep.subr.mxu0 0.0
    %1278 = vmatpush1.msra.mxu0 0.0
    %1279 = vmatprep.subr.mxu0 0.0
    %1280 = vmatpush1.msra.mxu0 0.0
    %1281 = vmatprep.subr.mxu0 0.0
    %1282 = vmatpush1.msra.mxu0 0.0
    %1283 = vmatprep.subr.mxu0 0.0
    %1284 = vmatpush1.msra.mxu0 0.0
    %1285 = vmatprep.subr.mxu0 0.0
    %1286 = vmatpush1.msra.mxu0 0.0
    %1287 = vmatprep.subr.mxu0 0.0
    %1288 = vmatpush1.msra.mxu0 0.0
    %1289 = vmatprep.subr.mxu0 0.0
    %1290 = vmatpush1.msra.mxu0 0.0
    %1291 = vmatprep.subr.mxu0 0.0
    %1292 = vmatpush1.msra.mxu0 0.0
    %1293 = vmatprep.subr.mxu0 0.0
    %1294 = vmatpush1.msra.mxu0 %v1029
    %1295 = vmatprep.subr.mxu0 0.0
    %1296 = vmatpush2.msra.mxu0 0.0
    %1297 = vmatprep.subr.mxu0 0.0
    %1298 = vmatpush2.msra.mxu0 0.0
    %1299 = vmatprep.subr.mxu0 0.0
    %1300 = vmatpush2.msra.mxu0 0.0
    %1301 = vmatprep.subr.mxu0 0.0
    %1302 = vmatpush2.msra.mxu0 0.0
    %1303 = vmatprep.subr.mxu0 0.0
    %1304 = vmatpush2.msra.mxu0 0.0
    %1305 = vmatprep.subr.mxu0 0.0
    %1306 = vmatpush2.msra.mxu0 0.0
    %1307 = vmatprep.subr.mxu0 0.0
    %1308 = vmatpush2.msra.mxu0 0.0
    %1309 = vmatprep.subr.mxu0 0.0
    %1310 = vmatpush2.msra.mxu0 0.0
    %1311 = vmatprep.subr.mxu0 0.0
    %1312 = vmatpush2.msra.mxu0 0.0
    %1313 = vmatprep.subr.mxu0 0.0
    %1314 = vmatpush2.msra.mxu0 0.0
    %1315 = vmatprep.subr.mxu0 0.0
    %1316 = vmatpush2.msra.mxu0 0.0
    %1317 = vmatprep.subr.mxu0 0.0
    %1318 = vmatpush2.msra.mxu0 0.0
    %1319 = vmatprep.subr.mxu0 0.0
    %1320 = vmatpush2.msra.mxu0 0.0
    %1321 = vmatprep.subr.mxu0 0.0
    %1322 = vmatpush2.msra.mxu0 0.0
    %1323 = vmatprep.subr.mxu0 0.0
    %1324 = vmatpush2.msra.mxu0 0.0
    %1325 = vmatprep.subr.mxu0 0.0
    %1326 = vmatpush2.msra.mxu0 0.0
    %1327 = vmatprep.mubr.f32.mxu0 0.0
    %1328 = vmatmul.mubr.f32.gmra.mxu0 %v1191
    %v1329 = vpop.f32.mrf.mxu0
    %v1330 = vadd.f32 0.0, %v1329
    %v1331 = vpop.f32.mrf.mxu0
    %1332 = vdwg.mxu0
    %v1334 = vsel %vm171, %v1187, 0
    %v1337 = vsel %vm171, %v801, 0
    %v1340 = vsel %vm171, %v802, 0
    %1342 = vmatprep.subr.mxu0 0.0
    %1343 = vmatpush1.xpose.msra.mxu0 0.0
    %1344 = vmatprep.subr.mxu0 0.0
    %1345 = vmatpush1.xpose.msra.mxu0 0.0
    %1346 = vmatprep.subr.mxu0 0.0
    %1347 = vmatpush1.xpose.msra.mxu0 0.0
    %1348 = vmatprep.subr.mxu0 0.0
    %1349 = vmatpush1.xpose.msra.mxu0 0.0
    %1350 = vmatprep.subr.mxu0 0.0
    %1351 = vmatpush1.xpose.msra.mxu0 0.0
    %1352 = vmatprep.subr.mxu0 0.0
    %1353 = vmatpush1.xpose.msra.mxu0 0.0
    %1354 = vmatprep.subr.mxu0 0.0
    %1355 = vmatpush1.xpose.msra.mxu0 0.0
    %1356 = vmatprep.subr.mxu0 0.0
    %1357 = vmatpush1.xpose.msra.mxu0 0.0
    %1358 = vmatprep.subr.mxu0 0.0
    %1359 = vmatpush1.xpose.msra.mxu0 0.0
    %1360 = vmatprep.subr.mxu0 0.0
    %1361 = vmatpush1.xpose.msra.mxu0 0.0
    %1362 = vmatprep.subr.mxu0 0.0
    %1363 = vmatpush1.xpose.msra.mxu0 0.0
    %1364 = vmatprep.subr.mxu0 0.0
    %1365 = vmatpush1.xpose.msra.mxu0 0.0
    %1366 = vmatprep.subr.mxu0 0.0
    %1367 = vmatpush1.xpose.msra.mxu0 0.0
    %1368 = vmatprep.subr.mxu0 0.0
    %1369 = vmatpush1.xpose.msra.mxu0 0.0
    %1370 = vmatprep.subr.mxu0 0.0
    %1371 = vmatpush1.xpose.msra.mxu0 %v1340
    %1372 = vmatprep.subr.mxu0 0.0
    %1373 = vmatpush1.xpose.msra.mxu0 %v1337
    %1374 = vmatprep.subr.mxu0 0.0
    %1375 = vmatpush2.xpose.msra.mxu0 0.0
    %1376 = vmatprep.subr.mxu0 0.0
    %1377 = vmatpush2.xpose.msra.mxu0 0.0
    %1378 = vmatprep.subr.mxu0 0.0
    %1379 = vmatpush2.xpose.msra.mxu0 0.0
    %1380 = vmatprep.subr.mxu0 0.0
    %1381 = vmatpush2.xpose.msra.mxu0 0.0
    %1382 = vmatprep.subr.mxu0 0.0
    %1383 = vmatpush2.xpose.msra.mxu0 0.0
    %1384 = vmatprep.subr.mxu0 0.0
    %1385 = vmatpush2.xpose.msra.mxu0 0.0
    %1386 = vmatprep.subr.mxu0 0.0
    %1387 = vmatpush2.xpose.msra.mxu0 0.0
    %1388 = vmatprep.subr.mxu0 0.0
    %1389 = vmatpush2.xpose.msra.mxu0 0.0
    %1390 = vmatprep.subr.mxu0 0.0
    %1391 = vmatpush2.xpose.msra.mxu0 0.0
    %1392 = vmatprep.subr.mxu0 0.0
    %1393 = vmatpush2.xpose.msra.mxu0 0.0
    %1394 = vmatprep.subr.mxu0 0.0
    %1395 = vmatpush2.xpose.msra.mxu0 0.0
    %1396 = vmatprep.subr.mxu0 0.0
    %1397 = vmatpush2.xpose.msra.mxu0 0.0
    %1398 = vmatprep.subr.mxu0 0.0
    %1399 = vmatpush2.xpose.msra.mxu0 0.0
    %1400 = vmatprep.subr.mxu0 0.0
    %1401 = vmatpush2.xpose.msra.mxu0 0.0
    %1402 = vmatprep.subr.mxu0 0.0
    %1403 = vmatpush2.xpose.msra.mxu0 0.0
    %1404 = vmatprep.subr.mxu0 0.0
    %1405 = vmatpush2.xpose.msra.mxu0 0.0
    %1406 = vmatprep.mubr.f32.mxu0 0.0
    %1407 = vmatmul.mubr.f32.gmra.mxu0 %v1334
    %v1408 = vpop.f32.mrf.mxu0
    %v1409 = vadd.f32 0.0, %v1408
    %v1410 = vpop.f32.mrf.mxu0
    %1411 = vdwg.mxu0
    %v1413 = vsel %vm171, %v1117, 0
    %v1416 = vsel %vm171, %v424, 0
    %v1419 = vsel %vm171, %v425, 0
    %1421 = vmatprep.subr.mxu0 0.0
    %1422 = vmatpush1.xpose.msra.mxu0 0.0
    %1423 = vmatprep.subr.mxu0 0.0
    %1424 = vmatpush1.xpose.msra.mxu0 0.0
    %1425 = vmatprep.subr.mxu0 0.0
    %1426 = vmatpush1.xpose.msra.mxu0 0.0
    %1427 = vmatprep.subr.mxu0 0.0
    %1428 = vmatpush1.xpose.msra.mxu0 0.0
    %1429 = vmatprep.subr.mxu0 0.0
    %1430 = vmatpush1.xpose.msra.mxu0 0.0
    %1431 = vmatprep.subr.mxu0 0.0
    %1432 = vmatpush1.xpose.msra.mxu0 0.0
    %1433 = vmatprep.subr.mxu0 0.0
    %1434 = vmatpush1.xpose.msra.mxu0 0.0
    %1435 = vmatprep.subr.mxu0 0.0
    %1436 = vmatpush1.xpose.msra.mxu0 0.0
    %1437 = vmatprep.subr.mxu0 0.0
    %1438 = vmatpush1.xpose.msra.mxu0 0.0
    %1439 = vmatprep.subr.mxu0 0.0
    %1440 = vmatpush1.xpose.msra.mxu0 0.0
    %1441 = vmatprep.subr.mxu0 0.0
    %1442 = vmatpush1.xpose.msra.mxu0 0.0
    %1443 = vmatprep.subr.mxu0 0.0
    %1444 = vmatpush1.xpose.msra.mxu0 0.0
    %1445 = vmatprep.subr.mxu0 0.0
    %1446 = vmatpush1.xpose.msra.mxu0 0.0
    %1447 = vmatprep.subr.mxu0 0.0
    %1448 = vmatpush1.xpose.msra.mxu0 0.0
    %1449 = vmatprep.subr.mxu0 0.0
    %1450 = vmatpush1.xpose.msra.mxu0 %v1419
    %1451 = vmatprep.subr.mxu0 0.0
    %1452 = vmatpush1.xpose.msra.mxu0 %v1416
    %1453 = vmatprep.subr.mxu0 0.0
    %1454 = vmatpush2.xpose.msra.mxu0 0.0
    %1455 = vmatprep.subr.mxu0 0.0
    %1456 = vmatpush2.xpose.msra.mxu0 0.0
    %1457 = vmatprep.subr.mxu0 0.0
    %1458 = vmatpush2.xpose.msra.mxu0 0.0
    %1459 = vmatprep.subr.mxu0 0.0
    %1460 = vmatpush2.xpose.msra.mxu0 0.0
    %1461 = vmatprep.subr.mxu0 0.0
    %1462 = vmatpush2.xpose.msra.mxu0 0.0
    %1463 = vmatprep.subr.mxu0 0.0
    %1464 = vmatpush2.xpose.msra.mxu0 0.0
    %1465 = vmatprep.subr.mxu0 0.0
    %1466 = vmatpush2.xpose.msra.mxu0 0.0
    %1467 = vmatprep.subr.mxu0 0.0
    %1468 = vmatpush2.xpose.msra.mxu0 0.0
    %1469 = vmatprep.subr.mxu0 0.0
    %1470 = vmatpush2.xpose.msra.mxu0 0.0
    %1471 = vmatprep.subr.mxu0 0.0
    %1472 = vmatpush2.xpose.msra.mxu0 0.0
    %1473 = vmatprep.subr.mxu0 0.0
    %1474 = vmatpush2.xpose.msra.mxu0 0.0
    %1475 = vmatprep.subr.mxu0 0.0
    %1476 = vmatpush2.xpose.msra.mxu0 0.0
    %1477 = vmatprep.subr.mxu0 0.0
    %1478 = vmatpush2.xpose.msra.mxu0 0.0
    %1479 = vmatprep.subr.mxu0 0.0
    %1480 = vmatpush2.xpose.msra.mxu0 0.0
    %1481 = vmatprep.subr.mxu0 0.0
    %1482 = vmatpush2.xpose.msra.mxu0 0.0
    %1483 = vmatprep.subr.mxu0 0.0
    %1484 = vmatpush2.xpose.msra.mxu0 0.0
    %1485 = vmatprep.mubr.f32.mxu0 0.0
    %1486 = vmatmul.mubr.f32.gmra.mxu0 %v1413
    %v1487 = vpop.f32.mrf.mxu0
    %v1488 = vadd.f32 %v1409, %v1487
    %v1489 = vpop.f32.mrf.mxu0
    %1490 = vdwg.mxu0
    %v1492 = vsel %vm171, %v1330, 0
    %v1495 = vsel %vm171, %v1027, 0
    %v1498 = vsel %vm171, %v1028, 0
    %1500 = vmatprep.subr.mxu0 0.0
    %1501 = vmatpush1.xpose.msra.mxu0 0.0
    %1502 = vmatprep.subr.mxu0 0.0
    %1503 = vmatpush1.xpose.msra.mxu0 0.0
    %1504 = vmatprep.subr.mxu0 0.0
    %1505 = vmatpush1.xpose.msra.mxu0 0.0
    %1506 = vmatprep.subr.mxu0 0.0
    %1507 = vmatpush1.xpose.msra.mxu0 0.0
    %1508 = vmatprep.subr.mxu0 0.0
    %1509 = vmatpush1.xpose.msra.mxu0 0.0
    %1510 = vmatprep.subr.mxu0 0.0
    %1511 = vmatpush1.xpose.msra.mxu0 0.0
    %1512 = vmatprep.subr.mxu0 0.0
    %1513 = vmatpush1.xpose.msra.mxu0 0.0
    %1514 = vmatprep.subr.mxu0 0.0
    %1515 = vmatpush1.xpose.msra.mxu0 0.0
    %1516 = vmatprep.subr.mxu0 0.0
    %1517 = vmatpush1.xpose.msra.mxu0 0.0
    %1518 = vmatprep.subr.mxu0 0.0
    %1519 = vmatpush1.xpose.msra.mxu0 0.0
    %1520 = vmatprep.subr.mxu0 0.0
    %1521 = vmatpush1.xpose.msra.mxu0 0.0
    %1522 = vmatprep.subr.mxu0 0.0
    %1523 = vmatpush1.xpose.msra.mxu0 0.0
    %1524 = vmatprep.subr.mxu0 0.0
    %1525 = vmatpush1.xpose.msra.mxu0 0.0
    %1526 = vmatprep.subr.mxu0 0.0
    %1527 = vmatpush1.xpose.msra.mxu0 0.0
    %1528 = vmatprep.subr.mxu0 0.0
    %1529 = vmatpush1.xpose.msra.mxu0 %v1498
    %1530 = vmatprep.subr.mxu0 0.0
    %1531 = vmatpush1.xpose.msra.mxu0 %v1495
    %1532 = vmatprep.subr.mxu0 0.0
    %1533 = vmatpush2.xpose.msra.mxu0 0.0
    %1534 = vmatprep.subr.mxu0 0.0
    %1535 = vmatpush2.xpose.msra.mxu0 0.0
    %1536 = vmatprep.subr.mxu0 0.0
    %1537 = vmatpush2.xpose.msra.mxu0 0.0
    %1538 = vmatprep.subr.mxu0 0.0
    %1539 = vmatpush2.xpose.msra.mxu0 0.0
    %1540 = vmatprep.subr.mxu0 0.0
    %1541 = vmatpush2.xpose.msra.mxu0 0.0
    %1542 = vmatprep.subr.mxu0 0.0
    %1543 = vmatpush2.xpose.msra.mxu0 0.0
    %1544 = vmatprep.subr.mxu0 0.0
    %1545 = vmatpush2.xpose.msra.mxu0 0.0
    %1546 = vmatprep.subr.mxu0 0.0
    %1547 = vmatpush2.xpose.msra.mxu0 0.0
    %1548 = vmatprep.subr.mxu0 0.0
    %1549 = vmatpush2.xpose.msra.mxu0 0.0
    %1550 = vmatprep.subr.mxu0 0.0
    %1551 = vmatpush2.xpose.msra.mxu0 0.0
    %1552 = vmatprep.subr.mxu0 0.0
    %1553 = vmatpush2.xpose.msra.mxu0 0.0
    %1554 = vmatprep.subr.mxu0 0.0
    %1555 = vmatpush2.xpose.msra.mxu0 0.0
    %1556 = vmatprep.subr.mxu0 0.0
    %1557 = vmatpush2.xpose.msra.mxu0 0.0
    %1558 = vmatprep.subr.mxu0 0.0
    %1559 = vmatpush2.xpose.msra.mxu0 0.0
    %1560 = vmatprep.subr.mxu0 0.0
    %1561 = vmatpush2.xpose.msra.mxu0 0.0
    %1562 = vmatprep.subr.mxu0 0.0
    %1563 = vmatpush2.xpose.msra.mxu0 0.0
    %1564 = vmatprep.mubr.f32.mxu0 0.0
    %1565 = vmatmul.mubr.f32.gmra.mxu0 %v1492
    %v1566 = vpop.f32.mrf.mxu0
    %v1567 = vadd.f32 0.0, %v1566
    %v1568 = vpop.f32.mrf.mxu0
    %1569 = vdwg.mxu0
    %v1571 = vsel %vm171, %v1260, 0
    %v1574 = vsel %vm171, %v426, 0
    %v1577 = vsel %vm171, %v427, 0
    %1579 = vmatprep.subr.mxu0 0.0
    %1580 = vmatpush1.xpose.msra.mxu0 0.0
    %1581 = vmatprep.subr.mxu0 0.0
    %1582 = vmatpush1.xpose.msra.mxu0 0.0
    %1583 = vmatprep.subr.mxu0 0.0
    %1584 = vmatpush1.xpose.msra.mxu0 0.0
    %1585 = vmatprep.subr.mxu0 0.0
    %1586 = vmatpush1.xpose.msra.mxu0 0.0
    %1587 = vmatprep.subr.mxu0 0.0
    %1588 = vmatpush1.xpose.msra.mxu0 0.0
    %1589 = vmatprep.subr.mxu0 0.0
    %1590 = vmatpush1.xpose.msra.mxu0 0.0
    %1591 = vmatprep.subr.mxu0 0.0
    %1592 = vmatpush1.xpose.msra.mxu0 0.0
    %1593 = vmatprep.subr.mxu0 0.0
    %1594 = vmatpush1.xpose.msra.mxu0 0.0
    %1595 = vmatprep.subr.mxu0 0.0
    %1596 = vmatpush1.xpose.msra.mxu0 0.0
    %1597 = vmatprep.subr.mxu0 0.0
    %1598 = vmatpush1.xpose.msra.mxu0 0.0
    %1599 = vmatprep.subr.mxu0 0.0
    %1600 = vmatpush1.xpose.msra.mxu0 0.0
    %1601 = vmatprep.subr.mxu0 0.0
    %1602 = vmatpush1.xpose.msra.mxu0 0.0
    %1603 = vmatprep.subr.mxu0 0.0
    %1604 = vmatpush1.xpose.msra.mxu0 0.0
    %1605 = vmatprep.subr.mxu0 0.0
    %1606 = vmatpush1.xpose.msra.mxu0 0.0
    %1607 = vmatprep.subr.mxu0 0.0
    %1608 = vmatpush1.xpose.msra.mxu0 %v1577
    %1609 = vmatprep.subr.mxu0 0.0
    %1610 = vmatpush1.xpose.msra.mxu0 %v1574
    %1611 = vmatprep.subr.mxu0 0.0
    %1612 = vmatpush2.xpose.msra.mxu0 0.0
    %1613 = vmatprep.subr.mxu0 0.0
    %1614 = vmatpush2.xpose.msra.mxu0 0.0
    %1615 = vmatprep.subr.mxu0 0.0
    %1616 = vmatpush2.xpose.msra.mxu0 0.0
    %1617 = vmatprep.subr.mxu0 0.0
    %1618 = vmatpush2.xpose.msra.mxu0 0.0
    %1619 = vmatprep.subr.mxu0 0.0
    %1620 = vmatpush2.xpose.msra.mxu0 0.0
    %1621 = vmatprep.subr.mxu0 0.0
    %1622 = vmatpush2.xpose.msra.mxu0 0.0
    %1623 = vmatprep.subr.mxu0 0.0
    %1624 = vmatpush2.xpose.msra.mxu0 0.0
    %1625 = vmatprep.subr.mxu0 0.0
    %1626 = vmatpush2.xpose.msra.mxu0 0.0
    %1627 = vmatprep.subr.mxu0 0.0
    %1628 = vmatpush2.xpose.msra.mxu0 0.0
    %1629 = vmatprep.subr.mxu0 0.0
    %1630 = vmatpush2.xpose.msra.mxu0 0.0
    %1631 = vmatprep.subr.mxu0 0.0
    %1632 = vmatpush2.xpose.msra.mxu0 0.0
    %1633 = vmatprep.subr.mxu0 0.0
    %1634 = vmatpush2.xpose.msra.mxu0 0.0
    %1635 = vmatprep.subr.mxu0 0.0
    %1636 = vmatpush2.xpose.msra.mxu0 0.0
    %1637 = vmatprep.subr.mxu0 0.0
    %1638 = vmatpush2.xpose.msra.mxu0 0.0
    %1639 = vmatprep.subr.mxu0 0.0
    %1640 = vmatpush2.xpose.msra.mxu0 0.0
    %1641 = vmatprep.subr.mxu0 0.0
    %1642 = vmatpush2.xpose.msra.mxu0 0.0
    %1643 = vmatprep.mubr.f32.mxu0 0.0
    %1644 = vmatmul.mubr.f32.gmra.mxu0 %v1571
    %v1645 = vpop.f32.mrf.mxu0
    %v1646 = vadd.f32 %v1567, %v1645
    %v1647 = vpop.f32.mrf.mxu0
    %1648 = vdwg.mxu0
    %v1649 = vld [vmem:[%s14] sm:$0xf]
    %v1650 = vld [vmem:[%s16] sm:$0xf]
    %v1651 = vld [vmem:[%s12] sm:$0xf]
    %v1652 = vcvt.s32.f32 %v1031
    %v1653 = vcvt.s32.f32 %v1651
    %1655 = vset.pattern.permute.xlu0 0
    %1656 = vperm.xlu0 %1655, %v1653
    %v1657 = vpop.permute.xlu0 %1656
    %vm1659 = vcmp.eq.f32.partialorder %v1652, %v1657
    %v1660 = vsel %vm1659, 1, 0
    %v1661 = vcvt.s32.f32 %v1660
    %v1662 = vmul.f32 %v1488, %v1661
    %vm1663 = vcmask 125952
    %v1664 = vsel %vm1663, %v1662, 0.0
    %1665 = vadd.xlane.f32.xlu0 %v1664
    %v1666 = vpop.xlane.xlu0 %1665
    %v1667 = vxor.u32 %v1488, 2147483648
    %v1668 = vmul.f32 %v1667, 1.442695
    %v1669 = vpow.pop %v1668
    %v1670 = vadd.f32 %v1669, 1.0
    %v1671 = vrcp.pop %v1670
    %v1672 = vmul.f32 1.0, %v1671
    %v1673 = vmul.f32 %v1672, %v1649
    %v1674 = vmax.f32 %v1673, 1e-30
    %v1675 = vlog2.pop %v1674
    %v1676 = vmul.f32 %v1675, 0.6931472
    %v1677 = vadd.f32 %v1676, %v1650
    %v1678 = vsel %vm1663, %v1677, -inf
    %1679 = vmax.xlane.f32.xlu0 %v1678
    %v1680 = vpop.xlane.xlu0 %1679
    %vm1681 = vcmp.ge.f32.partialorder %v1677, %v1680
    %v1682 = vsel %vm1681, %v1652, 16.0
    %v1683 = vsel %vm1663, %v1682, inf
    %1684 = vmin.xlane.f32.xlu0 %v1683
    %v1685 = vpop.xlane.xlu0 %1684
    %vm1686 = vcmp.eq.f32.partialorder %v1652, %v1685
    %v1687 = vsel %vm1686, 1, 0
    %v1688 = vcvt.s32.f32 %v1687
    %v1689 = vmul.f32 %v1488, %v1688
    %v1690 = vsel %vm1663, %v1689, 0.0
    %1691 = vadd.xlane.f32.xlu0 %v1690
    %v1692 = vpop.xlane.xlu0 %1691
    %vm1693 = vcmp.gt.f32.partialorder %v1688, 0.5
    %v1694 = vsel %vm1693, -1e+30, %v1677
    %v1695 = vsel %vm1663, %v1694, -inf
    %1696 = vmax.xlane.f32.xlu0 %v1695
    %v1697 = vpop.xlane.xlu0 %1696
    %vm1698 = vcmp.ge.f32.partialorder %v1694, %v1697
    %v1699 = vsel %vm1698, %v1652, 16.0
    %v1700 = vsel %vm1663, %v1699, inf
    %1701 = vmin.xlane.f32.xlu0 %v1700
    %v1702 = vpop.xlane.xlu0 %1701
    %vm1703 = vcmp.eq.f32.partialorder %v1652, %v1702
    %v1704 = vsel %vm1703, 1, 0
    %v1705 = vcvt.s32.f32 %v1704
    %v1706 = vmul.f32 %v1488, %v1705
    %v1707 = vsel %vm1663, %v1706, 0.0
    %1708 = vadd.xlane.f32.xlu0 %v1707
    %v1709 = vpop.xlane.xlu0 %1708
    %v1710 = vld [vmem:[%s15] sm:$0xf]
    %v1711 = vld [vmem:[%s17] sm:$0xf]
    %v1712 = vld [vmem:[%s13] sm:$0xf]
    %v1713 = vcvt.s32.f32 %v1712
    %1715 = vset.pattern.permute.xlu0 0
    %1716 = vperm.xlu0 %1715, %v1713
    %v1717 = vpop.permute.xlu0 %1716
    %vm1719 = vcmp.eq.f32.partialorder %v1652, %v1717
    %v1720 = vsel %vm1719, 1, 0
    %v1721 = vcvt.s32.f32 %v1720
    %v1722 = vmul.f32 %v1646, %v1721
    %v1723 = vsel %vm1663, %v1722, 0.0
    %1724 = vadd.xlane.f32.xlu0 %v1723
    %v1725 = vpop.xlane.xlu0 %1724
    %v1726 = vxor.u32 %v1646, 2147483648
    %v1727 = vmul.f32 %v1726, 1.442695
    %v1728 = vpow.pop %v1727
    %v1729 = vadd.f32 %v1728, 1.0
    %v1730 = vrcp.pop %v1729
    %v1731 = vmul.f32 1.0, %v1730
    %v1732 = vmul.f32 %v1731, %v1710
    %v1733 = vmax.f32 %v1732, 1e-30
    %v1734 = vlog2.pop %v1733
    %v1735 = vmul.f32 %v1734, 0.6931472
    %v1736 = vadd.f32 %v1735, %v1711
    %v1737 = vsel %vm1663, %v1736, -inf
    %1738 = vmax.xlane.f32.xlu0 %v1737
    %v1739 = vpop.xlane.xlu0 %1738
    %vm1740 = vcmp.ge.f32.partialorder %v1736, %v1739
    %v1741 = vsel %vm1740, %v1652, 16.0
    %v1742 = vsel %vm1663, %v1741, inf
    %1743 = vmin.xlane.f32.xlu0 %v1742
    %v1744 = vpop.xlane.xlu0 %1743
    %vm1745 = vcmp.eq.f32.partialorder %v1652, %v1744
    %v1746 = vsel %vm1745, 1, 0
    %v1747 = vcvt.s32.f32 %v1746
    %v1748 = vmul.f32 %v1646, %v1747
    %v1749 = vsel %vm1663, %v1748, 0.0
    %1750 = vadd.xlane.f32.xlu0 %v1749
    %v1751 = vpop.xlane.xlu0 %1750
    %vm1752 = vcmp.gt.f32.partialorder %v1747, 0.5
    %v1753 = vsel %vm1752, -1e+30, %v1736
    %v1754 = vsel %vm1663, %v1753, -inf
    %1755 = vmax.xlane.f32.xlu0 %v1754
    %v1756 = vpop.xlane.xlu0 %1755
    %vm1757 = vcmp.ge.f32.partialorder %v1753, %v1756
    %v1758 = vsel %vm1757, %v1652, 16.0
    %v1759 = vsel %vm1663, %v1758, inf
    %1760 = vmin.xlane.f32.xlu0 %v1759
    %v1761 = vpop.xlane.xlu0 %1760
    %vm1762 = vcmp.eq.f32.partialorder %v1652, %v1761
    %v1763 = vsel %vm1762, 1, 0
    %v1764 = vcvt.s32.f32 %v1763
    %v1765 = vmul.f32 %v1646, %v1764
    %v1766 = vsel %vm1663, %v1765, 0.0
    %1767 = vadd.xlane.f32.xlu0 %v1766
    %v1768 = vpop.xlane.xlu0 %1767
    %v1769 = vsub.f32 %v1666, %v1692
    %v1770 = vsub.f32 0.0, %v1769
    %v1771 = vmax.f32 %v1770, 0.0
    %v1772 = vand.u32 2147483647, %v1769
    %v1773 = vsub.f32 0.0, %v1772
    %v1774 = vmul.f32 %v1773, 1.442695
    %v1775 = vpow.pop %v1774
    %v1776 = vadd.f32 %v1775, 1.0
    %v1777 = vlog2.pop %v1776
    %v1778 = vmul.f32 %v1777, 0.6931472
    %v1779 = vadd.f32 %v1771, %v1778
    %v1780 = vsub.f32 0.0, %v1779
    %vm1781 = vcmask 3072
    %v1782 = vsel %vm1781, %v1780, 0.0
    %1783 = vadd.xlane.f32.xlu0 %v1782
    %v1784 = vpop.xlane.xlu0 %1783
    %v1785 = vrot.slane %v1784, 4
    %v1786 = vadd.f32 %v1784, %v1785
    %v1787 = vrot.slane %v1786, 2
    %v1788 = vadd.f32 %v1786, %v1787
    %v1789 = vrot.slane %v1788, 1
    %v1790 = vadd.f32 %v1788, %v1789
    %s1791 = vtos %v1790
    %s1792 = sadd.f32 %s1791, 0.0
    %v1793 = vsub.f32 %v1666, %v1709
    %v1794 = vsub.f32 0.0, %v1793
    %v1795 = vmax.f32 %v1794, 0.0
    %v1796 = vand.u32 2147483647, %v1793
    %v1797 = vsub.f32 0.0, %v1796
    %v1798 = vmul.f32 %v1797, 1.442695
    %v1799 = vpow.pop %v1798
    %v1800 = vadd.f32 %v1799, 1.0
    %v1801 = vlog2.pop %v1800
    %v1802 = vmul.f32 %v1801, 0.6931472
    %v1803 = vadd.f32 %v1795, %v1802
    %v1804 = vsub.f32 0.0, %v1803
    %v1805 = vsel %vm1781, %v1804, 0.0
    %1806 = vadd.xlane.f32.xlu0 %v1805
    %v1807 = vpop.xlane.xlu0 %1806
    %v1808 = vrot.slane %v1807, 4
    %v1809 = vadd.f32 %v1807, %v1808
    %v1810 = vrot.slane %v1809, 2
    %v1811 = vadd.f32 %v1809, %v1810
    %v1812 = vrot.slane %v1811, 1
    %v1813 = vadd.f32 %v1811, %v1812
    %s1814 = vtos %v1813
    %s1815 = sadd.f32 %s1792, %s1814
    %s1816 = ssub.f32 0.0, %s1815
    %v1817 = vrcp.pop 8.0
    %s1818 = vtos %v1817
    %s1819 = smul.f32 %s1816, %s1818
    %s1820 = smul.f32 %s1819, 0.5
    %v1821 = vsub.f32 %v1725, %v1751
    %v1822 = vsub.f32 0.0, %v1821
    %v1823 = vmax.f32 %v1822, 0.0
    %v1824 = vand.u32 2147483647, %v1821
    %v1825 = vsub.f32 0.0, %v1824
    %v1826 = vmul.f32 %v1825, 1.442695
    %v1827 = vpow.pop %v1826
    %v1828 = vadd.f32 %v1827, 1.0
    %v1829 = vlog2.pop %v1828
    %v1830 = vmul.f32 %v1829, 0.6931472
    %v1831 = vadd.f32 %v1823, %v1830
    %v1832 = vsub.f32 0.0, %v1831
    %v1833 = vsel %vm1781, %v1832, 0.0
    %1834 = vadd.xlane.f32.xlu0 %v1833
    %v1835 = vpop.xlane.xlu0 %1834
    %v1836 = vrot.slane %v1835, 4
    %v1837 = vadd.f32 %v1835, %v1836
    %v1838 = vrot.slane %v1837, 2
    %v1839 = vadd.f32 %v1837, %v1838
    %v1840 = vrot.slane %v1839, 1
    %v1841 = vadd.f32 %v1839, %v1840
    %s1842 = vtos %v1841
    %s1843 = sadd.f32 %s1842, 0.0
    %v1844 = vsub.f32 %v1725, %v1768
    %v1845 = vsub.f32 0.0, %v1844
    %v1846 = vmax.f32 %v1845, 0.0
    %v1847 = vand.u32 2147483647, %v1844
    %v1848 = vsub.f32 0.0, %v1847
    %v1849 = vmul.f32 %v1848, 1.442695
    %v1850 = vpow.pop %v1849
    %v1851 = vadd.f32 %v1850, 1.0
    %v1852 = vlog2.pop %v1851
    %v1853 = vmul.f32 %v1852, 0.6931472
    %v1854 = vadd.f32 %v1846, %v1853
    %v1855 = vsub.f32 0.0, %v1854
    %v1856 = vsel %vm1781, %v1855, 0.0
    %1857 = vadd.xlane.f32.xlu0 %v1856
    %v1858 = vpop.xlane.xlu0 %1857
    %v1859 = vrot.slane %v1858, 4
    %v1860 = vadd.f32 %v1858, %v1859
    %v1861 = vrot.slane %v1860, 2
    %v1862 = vadd.f32 %v1860, %v1861
    %v1863 = vrot.slane %v1862, 1
    %v1864 = vadd.f32 %v1862, %v1863
    %s1865 = vtos %v1864
    %s1866 = sadd.f32 %s1843, %s1865
    %s1867 = ssub.f32 0.0, %s1866
    %v1868 = vrcp.pop 8.0
    %s1869 = vtos %v1868
    %s1870 = smul.f32 %s1867, %s1869
    %s1871 = smul.f32 %s1870, 0.5
    %s1872 = sadd.f32 %s1820, %s1871
    %1873 = vset.pattern.permute.xlu0 0
    %1874 = vperm.xlu0 %1873, %v1651
    %v1875 = vpop.permute.xlu0 %1874
    %vm1876 = vcmp.eq.s32.totalorder %v1031, %v1875
    %v1877 = vsel %vm1876, 1, 0
    %v1878 = vcvt.s32.f32 %v1877
    %1879 = vset.pattern.permute.xlu0 0
    %1880 = vperm.xlu0 %1879, %v1712
    %v1881 = vpop.permute.xlu0 %1880
    %vm1882 = vcmp.eq.s32.totalorder %v1031, %v1881
    %v1883 = vsel %vm1882, 1, 0
    %v1884 = vcvt.s32.f32 %v1883
    %v1886 = vsel %vm429, %v1878, 0
    %1888 = vmatprep.subr.mxu0 0.0
    %1889 = vmatpush1.msra.mxu0 0.0
    %1890 = vmatprep.subr.mxu0 0.0
    %1891 = vmatpush1.msra.mxu0 0.0
    %1892 = vmatprep.subr.mxu0 0.0
    %1893 = vmatpush1.msra.mxu0 0.0
    %1894 = vmatprep.subr.mxu0 0.0
    %1895 = vmatpush1.msra.mxu0 0.0
    %1896 = vmatprep.subr.mxu0 0.0
    %1897 = vmatpush1.msra.mxu0 0.0
    %1898 = vmatprep.subr.mxu0 0.0
    %1899 = vmatpush1.msra.mxu0 0.0
    %1900 = vmatprep.subr.mxu0 0.0
    %1901 = vmatpush1.msra.mxu0 0.0
    %1902 = vmatprep.subr.mxu0 0.0
    %1903 = vmatpush1.msra.mxu0 0.0
    %1904 = vmatprep.subr.mxu0 0.0
    %1905 = vmatpush1.msra.mxu0 0.0
    %1906 = vmatprep.subr.mxu0 0.0
    %1907 = vmatpush1.msra.mxu0 0.0
    %1908 = vmatprep.subr.mxu0 0.0
    %1909 = vmatpush1.msra.mxu0 0.0
    %1910 = vmatprep.subr.mxu0 0.0
    %1911 = vmatpush1.msra.mxu0 0.0
    %1912 = vmatprep.subr.mxu0 0.0
    %1913 = vmatpush1.msra.mxu0 0.0
    %1914 = vmatprep.subr.mxu0 0.0
    %1915 = vmatpush1.msra.mxu0 0.0
    %1916 = vmatprep.subr.mxu0 0.0
    %1917 = vmatpush1.msra.mxu0 %v425
    %1918 = vmatprep.subr.mxu0 0.0
    %1919 = vmatpush1.msra.mxu0 %v424
    %1920 = vmatprep.subr.mxu0 0.0
    %1921 = vmatpush2.msra.mxu0 0.0
    %1922 = vmatprep.subr.mxu0 0.0
    %1923 = vmatpush2.msra.mxu0 0.0
    %1924 = vmatprep.subr.mxu0 0.0
    %1925 = vmatpush2.msra.mxu0 0.0
    %1926 = vmatprep.subr.mxu0 0.0
    %1927 = vmatpush2.msra.mxu0 0.0
    %1928 = vmatprep.subr.mxu0 0.0
    %1929 = vmatpush2.msra.mxu0 0.0
    %1930 = vmatprep.subr.mxu0 0.0
    %1931 = vmatpush2.msra.mxu0 0.0
    %1932 = vmatprep.subr.mxu0 0.0
    %1933 = vmatpush2.msra.mxu0 0.0
    %1934 = vmatprep.subr.mxu0 0.0
    %1935 = vmatpush2.msra.mxu0 0.0
    %1936 = vmatprep.subr.mxu0 0.0
    %1937 = vmatpush2.msra.mxu0 0.0
    %1938 = vmatprep.subr.mxu0 0.0
    %1939 = vmatpush2.msra.mxu0 0.0
    %1940 = vmatprep.subr.mxu0 0.0
    %1941 = vmatpush2.msra.mxu0 0.0
    %1942 = vmatprep.subr.mxu0 0.0
    %1943 = vmatpush2.msra.mxu0 0.0
    %1944 = vmatprep.subr.mxu0 0.0
    %1945 = vmatpush2.msra.mxu0 0.0
    %1946 = vmatprep.subr.mxu0 0.0
    %1947 = vmatpush2.msra.mxu0 0.0
    %1948 = vmatprep.subr.mxu0 0.0
    %1949 = vmatpush2.msra.mxu0 0.0
    %1950 = vmatprep.subr.mxu0 0.0
    %1951 = vmatpush2.msra.mxu0 0.0
    %1952 = vmatprep.mubr.f32.mxu0 0.0
    %1953 = vmatmul.mubr.f32.gmra.mxu0 %v1886
    %v1954 = vpop.f32.mrf.mxu0
    %v1955 = vadd.f32 0.0, %v1954
    %v1956 = vpop.f32.mrf.mxu0
    %1957 = vdwg.mxu0
    %1958 = vmatprep.subr.mxu0 0.0
    %1959 = vmatpush1.msra.mxu0 0.0
    %1960 = vmatprep.subr.mxu0 0.0
    %1961 = vmatpush1.msra.mxu0 0.0
    %1962 = vmatprep.subr.mxu0 0.0
    %1963 = vmatpush1.msra.mxu0 0.0
    %1964 = vmatprep.subr.mxu0 0.0
    %1965 = vmatpush1.msra.mxu0 0.0
    %1966 = vmatprep.subr.mxu0 0.0
    %1967 = vmatpush1.msra.mxu0 0.0
    %1968 = vmatprep.subr.mxu0 0.0
    %1969 = vmatpush1.msra.mxu0 0.0
    %1970 = vmatprep.subr.mxu0 0.0
    %1971 = vmatpush1.msra.mxu0 0.0
    %1972 = vmatprep.subr.mxu0 0.0
    %1973 = vmatpush1.msra.mxu0 0.0
    %1974 = vmatprep.subr.mxu0 0.0
    %1975 = vmatpush1.msra.mxu0 0.0
    %1976 = vmatprep.subr.mxu0 0.0
    %1977 = vmatpush1.msra.mxu0 0.0
    %1978 = vmatprep.subr.mxu0 0.0
    %1979 = vmatpush1.msra.mxu0 0.0
    %1980 = vmatprep.subr.mxu0 0.0
    %1981 = vmatpush1.msra.mxu0 0.0
    %1982 = vmatprep.subr.mxu0 0.0
    %1983 = vmatpush1.msra.mxu0 0.0
    %1984 = vmatprep.subr.mxu0 0.0
    %1985 = vmatpush1.msra.mxu0 0.0
    %1986 = vmatprep.subr.mxu0 0.0
    %1987 = vmatpush1.msra.mxu0 %v802
    %1988 = vmatprep.subr.mxu0 0.0
    %1989 = vmatpush1.msra.mxu0 %v801
    %1990 = vmatprep.subr.mxu0 0.0
    %1991 = vmatpush2.msra.mxu0 0.0
    %1992 = vmatprep.subr.mxu0 0.0
    %1993 = vmatpush2.msra.mxu0 0.0
    %1994 = vmatprep.subr.mxu0 0.0
    %1995 = vmatpush2.msra.mxu0 0.0
    %1996 = vmatprep.subr.mxu0 0.0
    %1997 = vmatpush2.msra.mxu0 0.0
    %1998 = vmatprep.subr.mxu0 0.0
    %1999 = vmatpush2.msra.mxu0 0.0
    %2000 = vmatprep.subr.mxu0 0.0
    %2001 = vmatpush2.msra.mxu0 0.0
    %2002 = vmatprep.subr.mxu0 0.0
    %2003 = vmatpush2.msra.mxu0 0.0
    %2004 = vmatprep.subr.mxu0 0.0
    %2005 = vmatpush2.msra.mxu0 0.0
    %2006 = vmatprep.subr.mxu0 0.0
    %2007 = vmatpush2.msra.mxu0 0.0
    %2008 = vmatprep.subr.mxu0 0.0
    %2009 = vmatpush2.msra.mxu0 0.0
    %2010 = vmatprep.subr.mxu0 0.0
    %2011 = vmatpush2.msra.mxu0 0.0
    %2012 = vmatprep.subr.mxu0 0.0
    %2013 = vmatpush2.msra.mxu0 0.0
    %2014 = vmatprep.subr.mxu0 0.0
    %2015 = vmatpush2.msra.mxu0 0.0
    %2016 = vmatprep.subr.mxu0 0.0
    %2017 = vmatpush2.msra.mxu0 0.0
    %2018 = vmatprep.subr.mxu0 0.0
    %2019 = vmatpush2.msra.mxu0 0.0
    %2020 = vmatprep.subr.mxu0 0.0
    %2021 = vmatpush2.msra.mxu0 0.0
    %2022 = vmatprep.mubr.f32.mxu0 0.0
    %2023 = vmatmul.mubr.f32.gmra.mxu0 %v1886
    %v2024 = vpop.f32.mrf.mxu0
    %v2025 = vadd.f32 0.0, %v2024
    %v2026 = vpop.f32.mrf.mxu0
    %2027 = vdwg.mxu0
    %v2029 = vsel %vm429, %v1884, 0
    %2031 = vmatprep.subr.mxu0 0.0
    %2032 = vmatpush1.msra.mxu0 0.0
    %2033 = vmatprep.subr.mxu0 0.0
    %2034 = vmatpush1.msra.mxu0 0.0
    %2035 = vmatprep.subr.mxu0 0.0
    %2036 = vmatpush1.msra.mxu0 0.0
    %2037 = vmatprep.subr.mxu0 0.0
    %2038 = vmatpush1.msra.mxu0 0.0
    %2039 = vmatprep.subr.mxu0 0.0
    %2040 = vmatpush1.msra.mxu0 0.0
    %2041 = vmatprep.subr.mxu0 0.0
    %2042 = vmatpush1.msra.mxu0 0.0
    %2043 = vmatprep.subr.mxu0 0.0
    %2044 = vmatpush1.msra.mxu0 0.0
    %2045 = vmatprep.subr.mxu0 0.0
    %2046 = vmatpush1.msra.mxu0 0.0
    %2047 = vmatprep.subr.mxu0 0.0
    %2048 = vmatpush1.msra.mxu0 0.0
    %2049 = vmatprep.subr.mxu0 0.0
    %2050 = vmatpush1.msra.mxu0 0.0
    %2051 = vmatprep.subr.mxu0 0.0
    %2052 = vmatpush1.msra.mxu0 0.0
    %2053 = vmatprep.subr.mxu0 0.0
    %2054 = vmatpush1.msra.mxu0 0.0
    %2055 = vmatprep.subr.mxu0 0.0
    %2056 = vmatpush1.msra.mxu0 0.0
    %2057 = vmatprep.subr.mxu0 0.0
    %2058 = vmatpush1.msra.mxu0 0.0
    %2059 = vmatprep.subr.mxu0 0.0
    %2060 = vmatpush1.msra.mxu0 %v427
    %2061 = vmatprep.subr.mxu0 0.0
    %2062 = vmatpush1.msra.mxu0 %v426
    %2063 = vmatprep.subr.mxu0 0.0
    %2064 = vmatpush2.msra.mxu0 0.0
    %2065 = vmatprep.subr.mxu0 0.0
    %2066 = vmatpush2.msra.mxu0 0.0
    %2067 = vmatprep.subr.mxu0 0.0
    %2068 = vmatpush2.msra.mxu0 0.0
    %2069 = vmatprep.subr.mxu0 0.0
    %2070 = vmatpush2.msra.mxu0 0.0
    %2071 = vmatprep.subr.mxu0 0.0
    %2072 = vmatpush2.msra.mxu0 0.0
    %2073 = vmatprep.subr.mxu0 0.0
    %2074 = vmatpush2.msra.mxu0 0.0
    %2075 = vmatprep.subr.mxu0 0.0
    %2076 = vmatpush2.msra.mxu0 0.0
    %2077 = vmatprep.subr.mxu0 0.0
    %2078 = vmatpush2.msra.mxu0 0.0
    %2079 = vmatprep.subr.mxu0 0.0
    %2080 = vmatpush2.msra.mxu0 0.0
    %2081 = vmatprep.subr.mxu0 0.0
    %2082 = vmatpush2.msra.mxu0 0.0
    %2083 = vmatprep.subr.mxu0 0.0
    %2084 = vmatpush2.msra.mxu0 0.0
    %2085 = vmatprep.subr.mxu0 0.0
    %2086 = vmatpush2.msra.mxu0 0.0
    %2087 = vmatprep.subr.mxu0 0.0
    %2088 = vmatpush2.msra.mxu0 0.0
    %2089 = vmatprep.subr.mxu0 0.0
    %2090 = vmatpush2.msra.mxu0 0.0
    %2091 = vmatprep.subr.mxu0 0.0
    %2092 = vmatpush2.msra.mxu0 0.0
    %2093 = vmatprep.subr.mxu0 0.0
    %2094 = vmatpush2.msra.mxu0 0.0
    %2095 = vmatprep.mubr.f32.mxu0 0.0
    %2096 = vmatmul.mubr.f32.gmra.mxu0 %v2029
    %v2097 = vpop.f32.mrf.mxu0
    %v2098 = vadd.f32 0.0, %v2097
    %v2099 = vpop.f32.mrf.mxu0
    %2100 = vdwg.mxu0
    %2101 = vmatprep.subr.mxu0 0.0
    %2102 = vmatpush1.msra.mxu0 0.0
    %2103 = vmatprep.subr.mxu0 0.0
    %2104 = vmatpush1.msra.mxu0 0.0
    %2105 = vmatprep.subr.mxu0 0.0
    %2106 = vmatpush1.msra.mxu0 0.0
    %2107 = vmatprep.subr.mxu0 0.0
    %2108 = vmatpush1.msra.mxu0 0.0
    %2109 = vmatprep.subr.mxu0 0.0
    %2110 = vmatpush1.msra.mxu0 0.0
    %2111 = vmatprep.subr.mxu0 0.0
    %2112 = vmatpush1.msra.mxu0 0.0
    %2113 = vmatprep.subr.mxu0 0.0
    %2114 = vmatpush1.msra.mxu0 0.0
    %2115 = vmatprep.subr.mxu0 0.0
    %2116 = vmatpush1.msra.mxu0 0.0
    %2117 = vmatprep.subr.mxu0 0.0
    %2118 = vmatpush1.msra.mxu0 0.0
    %2119 = vmatprep.subr.mxu0 0.0
    %2120 = vmatpush1.msra.mxu0 0.0
    %2121 = vmatprep.subr.mxu0 0.0
    %2122 = vmatpush1.msra.mxu0 0.0
    %2123 = vmatprep.subr.mxu0 0.0
    %2124 = vmatpush1.msra.mxu0 0.0
    %2125 = vmatprep.subr.mxu0 0.0
    %2126 = vmatpush1.msra.mxu0 0.0
    %2127 = vmatprep.subr.mxu0 0.0
    %2128 = vmatpush1.msra.mxu0 0.0
    %2129 = vmatprep.subr.mxu0 0.0
    %2130 = vmatpush1.msra.mxu0 %v1028
    %2131 = vmatprep.subr.mxu0 0.0
    %2132 = vmatpush1.msra.mxu0 %v1027
    %2133 = vmatprep.subr.mxu0 0.0
    %2134 = vmatpush2.msra.mxu0 0.0
    %2135 = vmatprep.subr.mxu0 0.0
    %2136 = vmatpush2.msra.mxu0 0.0
    %2137 = vmatprep.subr.mxu0 0.0
    %2138 = vmatpush2.msra.mxu0 0.0
    %2139 = vmatprep.subr.mxu0 0.0
    %2140 = vmatpush2.msra.mxu0 0.0
    %2141 = vmatprep.subr.mxu0 0.0
    %2142 = vmatpush2.msra.mxu0 0.0
    %2143 = vmatprep.subr.mxu0 0.0
    %2144 = vmatpush2.msra.mxu0 0.0
    %2145 = vmatprep.subr.mxu0 0.0
    %2146 = vmatpush2.msra.mxu0 0.0
    %2147 = vmatprep.subr.mxu0 0.0
    %2148 = vmatpush2.msra.mxu0 0.0
    %2149 = vmatprep.subr.mxu0 0.0
    %2150 = vmatpush2.msra.mxu0 0.0
    %2151 = vmatprep.subr.mxu0 0.0
    %2152 = vmatpush2.msra.mxu0 0.0
    %2153 = vmatprep.subr.mxu0 0.0
    %2154 = vmatpush2.msra.mxu0 0.0
    %2155 = vmatprep.subr.mxu0 0.0
    %2156 = vmatpush2.msra.mxu0 0.0
    %2157 = vmatprep.subr.mxu0 0.0
    %2158 = vmatpush2.msra.mxu0 0.0
    %2159 = vmatprep.subr.mxu0 0.0
    %2160 = vmatpush2.msra.mxu0 0.0
    %2161 = vmatprep.subr.mxu0 0.0
    %2162 = vmatpush2.msra.mxu0 0.0
    %2163 = vmatprep.subr.mxu0 0.0
    %2164 = vmatpush2.msra.mxu0 0.0
    %2165 = vmatprep.mubr.f32.mxu0 0.0
    %2166 = vmatmul.mubr.f32.gmra.mxu0 %v2029
    %v2167 = vpop.f32.mrf.mxu0
    %v2168 = vadd.f32 0.0, %v2167
    %v2169 = vpop.f32.mrf.mxu0
    %2170 = vdwg.mxu0
    %v2171 = vmul.f32 %v1955, %v1955
    %vm2172 = vcmask 257024
    %v2173 = vsel %vm2172, %v2171, 0.0
    %2174 = vadd.xlane.f32.xlu0 %v2173
    %v2175 = vpop.xlane.xlu0 %2174
    %v2176 = vmax.f32 %v2175, 1e-24
    %v2177 = vrsqrt.pop %v2176
    %v2178 = vmul.f32 %v1955, %v2177
    %v2179 = vmul.f32 %v2025, %v2025
    %v2180 = vsel %vm2172, %v2179, 0.0
    %2181 = vadd.xlane.f32.xlu0 %v2180
    %v2182 = vpop.xlane.xlu0 %2181
    %v2183 = vmax.f32 %v2182, 1e-24
    %v2184 = vrsqrt.pop %v2183
    %v2185 = vmul.f32 %v2025, %v2184
    %v2186 = vmul.f32 %v2178, %v2185
    %v2187 = vsel %vm2172, %v2186, 0.0
    %2188 = vadd.xlane.f32.xlu0 %v2187
    %v2189 = vpop.xlane.xlu0 %2188
    %v2190 = vrcp.pop 0.2
    %v2191 = vmul.f32 %v2189, %v2190
    %v2193 = vsel %vm171, %v2178, 0
    %v2196 = vsel %vm171, %v2185, 0
    %2198 = vmatprep.subr.mxu0 0.0
    %2199 = vmatpush1.xpose.msra.mxu0 0.0
    %2200 = vmatprep.subr.mxu0 0.0
    %2201 = vmatpush1.xpose.msra.mxu0 0.0
    %2202 = vmatprep.subr.mxu0 0.0
    %2203 = vmatpush1.xpose.msra.mxu0 0.0
    %2204 = vmatprep.subr.mxu0 0.0
    %2205 = vmatpush1.xpose.msra.mxu0 0.0
    %2206 = vmatprep.subr.mxu0 0.0
    %2207 = vmatpush1.xpose.msra.mxu0 0.0
    %2208 = vmatprep.subr.mxu0 0.0
    %2209 = vmatpush1.xpose.msra.mxu0 0.0
    %2210 = vmatprep.subr.mxu0 0.0
    %2211 = vmatpush1.xpose.msra.mxu0 0.0
    %2212 = vmatprep.subr.mxu0 0.0
    %2213 = vmatpush1.xpose.msra.mxu0 0.0
    %2214 = vmatprep.subr.mxu0 0.0
    %2215 = vmatpush1.xpose.msra.mxu0 0.0
    %2216 = vmatprep.subr.mxu0 0.0
    %2217 = vmatpush1.xpose.msra.mxu0 0.0
    %2218 = vmatprep.subr.mxu0 0.0
    %2219 = vmatpush1.xpose.msra.mxu0 0.0
    %2220 = vmatprep.subr.mxu0 0.0
    %2221 = vmatpush1.xpose.msra.mxu0 0.0
    %2222 = vmatprep.subr.mxu0 0.0
    %2223 = vmatpush1.xpose.msra.mxu0 0.0
    %2224 = vmatprep.subr.mxu0 0.0
    %2225 = vmatpush1.xpose.msra.mxu0 0.0
    %2226 = vmatprep.subr.mxu0 0.0
    %2227 = vmatpush1.xpose.msra.mxu0 0.0
    %2228 = vmatprep.subr.mxu0 0.0
    %2229 = vmatpush1.xpose.msra.mxu0 %v2196
    %2230 = vmatprep.subr.mxu0 0.0
    %2231 = vmatpush2.xpose.msra.mxu0 0.0
    %2232 = vmatprep.subr.mxu0 0.0
    %2233 = vmatpush2.xpose.msra.mxu0 0.0
    %2234 = vmatprep.subr.mxu0 0.0
    %2235 = vmatpush2.xpose.msra.mxu0 0.0
    %2236 = vmatprep.subr.mxu0 0.0
    %2237 = vmatpush2.xpose.msra.mxu0 0.0
    %2238 = vmatprep.subr.mxu0 0.0
    %2239 = vmatpush2.xpose.msra.mxu0 0.0
    %2240 = vmatprep.subr.mxu0 0.0
    %2241 = vmatpush2.xpose.msra.mxu0 0.0
    %2242 = vmatprep.subr.mxu0 0.0
    %2243 = vmatpush2.xpose.msra.mxu0 0.0
    %2244 = vmatprep.subr.mxu0 0.0
    %2245 = vmatpush2.xpose.msra.mxu0 0.0
    %2246 = vmatprep.subr.mxu0 0.0
    %2247 = vmatpush2.xpose.msra.mxu0 0.0
    %2248 = vmatprep.subr.mxu0 0.0
    %2249 = vmatpush2.xpose.msra.mxu0 0.0
    %2250 = vmatprep.subr.mxu0 0.0
    %2251 = vmatpush2.xpose.msra.mxu0 0.0
    %2252 = vmatprep.subr.mxu0 0.0
    %2253 = vmatpush2.xpose.msra.mxu0 0.0
    %2254 = vmatprep.subr.mxu0 0.0
    %2255 = vmatpush2.xpose.msra.mxu0 0.0
    %2256 = vmatprep.subr.mxu0 0.0
    %2257 = vmatpush2.xpose.msra.mxu0 0.0
    %2258 = vmatprep.subr.mxu0 0.0
    %2259 = vmatpush2.xpose.msra.mxu0 0.0
    %2260 = vmatprep.subr.mxu0 0.0
    %2261 = vmatpush2.xpose.msra.mxu0 0.0
    %2262 = vmatprep.mubr.f32.mxu0 0.0
    %2263 = vmatmul.mubr.f32.gmra.mxu0 %v2193
    %v2264 = vpop.f32.mrf.mxu0
    %v2265 = vadd.f32 0.0, %v2264
    %v2266 = vpop.f32.mrf.mxu0
    %2267 = vdwg.mxu0
    %v2268 = vmul.f32 %v2265, %v2190
    %vm2269 = vcmask 27648
    %v2270 = vsel %vm2269, %v2268, -inf
    %2271 = vmax.xlane.f32.xlu0 %v2270
    %v2272 = vpop.xlane.xlu0 %2271
    %v2273 = vsub.f32 %v2268, %v2272
    %v2274 = vmul.f32 %v2273, 1.442695
    %v2275 = vpow.pop %v2274
    %v2276 = vsel %vm2269, %v2275, 0.0
    %2277 = vadd.xlane.f32.xlu0 %v2276
    %v2278 = vpop.xlane.xlu0 %2277
    %v2279 = vlog2.pop %v2278
    %v2280 = vmul.f32 %v2279, 0.6931472
    %v2281 = vadd.f32 %v2272, %v2280
    %v2282 = vsub.f32 %v2191, %v2281
    %v2283 = vsel %vm1781, %v2282, 0.0
    %2284 = vadd.xlane.f32.xlu0 %v2283
    %v2285 = vpop.xlane.xlu0 %2284
    %v2286 = vrot.slane %v2285, 4
    %v2287 = vadd.f32 %v2285, %v2286
    %v2288 = vrot.slane %v2287, 2
    %v2289 = vadd.f32 %v2287, %v2288
    %v2290 = vrot.slane %v2289, 1
    %v2291 = vadd.f32 %v2289, %v2290
    %s2292 = vtos %v2291
    %v2293 = vrcp.pop 4.0
    %s2294 = vtos %v2293
    %s2295 = smul.f32 %s2292, %s2294
    %s2296 = ssub.f32 0.0, %s2295
    %v2297 = vmul.f32 %v2098, %v2098
    %v2298 = vsel %vm2172, %v2297, 0.0
    %2299 = vadd.xlane.f32.xlu0 %v2298
    %v2300 = vpop.xlane.xlu0 %2299
    %v2301 = vmax.f32 %v2300, 1e-24
    %v2302 = vrsqrt.pop %v2301
    %v2303 = vmul.f32 %v2098, %v2302
    %v2304 = vmul.f32 %v2168, %v2168
    %v2305 = vsel %vm2172, %v2304, 0.0
    %2306 = vadd.xlane.f32.xlu0 %v2305
    %v2307 = vpop.xlane.xlu0 %2306
    %v2308 = vmax.f32 %v2307, 1e-24
    %v2309 = vrsqrt.pop %v2308
    %v2310 = vmul.f32 %v2168, %v2309
    %v2311 = vmul.f32 %v2303, %v2310
    %v2312 = vsel %vm2172, %v2311, 0.0
    %2313 = vadd.xlane.f32.xlu0 %v2312
    %v2314 = vpop.xlane.xlu0 %2313
    %v2315 = vmul.f32 %v2314, %v2190
    %v2317 = vsel %vm171, %v2303, 0
    %v2320 = vsel %vm171, %v2310, 0
    %2322 = vmatprep.subr.mxu0 0.0
    %2323 = vmatpush1.xpose.msra.mxu0 0.0
    %2324 = vmatprep.subr.mxu0 0.0
    %2325 = vmatpush1.xpose.msra.mxu0 0.0
    %2326 = vmatprep.subr.mxu0 0.0
    %2327 = vmatpush1.xpose.msra.mxu0 0.0
    %2328 = vmatprep.subr.mxu0 0.0
    %2329 = vmatpush1.xpose.msra.mxu0 0.0
    %2330 = vmatprep.subr.mxu0 0.0
    %2331 = vmatpush1.xpose.msra.mxu0 0.0
    %2332 = vmatprep.subr.mxu0 0.0
    %2333 = vmatpush1.xpose.msra.mxu0 0.0
    %2334 = vmatprep.subr.mxu0 0.0
    %2335 = vmatpush1.xpose.msra.mxu0 0.0
    %2336 = vmatprep.subr.mxu0 0.0
    %2337 = vmatpush1.xpose.msra.mxu0 0.0
    %2338 = vmatprep.subr.mxu0 0.0
    %2339 = vmatpush1.xpose.msra.mxu0 0.0
    %2340 = vmatprep.subr.mxu0 0.0
    %2341 = vmatpush1.xpose.msra.mxu0 0.0
    %2342 = vmatprep.subr.mxu0 0.0
    %2343 = vmatpush1.xpose.msra.mxu0 0.0
    %2344 = vmatprep.subr.mxu0 0.0
    %2345 = vmatpush1.xpose.msra.mxu0 0.0
    %2346 = vmatprep.subr.mxu0 0.0
    %2347 = vmatpush1.xpose.msra.mxu0 0.0
    %2348 = vmatprep.subr.mxu0 0.0
    %2349 = vmatpush1.xpose.msra.mxu0 0.0
    %2350 = vmatprep.subr.mxu0 0.0
    %2351 = vmatpush1.xpose.msra.mxu0 0.0
    %2352 = vmatprep.subr.mxu0 0.0
    %2353 = vmatpush1.xpose.msra.mxu0 %v2320
    %2354 = vmatprep.subr.mxu0 0.0
    %2355 = vmatpush2.xpose.msra.mxu0 0.0
    %2356 = vmatprep.subr.mxu0 0.0
    %2357 = vmatpush2.xpose.msra.mxu0 0.0
    %2358 = vmatprep.subr.mxu0 0.0
    %2359 = vmatpush2.xpose.msra.mxu0 0.0
    %2360 = vmatprep.subr.mxu0 0.0
    %2361 = vmatpush2.xpose.msra.mxu0 0.0
    %2362 = vmatprep.subr.mxu0 0.0
    %2363 = vmatpush2.xpose.msra.mxu0 0.0
    %2364 = vmatprep.subr.mxu0 0.0
    %2365 = vmatpush2.xpose.msra.mxu0 0.0
    %2366 = vmatprep.subr.mxu0 0.0
    %2367 = vmatpush2.xpose.msra.mxu0 0.0
    %2368 = vmatprep.subr.mxu0 0.0
    %2369 = vmatpush2.xpose.msra.mxu0 0.0
    %2370 = vmatprep.subr.mxu0 0.0
    %2371 = vmatpush2.xpose.msra.mxu0 0.0
    %2372 = vmatprep.subr.mxu0 0.0
    %2373 = vmatpush2.xpose.msra.mxu0 0.0
    %2374 = vmatprep.subr.mxu0 0.0
    %2375 = vmatpush2.xpose.msra.mxu0 0.0
    %2376 = vmatprep.subr.mxu0 0.0
    %2377 = vmatpush2.xpose.msra.mxu0 0.0
    %2378 = vmatprep.subr.mxu0 0.0
    %2379 = vmatpush2.xpose.msra.mxu0 0.0
    %2380 = vmatprep.subr.mxu0 0.0
    %2381 = vmatpush2.xpose.msra.mxu0 0.0
    %2382 = vmatprep.subr.mxu0 0.0
    %2383 = vmatpush2.xpose.msra.mxu0 0.0
    %2384 = vmatprep.subr.mxu0 0.0
    %2385 = vmatpush2.xpose.msra.mxu0 0.0
    %2386 = vmatprep.mubr.f32.mxu0 0.0
    %2387 = vmatmul.mubr.f32.gmra.mxu0 %v2317
    %v2388 = vpop.f32.mrf.mxu0
    %v2389 = vadd.f32 0.0, %v2388
    %v2390 = vpop.f32.mrf.mxu0
    %2391 = vdwg.mxu0
    %v2392 = vmul.f32 %v2389, %v2190
    %v2393 = vsel %vm2269, %v2392, -inf
    %2394 = vmax.xlane.f32.xlu0 %v2393
    %v2395 = vpop.xlane.xlu0 %2394
    %v2396 = vsub.f32 %v2392, %v2395
    %v2397 = vmul.f32 %v2396, 1.442695
    %v2398 = vpow.pop %v2397
    %v2399 = vsel %vm2269, %v2398, 0.0
    %2400 = vadd.xlane.f32.xlu0 %v2399
    %v2401 = vpop.xlane.xlu0 %2400
    %v2402 = vlog2.pop %v2401
    %v2403 = vmul.f32 %v2402, 0.6931472
    %v2404 = vadd.f32 %v2395, %v2403
    %v2405 = vsub.f32 %v2315, %v2404
    %v2406 = vsel %vm1781, %v2405, 0.0
    %2407 = vadd.xlane.f32.xlu0 %v2406
    %v2408 = vpop.xlane.xlu0 %2407
    %v2409 = vrot.slane %v2408, 4
    %v2410 = vadd.f32 %v2408, %v2409
    %v2411 = vrot.slane %v2410, 2
    %v2412 = vadd.f32 %v2410, %v2411
    %v2413 = vrot.slane %v2412, 1
    %v2414 = vadd.f32 %v2412, %v2413
    %s2415 = vtos %v2414
    %v2416 = vrcp.pop 4.0
    %s2417 = vtos %v2416
    %s2418 = smul.f32 %s2415, %s2417
    %s2419 = ssub.f32 0.0, %s2418
    %s2420 = sadd.f32 %s2296, %s2419
    %v2421 = vmul.f32 %v1260, %v1260
    %v2422 = vsel %vm2172, %v2421, 0.0
    %2423 = vadd.xlane.f32.xlu0 %v2422
    %v2424 = vpop.xlane.xlu0 %2423
    %v2425 = vmax.f32 %v2424, 1e-24
    %v2426 = vrsqrt.pop %v2425
    %v2427 = vmul.f32 %v1260, %v2426
    %v2428 = vmul.f32 %v1330, %v1330
    %v2429 = vsel %vm2172, %v2428, 0.0
    %2430 = vadd.xlane.f32.xlu0 %v2429
    %v2431 = vpop.xlane.xlu0 %2430
    %v2432 = vmax.f32 %v2431, 1e-24
    %v2433 = vrsqrt.pop %v2432
    %v2434 = vmul.f32 %v1330, %v2433
    %v2435 = vmul.f32 %v2427, %v2434
    %v2436 = vsel %vm2172, %v2435, 0.0
    %2437 = vadd.xlane.f32.xlu0 %v2436
    %v2438 = vpop.xlane.xlu0 %2437
    %v2439 = vmul.f32 %v2438, %v2190
    %v2441 = vsel %vm171, %v2427, 0
    %v2444 = vsel %vm171, %v2434, 0
    %2446 = vmatprep.subr.mxu0 0.0
    %2447 = vmatpush1.xpose.msra.mxu0 0.0
    %2448 = vmatprep.subr.mxu0 0.0
    %2449 = vmatpush1.xpose.msra.mxu0 0.0
    %2450 = vmatprep.subr.mxu0 0.0
    %2451 = vmatpush1.xpose.msra.mxu0 0.0
    %2452 = vmatprep.subr.mxu0 0.0
    %2453 = vmatpush1.xpose.msra.mxu0 0.0
    %2454 = vmatprep.subr.mxu0 0.0
    %2455 = vmatpush1.xpose.msra.mxu0 0.0
    %2456 = vmatprep.subr.mxu0 0.0
    %2457 = vmatpush1.xpose.msra.mxu0 0.0
    %2458 = vmatprep.subr.mxu0 0.0
    %2459 = vmatpush1.xpose.msra.mxu0 0.0
    %2460 = vmatprep.subr.mxu0 0.0
    %2461 = vmatpush1.xpose.msra.mxu0 0.0
    %2462 = vmatprep.subr.mxu0 0.0
    %2463 = vmatpush1.xpose.msra.mxu0 0.0
    %2464 = vmatprep.subr.mxu0 0.0
    %2465 = vmatpush1.xpose.msra.mxu0 0.0
    %2466 = vmatprep.subr.mxu0 0.0
    %2467 = vmatpush1.xpose.msra.mxu0 0.0
    %2468 = vmatprep.subr.mxu0 0.0
    %2469 = vmatpush1.xpose.msra.mxu0 0.0
    %2470 = vmatprep.subr.mxu0 0.0
    %2471 = vmatpush1.xpose.msra.mxu0 0.0
    %2472 = vmatprep.subr.mxu0 0.0
    %2473 = vmatpush1.xpose.msra.mxu0 0.0
    %2474 = vmatprep.subr.mxu0 0.0
    %2475 = vmatpush1.xpose.msra.mxu0 0.0
    %2476 = vmatprep.subr.mxu0 0.0
    %2477 = vmatpush1.xpose.msra.mxu0 %v2444
    %2478 = vmatprep.subr.mxu0 0.0
    %2479 = vmatpush2.xpose.msra.mxu0 0.0
    %2480 = vmatprep.subr.mxu0 0.0
    %2481 = vmatpush2.xpose.msra.mxu0 0.0
    %2482 = vmatprep.subr.mxu0 0.0
    %2483 = vmatpush2.xpose.msra.mxu0 0.0
    %2484 = vmatprep.subr.mxu0 0.0
    %2485 = vmatpush2.xpose.msra.mxu0 0.0
    %2486 = vmatprep.subr.mxu0 0.0
    %2487 = vmatpush2.xpose.msra.mxu0 0.0
    %2488 = vmatprep.subr.mxu0 0.0
    %2489 = vmatpush2.xpose.msra.mxu0 0.0
    %2490 = vmatprep.subr.mxu0 0.0
    %2491 = vmatpush2.xpose.msra.mxu0 0.0
    %2492 = vmatprep.subr.mxu0 0.0
    %2493 = vmatpush2.xpose.msra.mxu0 0.0
    %2494 = vmatprep.subr.mxu0 0.0
    %2495 = vmatpush2.xpose.msra.mxu0 0.0
    %2496 = vmatprep.subr.mxu0 0.0
    %2497 = vmatpush2.xpose.msra.mxu0 0.0
    %2498 = vmatprep.subr.mxu0 0.0
    %2499 = vmatpush2.xpose.msra.mxu0 0.0
    %2500 = vmatprep.subr.mxu0 0.0
    %2501 = vmatpush2.xpose.msra.mxu0 0.0
    %2502 = vmatprep.subr.mxu0 0.0
    %2503 = vmatpush2.xpose.msra.mxu0 0.0
    %2504 = vmatprep.subr.mxu0 0.0
    %2505 = vmatpush2.xpose.msra.mxu0 0.0
    %2506 = vmatprep.subr.mxu0 0.0
    %2507 = vmatpush2.xpose.msra.mxu0 0.0
    %2508 = vmatprep.subr.mxu0 0.0
    %2509 = vmatpush2.xpose.msra.mxu0 0.0
    %2510 = vmatprep.mubr.f32.mxu0 0.0
    %2511 = vmatmul.mubr.f32.gmra.mxu0 %v2441
    %v2512 = vpop.f32.mrf.mxu0
    %v2513 = vadd.f32 0.0, %v2512
    %v2514 = vpop.f32.mrf.mxu0
    %2515 = vdwg.mxu0
    %v2516 = vmul.f32 %v2513, %v2190
    %v2517 = vsel %vm2269, %v2516, -inf
    %2518 = vmax.xlane.f32.xlu0 %v2517
    %v2519 = vpop.xlane.xlu0 %2518
    %v2520 = vsub.f32 %v2516, %v2519
    %v2521 = vmul.f32 %v2520, 1.442695
    %v2522 = vpow.pop %v2521
    %v2523 = vsel %vm2269, %v2522, 0.0
    %2524 = vadd.xlane.f32.xlu0 %v2523
    %v2525 = vpop.xlane.xlu0 %2524
    %v2526 = vlog2.pop %v2525
    %v2527 = vmul.f32 %v2526, 0.6931472
    %v2528 = vadd.f32 %v2519, %v2527
    %v2529 = vsub.f32 %v2439, %v2528
    %v2530 = vsel %vm1781, %v2529, 0.0
    %2531 = vadd.xlane.f32.xlu0 %v2530
    %v2532 = vpop.xlane.xlu0 %2531
    %v2533 = vrot.slane %v2532, 4
    %v2534 = vadd.f32 %v2532, %v2533
    %v2535 = vrot.slane %v2534, 2
    %v2536 = vadd.f32 %v2534, %v2535
    %v2537 = vrot.slane %v2536, 1
    %v2538 = vadd.f32 %v2536, %v2537
    %s2539 = vtos %v2538
    %v2540 = vrcp.pop 4.0
    %s2541 = vtos %v2540
    %s2542 = smul.f32 %s2539, %s2541
    %s2543 = ssub.f32 0.0, %s2542
    %s2544 = sadd.f32 %s2420, %s2543
    %v2545 = vmul.f32 %v1117, %v1117
    %v2546 = vsel %vm2172, %v2545, 0.0
    %2547 = vadd.xlane.f32.xlu0 %v2546
    %v2548 = vpop.xlane.xlu0 %2547
    %v2549 = vmax.f32 %v2548, 1e-24
    %v2550 = vrsqrt.pop %v2549
    %v2551 = vmul.f32 %v1117, %v2550
    %v2552 = vmul.f32 %v1187, %v1187
    %v2553 = vsel %vm2172, %v2552, 0.0
    %2554 = vadd.xlane.f32.xlu0 %v2553
    %v2555 = vpop.xlane.xlu0 %2554
    %v2556 = vmax.f32 %v2555, 1e-24
    %v2557 = vrsqrt.pop %v2556
    %v2558 = vmul.f32 %v1187, %v2557
    %v2559 = vmul.f32 %v2551, %v2558
    %v2560 = vsel %vm2172, %v2559, 0.0
    %2561 = vadd.xlane.f32.xlu0 %v2560
    %v2562 = vpop.xlane.xlu0 %2561
    %v2563 = vmul.f32 %v2562, %v2190
    %v2565 = vsel %vm171, %v2551, 0
    %v2568 = vsel %vm171, %v2558, 0
    %2570 = vmatprep.subr.mxu0 0.0
    %2571 = vmatpush1.xpose.msra.mxu0 0.0
    %2572 = vmatprep.subr.mxu0 0.0
    %2573 = vmatpush1.xpose.msra.mxu0 0.0
    %2574 = vmatprep.subr.mxu0 0.0
    %2575 = vmatpush1.xpose.msra.mxu0 0.0
    %2576 = vmatprep.subr.mxu0 0.0
    %2577 = vmatpush1.xpose.msra.mxu0 0.0
    %2578 = vmatprep.subr.mxu0 0.0
    %2579 = vmatpush1.xpose.msra.mxu0 0.0
    %2580 = vmatprep.subr.mxu0 0.0
    %2581 = vmatpush1.xpose.msra.mxu0 0.0
    %2582 = vmatprep.subr.mxu0 0.0
    %2583 = vmatpush1.xpose.msra.mxu0 0.0
    %2584 = vmatprep.subr.mxu0 0.0
    %2585 = vmatpush1.xpose.msra.mxu0 0.0
    %2586 = vmatprep.subr.mxu0 0.0
    %2587 = vmatpush1.xpose.msra.mxu0 0.0
    %2588 = vmatprep.subr.mxu0 0.0
    %2589 = vmatpush1.xpose.msra.mxu0 0.0
    %2590 = vmatprep.subr.mxu0 0.0
    %2591 = vmatpush1.xpose.msra.mxu0 0.0
    %2592 = vmatprep.subr.mxu0 0.0
    %2593 = vmatpush1.xpose.msra.mxu0 0.0
    %2594 = vmatprep.subr.mxu0 0.0
    %2595 = vmatpush1.xpose.msra.mxu0 0.0
    %2596 = vmatprep.subr.mxu0 0.0
    %2597 = vmatpush1.xpose.msra.mxu0 0.0
    %2598 = vmatprep.subr.mxu0 0.0
    %2599 = vmatpush1.xpose.msra.mxu0 0.0
    %2600 = vmatprep.subr.mxu0 0.0
    %2601 = vmatpush1.xpose.msra.mxu0 %v2568
    %2602 = vmatprep.subr.mxu0 0.0
    %2603 = vmatpush2.xpose.msra.mxu0 0.0
    %2604 = vmatprep.subr.mxu0 0.0
    %2605 = vmatpush2.xpose.msra.mxu0 0.0
    %2606 = vmatprep.subr.mxu0 0.0
    %2607 = vmatpush2.xpose.msra.mxu0 0.0
    %2608 = vmatprep.subr.mxu0 0.0
    %2609 = vmatpush2.xpose.msra.mxu0 0.0
    %2610 = vmatprep.subr.mxu0 0.0
    %2611 = vmatpush2.xpose.msra.mxu0 0.0
    %2612 = vmatprep.subr.mxu0 0.0
    %2613 = vmatpush2.xpose.msra.mxu0 0.0
    %2614 = vmatprep.subr.mxu0 0.0
    %2615 = vmatpush2.xpose.msra.mxu0 0.0
    %2616 = vmatprep.subr.mxu0 0.0
    %2617 = vmatpush2.xpose.msra.mxu0 0.0
    %2618 = vmatprep.subr.mxu0 0.0
    %2619 = vmatpush2.xpose.msra.mxu0 0.0
    %2620 = vmatprep.subr.mxu0 0.0
    %2621 = vmatpush2.xpose.msra.mxu0 0.0
    %2622 = vmatprep.subr.mxu0 0.0
    %2623 = vmatpush2.xpose.msra.mxu0 0.0
    %2624 = vmatprep.subr.mxu0 0.0
    %2625 = vmatpush2.xpose.msra.mxu0 0.0
    %2626 = vmatprep.subr.mxu0 0.0
    %2627 = vmatpush2.xpose.msra.mxu0 0.0
    %2628 = vmatprep.subr.mxu0 0.0
    %2629 = vmatpush2.xpose.msra.mxu0 0.0
    %2630 = vmatprep.subr.mxu0 0.0
    %2631 = vmatpush2.xpose.msra.mxu0 0.0
    %2632 = vmatprep.subr.mxu0 0.0
    %2633 = vmatpush2.xpose.msra.mxu0 0.0
    %2634 = vmatprep.mubr.f32.mxu0 0.0
    %2635 = vmatmul.mubr.f32.gmra.mxu0 %v2565
    %v2636 = vpop.f32.mrf.mxu0
    %v2637 = vadd.f32 0.0, %v2636
    %v2638 = vpop.f32.mrf.mxu0
    %2639 = vdwg.mxu0
    %v2640 = vmul.f32 %v2637, %v2190
    %v2641 = vsel %vm2269, %v2640, -inf
    %2642 = vmax.xlane.f32.xlu0 %v2641
    %v2643 = vpop.xlane.xlu0 %2642
    %v2644 = vsub.f32 %v2640, %v2643
    %v2645 = vmul.f32 %v2644, 1.442695
    %v2646 = vpow.pop %v2645
    %v2647 = vsel %vm2269, %v2646, 0.0
    %2648 = vadd.xlane.f32.xlu0 %v2647
    %v2649 = vpop.xlane.xlu0 %2648
    %v2650 = vlog2.pop %v2649
    %v2651 = vmul.f32 %v2650, 0.6931472
    %v2652 = vadd.f32 %v2643, %v2651
    %v2653 = vsub.f32 %v2563, %v2652
    %v2654 = vsel %vm1781, %v2653, 0.0
    %2655 = vadd.xlane.f32.xlu0 %v2654
    %v2656 = vpop.xlane.xlu0 %2655
    %v2657 = vrot.slane %v2656, 4
    %v2658 = vadd.f32 %v2656, %v2657
    %v2659 = vrot.slane %v2658, 2
    %v2660 = vadd.f32 %v2658, %v2659
    %v2661 = vrot.slane %v2660, 1
    %v2662 = vadd.f32 %v2660, %v2661
    %s2663 = vtos %v2662
    %v2664 = vrcp.pop 4.0
    %s2665 = vtos %v2664
    %s2666 = smul.f32 %s2663, %s2665
    %s2667 = ssub.f32 0.0, %s2666
    %s2668 = sadd.f32 %s2544, %s2667
    %v2669 = vrcp.pop 4.0
    %s2670 = vtos %v2669
    %s2671 = smul.f32 %s2668, %s2670
    %v2672 = vmul.f32 %v424, 0.5
    %v2673 = vmul.f32 %v425, 0.5
    %v2674 = vmul.f32 %v801, 0.5
    %v2675 = vmul.f32 %v802, 0.5
    %v2676 = vadd.f32 %v2672, %v2674
    %v2677 = vadd.f32 %v2673, %v2675
    %v2679 = vsel %vm171, %v2676, 0
    %v2682 = vsel %vm171, %v2677, 0
    %2684 = vmatprep.subr.mxu0 0.0
    %2685 = vmatpush1.xpose.msra.mxu0 0.0
    %2686 = vmatprep.subr.mxu0 0.0
    %2687 = vmatpush1.xpose.msra.mxu0 0.0
    %2688 = vmatprep.subr.mxu0 0.0
    %2689 = vmatpush1.xpose.msra.mxu0 0.0
    %2690 = vmatprep.subr.mxu0 0.0
    %2691 = vmatpush1.xpose.msra.mxu0 0.0
    %2692 = vmatprep.subr.mxu0 0.0
    %2693 = vmatpush1.xpose.msra.mxu0 0.0
    %2694 = vmatprep.subr.mxu0 0.0
    %2695 = vmatpush1.xpose.msra.mxu0 0.0
    %2696 = vmatprep.subr.mxu0 0.0
    %2697 = vmatpush1.xpose.msra.mxu0 0.0
    %2698 = vmatprep.subr.mxu0 0.0
    %2699 = vmatpush1.xpose.msra.mxu0 0.0
    %2700 = vmatprep.subr.mxu0 0.0
    %2701 = vmatpush1.xpose.msra.mxu0 0.0
    %2702 = vmatprep.subr.mxu0 0.0
    %2703 = vmatpush1.xpose.msra.mxu0 0.0
    %2704 = vmatprep.subr.mxu0 0.0
    %2705 = vmatpush1.xpose.msra.mxu0 0.0
    %2706 = vmatprep.subr.mxu0 0.0
    %2707 = vmatpush1.xpose.msra.mxu0 0.0
    %2708 = vmatprep.subr.mxu0 0.0
    %2709 = vmatpush1.xpose.msra.mxu0 0.0
    %2710 = vmatprep.subr.mxu0 0.0
    %2711 = vmatpush1.xpose.msra.mxu0 0.0
    %2712 = vmatprep.subr.mxu0 0.0
    %2713 = vmatpush1.xpose.msra.mxu0 %v2682
    %2714 = vmatprep.subr.mxu0 0.0
    %2715 = vmatpush1.xpose.msra.mxu0 %v2679
    %2716 = vmatprep.subr.mxu0 0.0
    %2717 = vmatpush2.xpose.msra.mxu0 0.0
    %2718 = vmatprep.subr.mxu0 0.0
    %2719 = vmatpush2.xpose.msra.mxu0 0.0
    %2720 = vmatprep.subr.mxu0 0.0
    %2721 = vmatpush2.xpose.msra.mxu0 0.0
    %2722 = vmatprep.subr.mxu0 0.0
    %2723 = vmatpush2.xpose.msra.mxu0 0.0
    %2724 = vmatprep.subr.mxu0 0.0
    %2725 = vmatpush2.xpose.msra.mxu0 0.0
    %2726 = vmatprep.subr.mxu0 0.0
    %2727 = vmatpush2.xpose.msra.mxu0 0.0
    %2728 = vmatprep.subr.mxu0 0.0
    %2729 = vmatpush2.xpose.msra.mxu0 0.0
    %2730 = vmatprep.subr.mxu0 0.0
    %2731 = vmatpush2.xpose.msra.mxu0 0.0
    %2732 = vmatprep.subr.mxu0 0.0
    %2733 = vmatpush2.xpose.msra.mxu0 0.0
    %2734 = vmatprep.subr.mxu0 0.0
    %2735 = vmatpush2.xpose.msra.mxu0 0.0
    %2736 = vmatprep.subr.mxu0 0.0
    %2737 = vmatpush2.xpose.msra.mxu0 0.0
    %2738 = vmatprep.subr.mxu0 0.0
    %2739 = vmatpush2.xpose.msra.mxu0 0.0
    %2740 = vmatprep.subr.mxu0 0.0
    %2741 = vmatpush2.xpose.msra.mxu0 0.0
    %2742 = vmatprep.subr.mxu0 0.0
    %2743 = vmatpush2.xpose.msra.mxu0 0.0
    %2744 = vmatprep.subr.mxu0 0.0
    %2745 = vmatpush2.xpose.msra.mxu0 0.0
    %2746 = vmatprep.subr.mxu0 0.0
    %2747 = vmatpush2.xpose.msra.mxu0 0.0
    %2748 = vmatprep.mubr.f32.mxu0 0.0
    %2749 = vmatmul.mubr.f32.gmra.mxu0 %v2679
    %v2750 = vpop.f32.mrf.mxu0
    %v2751 = vadd.f32 0.0, %v2750
    %v2752 = vpop.f32.mrf.mxu0
    %2753 = vmatprep.mubr.f32.mxu0 0.0
    %2754 = vmatmul.mubr.f32.gmra.mxu0 %v2682
    %v2755 = vpop.f32.mrf.mxu0
    %v2756 = vadd.f32 0.0, %v2755
    %v2757 = vpop.f32.mrf.mxu0
    %2758 = vdwg.mxu0
    %v2759 = vxor.u32 %v2751, 2147483648
    %v2760 = vxor.u32 %v2756, 2147483648
    %v2761 = vmul.f32 %v2759, 1.442695
    %v2762 = vpow.pop %v2761
    %v2763 = vmul.f32 %v2760, 1.442695
    %v2764 = vpow.pop %v2763
    %v2765 = vadd.f32 %v2762, 1.0
    %v2766 = vadd.f32 %v2764, 1.0
    %v2767 = vrcp.pop %v2765
    %v2768 = vmul.f32 1.0, %v2767
    %v2769 = vrcp.pop %v2766
    %v2770 = vmul.f32 1.0, %v2769
    %v2771 = vld [vmem:[%s9] sm:$0xff]
    %v2772 = vld [vmem:[%s9 + $0x8] sm:$0xff]
    %v2773 = vmul.f32 %v2768, %v2771
    %v2774 = vmul.f32 %v2770, %v2772
    %v2775 = vsel %vm429, %v2773, 0.0
    %v2776 = vsel %vm429, %v2774, 0.0
    %v2777 = vadd.f32 %v2775, %v2776
    %2778 = vadd.xlane.f32.xlu0 %v2777
    %v2779 = vpop.xlane.xlu0 %2778
    %v2780 = vrot.slane %v2779, 4
    %v2781 = vadd.f32 %v2779, %v2780
    %v2782 = vrot.slane %v2781, 2
    %v2783 = vadd.f32 %v2781, %v2782
    %v2784 = vrot.slane %v2783, 1
    %v2785 = vadd.f32 %v2783, %v2784
    %s2786 = vtos %v2785
    %v2787 = vrcp.pop 256.0
    %s2788 = vtos %v2787
    %s2789 = smul.f32 %s2786, %s2788
    %vm2790 = vcmp.eq.s32.totalorder %v1031, 0
    %v2791 = vstv %s1872
    %v2792 = vsel %vm2790, %v2791, 0.0
    %vm2793 = vcmp.eq.s32.totalorder %v1031, 1
    %v2794 = vstv %s2671
    %v2795 = vsel %vm2793, %v2794, %v2792
    %vm2796 = vcmp.eq.s32.totalorder %v1031, 2
    %v2797 = vstv %s2789
    %v2798 = vsel %vm2796, %v2797, %v2795
    %2799 = vst [vmem:[#allocation16] sm:$0x1] %v2798
    // Predicated region
    $region106: #{tpu_custom_call.1} parent=1 // pred_check
      _
    $region107: #{tpu_custom_call.1} parent=1 // pred_check_branch
      %2801 = sbr.rel (0) target = $region109
    $region108: #{tpu_custom_call.1} parent=1 // pred_region
      %s2803 = ssub.s32 16, 16
      %2804 = vsyncadd [#allocation4], %s2803
      %s2806 = sshll.u32 [#allocation16], 4
      %s2807 = int_to_ptr.vmem [resolvable:$true] %s2806
      %2809 = dma.vmem_to_hbm [thread:$0]  %s2807, 16, %s18, [#allocation4]
    $region109: #{tpu_custom_call.1} parent=1 // pred_fallthru
      _
    // Predicated region
    $region110: #{tpu_custom_call.1} parent=1 // pred_check
      _
    $region111: #{tpu_custom_call.1} parent=1 // pred_check_branch
      %2811 = sbr.rel (0) target = $region113
    $region112: #{tpu_custom_call.1} parent=1 // pred_region
      %2812 = dma.done [#allocation4], 16
    $region113: #{tpu_custom_call.1} parent=1 // pred_fallthru
      _
    %2813 = vsyncpa [#allocation3], 1
    %2814 = vsyncpa [#allocation6], 1
    %2815 = vsyncpa [#allocation9], 1
    %2816 = vsyncpa [#allocation12], 1
    %2817 = vsyncpa [#allocation15], 1
    %2818 = vsyncpa [#allocation4], 1

</llo_original>
